<compile_context>
chip_gen: v6e
topology: v6e:2x2x1
jax: 0.10.0
libtpu: 0.0.40
codegen_flags: <defaults>
</compile_context>

<pallas_src>
import numpy as np
import jax
import jax.numpy as jnp
from jax import lax
from jax.experimental import pallas as pl
from jax.experimental.pallas import tpu as pltpu

N_WIRES = 4
DIM = 2 ** N_WIRES          # 16
STATE_ROWS = 2 * DIM        # 32 : [psi_re ; psi_im]
LANE_CHUNK = 512            # in-kernel compute chunk along the batch/lane axis
B_TILE_MAX = 16384          # per-grid-step batch tile (sweepable 8K-32K)


# ----------------------------------------------------------------------------
# Pallas kernel: fused data-upload encoder + constant circuit + measure + lsm
# ----------------------------------------------------------------------------
def qnet_kernel(ang_ref, w_ref, signs_ref, out_ref):
    # ang:   (16, Bt)  pooled angles, row 4*wire+k = angle k of `wire`, batch on lanes
    # w:     (32, 32)  stacked-real form [[Ur,-Ui],[Ui,Ur]] of the composed
    #                  parameter-only circuit unitary
    # signs: (4, 16)   PauliZ eigenvalue signs per wire / basis state
    # out:   (4, Bt)   log_softmax of the per-wire <Z> expectation values
    wmat = w_ref[...]                                     # (32, 32)
    signs = signs_ref[...]                                # (4, 16)
    n_chunks = ang_ref.shape[1] // LANE_CHUNK
    # basis-state index per output row (wire 0 = MSB of the 4-bit index)
    row = lax.broadcasted_iota(jnp.int32, (DIM, LANE_CHUNK), 0)

    def chunk_body(ci, carry):
        start = pl.multiple_of(ci * LANE_CHUNK, LANE_CHUNK)
        ang = ang_ref[:, pl.ds(start, LANE_CHUNK)]        # (16, C)
        c = jnp.cos(0.5 * ang)                            # EUP
        s = jnp.sin(0.5 * ang)

        # --- data re-uploading encoder: ry(a0) rz(a1) rx(a2) ry(a3) |0> / wire
        psi_re = None
        psi_im = None
        for j in range(N_WIRES):
            c0, s0 = c[4 * j + 0:4 * j + 1], s[4 * j + 0:4 * j + 1]
            c1, s1 = c[4 * j + 1:4 * j + 2], s[4 * j + 1:4 * j + 2]
            c2, s2 = c[4 * j + 2:4 * j + 3], s[4 * j + 2:4 * j + 3]
            c3, s3 = c[4 * j + 3:4 * j + 4], s[4 * j + 3:4 * j + 4]
            # ry(a0)|0> = [c0, s0]   (real)
            # rz(a1): w0 = c0 e^{-i a1/2},  w1 = s0 e^{+i a1/2}
            w0r, w0i = c0 * c1, -c0 * s1
            w1r, w1i = s0 * c1, s0 * s1
            # rx(a2) = [[c, -i s], [-i s, c]]
            x0r = c2 * w0r + s2 * w1i
            x0i = c2 * w0i - s2 * w1r
            x1r = s2 * w0i + c2 * w1r
            x1i = -s2 * w0r + c2 * w1i
            # ry(a3) = [[c, -s], [s, c]]
            y0r = c3 * x0r - s3 * x1r
            y0i = c3 * x0i - s3 * x1i
            y1r = s3 * x0r + c3 * x1r
            y1i = s3 * x0i + c3 * x1i
            # Kron without concat: select this wire's amplitude per basis row.
            bit = (row & (1 << (N_WIRES - 1 - j))) != 0   # (16, C) bool
            a_re = jnp.where(bit, y1r, y0r)               # (16, C) broadcast
            a_im = jnp.where(bit, y1i, y0i)
            if psi_re is None:
                psi_re, psi_im = a_re, a_im
            else:
                psi_re, psi_im = (psi_re * a_re - psi_im * a_im,
                                  psi_re * a_im + psi_im * a_re)

        # --- apply the composed parameter circuit: one stacked-real MXU matmul
        psi_stacked = jnp.concatenate([psi_re, psi_im], axis=0)   # (32, C)
        st = jnp.dot(wmat, psi_stacked, preferred_element_type=jnp.float32)
        sr, si = st[:DIM], st[DIM:]
        probs = sr * sr + si * si                                  # (16, C)

        # --- <Z_w> = signs @ probs, then log_softmax over the 4 classes
        ev = jnp.dot(signs, probs, preferred_element_type=jnp.float32)  # (4, C)
        m = jnp.max(ev, axis=0, keepdims=True)
        sh = ev - m
        lse = jnp.log(jnp.sum(jnp.exp(sh), axis=0, keepdims=True))
        out_ref[:, pl.ds(start, LANE_CHUNK)] = sh - lse
        return carry

    lax.fori_loop(0, n_chunks, chunk_body, 0)


def run_qnet_kernel(ang, w_stacked, signs, padded_b, b_tile):
    grid = (padded_b // b_tile,)
    return pl.pallas_call(
        qnet_kernel,
        out_shape=jax.ShapeDtypeStruct((N_WIRES, padded_b), jnp.float32),
        grid_spec=pltpu.PrefetchScalarGridSpec(
            num_scalar_prefetch=0,
            grid=grid,
            in_specs=[
                pl.BlockSpec((4 * N_WIRES, b_tile), lambda i: (0, i)),      # angles
                pl.BlockSpec((STATE_ROWS, STATE_ROWS), lambda i: (0, 0)),   # W
                pl.BlockSpec((N_WIRES, DIM), lambda i: (0, 0)),             # signs
            ],
            out_specs=pl.BlockSpec((N_WIRES, b_tile), lambda i: (0, i)),
        ),
        compiler_params=pltpu.CompilerParams(
            dimension_semantics=("parallel",)),
    )(ang, w_stacked, signs)


# ----------------------------------------------------------------------------
# Tiling / pooling helpers
# ----------------------------------------------------------------------------
def _round_up(x, m):
    return -(-x // m) * m


def _choose_tiling(bsz, b_tile_max=B_TILE_MAX):
    """Batch-aware tile: big enough to bury the ~0.35us per-grid-step overhead,
    small enough for v5e/v7x VMEM, >=2 tiles for large batches (v7x megacore),
    padding waste bounded by ~LANE_CHUNK per tile."""
    n_tiles = max(1, -(-bsz // b_tile_max))
    if bsz >= 4096:
        n_tiles = max(n_tiles, 2)
    b_tile = min(_round_up(-(-bsz // n_tiles), LANE_CHUNK), b_tile_max)
    padded_b = _round_up(bsz, b_tile)
    return b_tile, padded_b


def avg_pool2d_k6(x):  # NCHW, kernel=stride=6 (same as F.avg_pool2d(x, 6))
    b, c, h, w = x.shape
    ho, wo = h // 6, w // 6
    x = x[:, :, :ho * 6, :wo * 6].reshape(b, c, ho, 6, wo, 6)
    return x.mean(axis=(3, 5))


# ----------------------------------------------------------------------------
# Host-side constants (parameter-only; built once at setup, never per call)
# ----------------------------------------------------------------------------
_I2 = np.eye(2, dtype=np.complex64)
_X = np.array([[0, 1], [1, 0]], dtype=np.complex64)
_Y = np.array([[0, -1j], [1j, 0]], dtype=np.complex64)
_Z = np.array([[1, 0], [0, -1]], dtype=np.complex64)


def _rx(t):
    c, s = np.cos(t / 2.0), np.sin(t / 2.0)
    return np.array([[c, -1j * s], [-1j * s, c]], dtype=np.complex64)


def _ry(t):
    c, s = np.cos(t / 2.0), np.sin(t / 2.0)
    return np.array([[c, -s], [s, c]], dtype=np.complex64)


def _rz(t):
    return np.array([[np.exp(-0.5j * t), 0], [0, np.exp(0.5j * t)]],
                    dtype=np.complex64)


def _r_pp(t, pauli):  # exp(-i t/2 P (x) P)
    pp = np.kron(pauli, pauli)
    return (np.cos(t / 2.0) * np.eye(4, dtype=np.complex64)
            - 1j * np.sin(t / 2.0) * pp).astype(np.complex64)


def _embed1(u2, wire, n=N_WIRES):
    m = np.array([[1.0]], dtype=np.complex64)
    for k in range(n):
        m = np.kron(m, u2 if k == wire else _I2)
    return m


def _embed2(u4, wa, wb, n=N_WIRES):
    dim = 2 ** n
    m = np.zeros((dim, dim), dtype=np.complex64)
    for i in range(dim):
        for k in range(dim):
            if any(((i >> (n - 1 - w)) & 1) != ((k >> (n - 1 - w)) & 1)
                   for w in range(n) if w not in (wa, wb)):
                continue
            ri = 2 * ((i >> (n - 1 - wa)) & 1) + ((i >> (n - 1 - wb)) & 1)
            ci = 2 * ((k >> (n - 1 - wa)) & 1) + ((k >> (n - 1 - wb)) & 1)
            m[i, k] = u4[ri, ci]
    return m


_SINGLE = {'RX': _rx, 'RY': _ry, 'RZ': _rz}
_TWO = {'RXX': lambda t: _r_pp(t, _X),
        'RYY': lambda t: _r_pp(t, _Y),
        'RZZ': lambda t: _r_pp(t, _Z)}


def build_design():
    d = {'repeat': 1, 'n_layers': 3, 'n_qubits': N_WIRES}
    for q in range(N_WIRES):               # layer 0: data re-uploading
        d[f'rot00{q}'] = 'data'
        d[f'enta00edge{q}'] = 'N/A'
    rots1 = ['RX', 'RY', 'RZ', 'RX']       # layer 1: single-qubit rotations
    for q in range(N_WIRES):
        d[f'rot01{q}'] = rots1[q]
        d[f'enta01edge{q}'] = 'N/A'
    for q in range(N_WIRES):               # layer 2: ring of RZZ entanglers
        d[f'rot02{q}'] = 'N/A'
        d[f'enta02edge{q}'] = ('RZZ', [q, (q + 1) % N_WIRES])
    d['pnnp'] = [[0.1 * (l * N_WIRES + q + 1) for q in range(N_WIRES)]
                 for l in range(3)]
    return d


def gate_type_for(design, r, layer, q):
    rot = design[f'rot{r}{layer}{q}']
    if rot in _SINGLE:
        return rot
    enta = design[f'enta{r}{layer}edge{q}']
    if enta != 'N/A' and enta[0] in _TWO:
        return enta[0]
    return 'RXX'  # TQLayer's fallback branch (silent substitution, as in spec)


def build_constant_unitary(design):
    """Compose all parameter-only (batch-independent) gates into one 16x16."""
    n_layers = design['n_layers']
    pnnp = design['pnnp']
    u = np.eye(DIM, dtype=np.complex64)
    for r in range(design['repeat']):
        for layer in range(n_layers):
            for j in range(N_WIRES):
                rot = design[f'rot{r}{layer}{j}']
                if rot in ('N/A', 'data'):
                    continue
                theta = pnnp[layer + n_layers * r][j]
                u = _embed1(_SINGLE[rot](theta), j) @ u
            for e in range(N_WIRES):
                enta = design[f'enta{r}{layer}edge{e}']
                if enta == 'N/A':
                    continue
                gtype = gate_type_for(design, r, layer, e)
                theta = pnnp[layer + n_layers * r][e]
                wa, wb = enta[1]
                u = _embed2(_TWO[gtype](theta), wa, wb) @ u
    return u


def pauli_z_signs():
    s = np.zeros((N_WIRES, DIM), dtype=np.float32)
    for w in range(N_WIRES):
        for i in range(DIM):
            s[w, i] = 1.0 - 2.0 * ((i >> (N_WIRES - 1 - w)) & 1)
    return s


# ----------------------------------------------------------------------------
# Forward factory: constants built once, whole forward jitted
# ----------------------------------------------------------------------------
def make_qnet_forward(design, b_tile_max=B_TILE_MAX):
    uc = build_constant_unitary(design)                              # host, once
    w_stacked = jnp.asarray(np.block([[uc.real, -uc.imag],
                                      [uc.imag, uc.real]]).astype(np.float32))
    signs = jnp.asarray(pauli_z_signs())

    @jax.jit
    def forward(x_image):
        bsz = x_image.shape[0]
        pooled = avg_pool2d_k6(x_image)                              # (B, 1, 4, 4)
        xt = jnp.swapaxes(pooled.reshape(bsz, 4, 4), 1, 2)           # (B, wire, angle)
        ang = xt.reshape(bsz, 4 * N_WIRES).T.astype(jnp.float32)     # (16, B)
        b_tile, padded_b = _choose_tiling(bsz, b_tile_max)
        if padded_b != bsz:
            ang = jnp.pad(ang, ((0, 0), (0, padded_b - bsz)))
        out_t = run_qnet_kernel(ang, w_stacked, signs, padded_b, b_tile)
        return out_t[:, :bsz].T                                      # (B, 4)

    return forward


# ----------------------------------------------------------------------------
# Reference (host numpy, gate-by-gate simulation) — test only
# ----------------------------------------------------------------------------
def build_gate_sequence(design, x_feat):
    bsz = x_feat.shape[0]
    pnnp = design['pnnp']
    gates = []
    for r in range(design['repeat']):
        for layer in range(design['n_layers']):
            for j in range(N_WIRES):
                rot = design[f'rot{r}{layer}{j}']
                if rot == 'N/A':
                    continue
                if rot == 'data':
                    per_b = []
                    for b in range(bsz):
                        a = x_feat[b, j]
                        u2 = _ry(a[3]) @ _rx(a[2]) @ _rz(a[1]) @ _ry(a[0])
                        per_b.append(_embed1(u2, j))
                    gates.append(np.stack(per_b))
                else:
                    theta = pnnp[layer + design['n_layers'] * r][j]
                    full = _embed1(_SINGLE[rot](theta), j)
                    gates.append(np.broadcast_to(full, (bsz, DIM, DIM)).copy())
            for e in range(N_WIRES):
                enta = design[f'enta{r}{layer}edge{e}']
                if enta == 'N/A':
                    continue
                gtype = gate_type_for(design, r, layer, e)
                theta = pnnp[layer + design['n_layers'] * r][e]
                wa, wb = enta[1]
                full = _embed2(_TWO[gtype](theta), wa, wb)
                gates.append(np.broadcast_to(full, (bsz, DIM, DIM)).copy())
    return np.stack(gates).astype(np.complex64)


def reference_forward(u_all, signs_np, bsz):
    state = np.zeros((bsz, DIM), dtype=np.complex64)
    state[:, 0] = 1.0
    for g in range(u_all.shape[0]):
        state = np.einsum('bij,bj->bi', u_all[g], state)
    probs = np.abs(state) ** 2
    ev = probs @ signs_np.T
    m = ev.max(axis=1, keepdims=True)
    sh = ev - m
    return sh - np.log(np.exp(sh).sum(axis=1, keepdims=True))


if __name__ == "__main__":
    design = build_design()
    qnet_forward = make_qnet_forward(design)

    key = jax.random.PRNGKey(0)
    # MNIST-like input, as implied by avg_pool2d(x, 6) -> view(bsz, 4, 4)
    x_image = jax.random.uniform(key, (2, 1, 28, 28), dtype=jnp.float32)

    out = jax.block_until_ready(qnet_forward(x_image))

    # Independent gate-by-gate numpy reference (host; test only).
    x_np = np.asarray(jax.device_get(x_image))
    pooled_np = avg_pool2d_k6(x_np)
    x_feat = np.swapaxes(pooled_np.reshape(x_np.shape[0], 4, 4), 1, 2)
    u_all = build_gate_sequence(design, x_feat.astype(np.float32))
    ref = reference_forward(u_all, pauli_z_signs(), x_np.shape[0])

    np.testing.assert_allclose(np.asarray(out), ref, atol=1e-4, rtol=1e-4)
    print("KERNEL_OK")
</pallas_src>

<mosaic_0001>
module attributes {stable_mosaic.version = 11 : i64} {
  func.func @qnet_kernel(%arg0: i32, %arg1: memref<16x512xf32, #tpu.memory_space<vmem>>, %arg2: memref<32x32xf32, #tpu.memory_space<vmem>>, %arg3: memref<4x16xf32, #tpu.memory_space<vmem>>, %arg4: memref<4x512xf32, #tpu.memory_space<vmem>>) attributes {dimension_semantics = [#tpu.dimension_semantics<parallel>], iteration_bounds = array<i64: 1>, scalar_prefetch = 0 : i64, scratch_operands = 0 : i64, tpu.core_type = #tpu.core_type<tc>, window_params = [{transform_indices = @transform_0, window_bounds = array<i64: 16, 512>}, {pipeline_mode = #tpu.pipeline_mode<synchronous>, transform_indices = @transform_1, window_bounds = array<i64: 32, 32>}, {pipeline_mode = #tpu.pipeline_mode<synchronous>, transform_indices = @transform_2, window_bounds = array<i64: 4, 16>}, {transform_indices = @transform_3, window_bounds = array<i64: 4, 512>}]} {
    %c0 = arith.constant 0 : index
    %c0_0 = arith.constant 0 : index
    %0 = vector.load %arg2[%c0, %c0_0] : memref<32x32xf32, #tpu.memory_space<vmem>>, vector<32x32xf32>
    %c0_1 = arith.constant 0 : index
    %c0_2 = arith.constant 0 : index
    %1 = vector.load %arg3[%c0_1, %c0_2] : memref<4x16xf32, #tpu.memory_space<vmem>>, vector<4x16xf32>
    %2 = tpu.iota {dimensions = array<i32: 0>} : vector<16x512xi32>
    %c0_i32 = arith.constant 0 : i32
    %c512_i32 = arith.constant 512 : i32
    %3 = arith.muli %c0_i32, %c512_i32 : i32
    %4 = tpu.assume_multiple %3, 512 : i32
    %c0_3 = arith.constant 0 : index
    %5 = arith.index_cast %4 : i32 to index
    %6 = vector.load %arg1[%c0_3, %5] : memref<16x512xf32, #tpu.memory_space<vmem>>, vector<16x512xf32>
    %cst = arith.constant 5.000000e-01 : f32
    %7 = vector.broadcast %cst : f32 to vector<16x512xf32>
    %8 = arith.mulf %7, %6 : vector<16x512xf32>
    %9 = math.cos %8 : vector<16x512xf32>
    %cst_4 = arith.constant 5.000000e-01 : f32
    %10 = vector.broadcast %cst_4 : f32 to vector<16x512xf32>
    %11 = arith.mulf %10, %6 : vector<16x512xf32>
    %12 = math.sin %11 : vector<16x512xf32>
    %13 = vector.extract_strided_slice %9 {offsets = [0, 0], sizes = [1, 512], strides = [1, 1]} : vector<16x512xf32> to vector<1x512xf32>
    %14 = vector.extract_strided_slice %12 {offsets = [0, 0], sizes = [1, 512], strides = [1, 1]} : vector<16x512xf32> to vector<1x512xf32>
    %15 = vector.extract_strided_slice %9 {offsets = [1, 0], sizes = [1, 512], strides = [1, 1]} : vector<16x512xf32> to vector<1x512xf32>
    %16 = vector.extract_strided_slice %12 {offsets = [1, 0], sizes = [1, 512], strides = [1, 1]} : vector<16x512xf32> to vector<1x512xf32>
    %17 = vector.extract_strided_slice %9 {offsets = [2, 0], sizes = [1, 512], strides = [1, 1]} : vector<16x512xf32> to vector<1x512xf32>
    %18 = vector.extract_strided_slice %12 {offsets = [2, 0], sizes = [1, 512], strides = [1, 1]} : vector<16x512xf32> to vector<1x512xf32>
    %19 = vector.extract_strided_slice %9 {offsets = [3, 0], sizes = [1, 512], strides = [1, 1]} : vector<16x512xf32> to vector<1x512xf32>
    %20 = vector.extract_strided_slice %12 {offsets = [3, 0], sizes = [1, 512], strides = [1, 1]} : vector<16x512xf32> to vector<1x512xf32>
    %21 = arith.mulf %13, %15 : vector<1x512xf32>
    %cst_5 = arith.constant 0.000000e+00 : f32
    %22 = vector.broadcast %cst_5 : f32 to vector<1x512xf32>
    %23 = arith.subf %22, %13 : vector<1x512xf32>
    %24 = arith.mulf %23, %16 : vector<1x512xf32>
    %25 = arith.mulf %14, %15 : vector<1x512xf32>
    %26 = arith.mulf %14, %16 : vector<1x512xf32>
    %27 = arith.mulf %17, %21 : vector<1x512xf32>
    %28 = arith.mulf %18, %26 : vector<1x512xf32>
    %29 = arith.addf %27, %28 : vector<1x512xf32>
    %30 = arith.mulf %17, %24 : vector<1x512xf32>
    %31 = arith.mulf %18, %25 : vector<1x512xf32>
    %32 = arith.subf %30, %31 : vector<1x512xf32>
    %33 = arith.mulf %18, %24 : vector<1x512xf32>
    %34 = arith.mulf %17, %25 : vector<1x512xf32>
    %35 = arith.addf %33, %34 : vector<1x512xf32>
    %cst_6 = arith.constant 0.000000e+00 : f32
    %36 = vector.broadcast %cst_6 : f32 to vector<1x512xf32>
    %37 = arith.subf %36, %18 : vector<1x512xf32>
    %38 = arith.mulf %37, %21 : vector<1x512xf32>
    %39 = arith.mulf %17, %26 : vector<1x512xf32>
    %40 = arith.addf %38, %39 : vector<1x512xf32>
    %41 = arith.mulf %19, %29 : vector<1x512xf32>
    %42 = arith.mulf %20, %35 : vector<1x512xf32>
    %43 = arith.subf %41, %42 : vector<1x512xf32>
    %44 = arith.mulf %19, %32 : vector<1x512xf32>
    %45 = arith.mulf %20, %40 : vector<1x512xf32>
    %46 = arith.subf %44, %45 : vector<1x512xf32>
    %47 = arith.mulf %20, %29 : vector<1x512xf32>
    %48 = arith.mulf %19, %35 : vector<1x512xf32>
    %49 = arith.addf %47, %48 : vector<1x512xf32>
    %50 = arith.mulf %20, %32 : vector<1x512xf32>
    %51 = arith.mulf %19, %40 : vector<1x512xf32>
    %52 = arith.addf %50, %51 : vector<1x512xf32>
    %c8_i32 = arith.constant 8 : i32
    %53 = vector.broadcast %c8_i32 : i32 to vector<16x512xi32>
    %54 = arith.andi %2, %53 : vector<16x512xi32>
    %c0_i32_7 = arith.constant 0 : i32
    %55 = vector.broadcast %c0_i32_7 : i32 to vector<16x512xi32>
    %56 = arith.cmpi ne, %54, %55 : vector<16x512xi32>
    %57 = vector.shape_cast %49 : vector<1x512xf32> to vector<1x512xf32>
    %58 = vector.broadcast %57 : vector<1x512xf32> to vector<16x512xf32>
    %59 = vector.shape_cast %43 : vector<1x512xf32> to vector<1x512xf32>
    %60 = vector.broadcast %59 : vector<1x512xf32> to vector<16x512xf32>
    %61 = arith.select %56, %58, %60 : vector<16x512xi1>, vector<16x512xf32>
    %62 = vector.shape_cast %52 : vector<1x512xf32> to vector<1x512xf32>
    %63 = vector.broadcast %62 : vector<1x512xf32> to vector<16x512xf32>
    %64 = vector.shape_cast %46 : vector<1x512xf32> to vector<1x512xf32>
    %65 = vector.broadcast %64 : vector<1x512xf32> to vector<16x512xf32>
    %66 = arith.select %56, %63, %65 : vector<16x512xi1>, vector<16x512xf32>
    %67 = vector.extract_strided_slice %9 {offsets = [4, 0], sizes = [1, 512], strides = [1, 1]} : vector<16x512xf32> to vector<1x512xf32>
    %68 = vector.extract_strided_slice %12 {offsets = [4, 0], sizes = [1, 512], strides = [1, 1]} : vector<16x512xf32> to vector<1x512xf32>
    %69 = vector.extract_strided_slice %9 {offsets = [5, 0], sizes = [1, 512], strides = [1, 1]} : vector<16x512xf32> to vector<1x512xf32>
    %70 = vector.extract_strided_slice %12 {offsets = [5, 0], sizes = [1, 512], strides = [1, 1]} : vector<16x512xf32> to vector<1x512xf32>
    %71 = vector.extract_strided_slice %9 {offsets = [6, 0], sizes = [1, 512], strides = [1, 1]} : vector<16x512xf32> to vector<1x512xf32>
    %72 = vector.extract_strided_slice %12 {offsets = [6, 0], sizes = [1, 512], strides = [1, 1]} : vector<16x512xf32> to vector<1x512xf32>
    %73 = vector.extract_strided_slice %9 {offsets = [7, 0], sizes = [1, 512], strides = [1, 1]} : vector<16x512xf32> to vector<1x512xf32>
    %74 = vector.extract_strided_slice %12 {offsets = [7, 0], sizes = [1, 512], strides = [1, 1]} : vector<16x512xf32> to vector<1x512xf32>
    %75 = arith.mulf %67, %69 : vector<1x512xf32>
    %cst_8 = arith.constant 0.000000e+00 : f32
    %76 = vector.broadcast %cst_8 : f32 to vector<1x512xf32>
    %77 = arith.subf %76, %67 : vector<1x512xf32>
    %78 = arith.mulf %77, %70 : vector<1x512xf32>
    %79 = arith.mulf %68, %69 : vector<1x512xf32>
    %80 = arith.mulf %68, %70 : vector<1x512xf32>
    %81 = arith.mulf %71, %75 : vector<1x512xf32>
    %82 = arith.mulf %72, %80 : vector<1x512xf32>
    %83 = arith.addf %81, %82 : vector<1x512xf32>
    %84 = arith.mulf %71, %78 : vector<1x512xf32>
    %85 = arith.mulf %72, %79 : vector<1x512xf32>
    %86 = arith.subf %84, %85 : vector<1x512xf32>
    %87 = arith.mulf %72, %78 : vector<1x512xf32>
    %88 = arith.mulf %71, %79 : vector<1x512xf32>
    %89 = arith.addf %87, %88 : vector<1x512xf32>
    %cst_9 = arith.constant 0.000000e+00 : f32
    %90 = vector.broadcast %cst_9 : f32 to vector<1x512xf32>
    %91 = arith.subf %90, %72 : vector<1x512xf32>
    %92 = arith.mulf %91, %75 : vector<1x512xf32>
    %93 = arith.mulf %71, %80 : vector<1x512xf32>
    %94 = arith.addf %92, %93 : vector<1x512xf32>
    %95 = arith.mulf %73, %83 : vector<1x512xf32>
    %96 = arith.mulf %74, %89 : vector<1x512xf32>
    %97 = arith.subf %95, %96 : vector<1x512xf32>
    %98 = arith.mulf %73, %86 : vector<1x512xf32>
    %99 = arith.mulf %74, %94 : vector<1x512xf32>
    %100 = arith.subf %98, %99 : vector<1x512xf32>
    %101 = arith.mulf %74, %83 : vector<1x512xf32>
    %102 = arith.mulf %73, %89 : vector<1x512xf32>
    %103 = arith.addf %101, %102 : vector<1x512xf32>
    %104 = arith.mulf %74, %86 : vector<1x512xf32>
    %105 = arith.mulf %73, %94 : vector<1x512xf32>
    %106 = arith.addf %104, %105 : vector<1x512xf32>
    %c4_i32 = arith.constant 4 : i32
    %107 = vector.broadcast %c4_i32 : i32 to vector<16x512xi32>
    %108 = arith.andi %2, %107 : vector<16x512xi32>
    %c0_i32_10 = arith.constant 0 : i32
    %109 = vector.broadcast %c0_i32_10 : i32 to vector<16x512xi32>
    %110 = arith.cmpi ne, %108, %109 : vector<16x512xi32>
    %111 = vector.shape_cast %103 : vector<1x512xf32> to vector<1x512xf32>
    %112 = vector.broadcast %111 : vector<1x512xf32> to vector<16x512xf32>
    %113 = vector.shape_cast %97 : vector<1x512xf32> to vector<1x512xf32>
    %114 = vector.broadcast %113 : vector<1x512xf32> to vector<16x512xf32>
    %115 = arith.select %110, %112, %114 : vector<16x512xi1>, vector<16x512xf32>
    %116 = vector.shape_cast %106 : vector<1x512xf32> to vector<1x512xf32>
    %117 = vector.broadcast %116 : vector<1x512xf32> to vector<16x512xf32>
    %118 = vector.shape_cast %100 : vector<1x512xf32> to vector<1x512xf32>
    %119 = vector.broadcast %118 : vector<1x512xf32> to vector<16x512xf32>
    %120 = arith.select %110, %117, %119 : vector<16x512xi1>, vector<16x512xf32>
    %121 = arith.mulf %61, %115 : vector<16x512xf32>
    %122 = arith.mulf %66, %120 : vector<16x512xf32>
    %123 = arith.subf %121, %122 : vector<16x512xf32>
    %124 = arith.mulf %61, %120 : vector<16x512xf32>
    %125 = arith.mulf %66, %115 : vector<16x512xf32>
    %126 = arith.addf %124, %125 : vector<16x512xf32>
    %127 = vector.extract_strided_slice %9 {offsets = [8, 0], sizes = [1, 512], strides = [1, 1]} : vector<16x512xf32> to vector<1x512xf32>
    %128 = vector.extract_strided_slice %12 {offsets = [8, 0], sizes = [1, 512], strides = [1, 1]} : vector<16x512xf32> to vector<1x512xf32>
    %129 = vector.extract_strided_slice %9 {offsets = [9, 0], sizes = [1, 512], strides = [1, 1]} : vector<16x512xf32> to vector<1x512xf32>
    %130 = vector.extract_strided_slice %12 {offsets = [9, 0], sizes = [1, 512], strides = [1, 1]} : vector<16x512xf32> to vector<1x512xf32>
    %131 = vector.extract_strided_slice %9 {offsets = [10, 0], sizes = [1, 512], strides = [1, 1]} : vector<16x512xf32> to vector<1x512xf32>
    %132 = vector.extract_strided_slice %12 {offsets = [10, 0], sizes = [1, 512], strides = [1, 1]} : vector<16x512xf32> to vector<1x512xf32>
    %133 = vector.extract_strided_slice %9 {offsets = [11, 0], sizes = [1, 512], strides = [1, 1]} : vector<16x512xf32> to vector<1x512xf32>
    %134 = vector.extract_strided_slice %12 {offsets = [11, 0], sizes = [1, 512], strides = [1, 1]} : vector<16x512xf32> to vector<1x512xf32>
    %135 = arith.mulf %127, %129 : vector<1x512xf32>
    %cst_11 = arith.constant 0.000000e+00 : f32
    %136 = vector.broadcast %cst_11 : f32 to vector<1x512xf32>
    %137 = arith.subf %136, %127 : vector<1x512xf32>
    %138 = arith.mulf %137, %130 : vector<1x512xf32>
    %139 = arith.mulf %128, %129 : vector<1x512xf32>
    %140 = arith.mulf %128, %130 : vector<1x512xf32>
    %141 = arith.mulf %131, %135 : vector<1x512xf32>
    %142 = arith.mulf %132, %140 : vector<1x512xf32>
    %143 = arith.addf %141, %142 : vector<1x512xf32>
    %144 = arith.mulf %131, %138 : vector<1x512xf32>
    %145 = arith.mulf %132, %139 : vector<1x512xf32>
    %146 = arith.subf %144, %145 : vector<1x512xf32>
    %147 = arith.mulf %132, %138 : vector<1x512xf32>
    %148 = arith.mulf %131, %139 : vector<1x512xf32>
    %149 = arith.addf %147, %148 : vector<1x512xf32>
    %cst_12 = arith.constant 0.000000e+00 : f32
    %150 = vector.broadcast %cst_12 : f32 to vector<1x512xf32>
    %151 = arith.subf %150, %132 : vector<1x512xf32>
    %152 = arith.mulf %151, %135 : vector<1x512xf32>
    %153 = arith.mulf %131, %140 : vector<1x512xf32>
    %154 = arith.addf %152, %153 : vector<1x512xf32>
    %155 = arith.mulf %133, %143 : vector<1x512xf32>
    %156 = arith.mulf %134, %149 : vector<1x512xf32>
    %157 = arith.subf %155, %156 : vector<1x512xf32>
    %158 = arith.mulf %133, %146 : vector<1x512xf32>
    %159 = arith.mulf %134, %154 : vector<1x512xf32>
    %160 = arith.subf %158, %159 : vector<1x512xf32>
    %161 = arith.mulf %134, %143 : vector<1x512xf32>
    %162 = arith.mulf %133, %149 : vector<1x512xf32>
    %163 = arith.addf %161, %162 : vector<1x512xf32>
    %164 = arith.mulf %134, %146 : vector<1x512xf32>
    %165 = arith.mulf %133, %154 : vector<1x512xf32>
    %166 = arith.addf %164, %165 : vector<1x512xf32>
    %c2_i32 = arith.constant 2 : i32
    %167 = vector.broadcast %c2_i32 : i32 to vector<16x512xi32>
    %168 = arith.andi %2, %167 : vector<16x512xi32>
    %c0_i32_13 = arith.constant 0 : i32
    %169 = vector.broadcast %c0_i32_13 : i32 to vector<16x512xi32>
    %170 = arith.cmpi ne, %168, %169 : vector<16x512xi32>
    %171 = vector.shape_cast %163 : vector<1x512xf32> to vector<1x512xf32>
    %172 = vector.broadcast %171 : vector<1x512xf32> to vector<16x512xf32>
    %173 = vector.shape_cast %157 : vector<1x512xf32> to vector<1x512xf32>
    %174 = vector.broadcast %173 : vector<1x512xf32> to vector<16x512xf32>
    %175 = arith.select %170, %172, %174 : vector<16x512xi1>, vector<16x512xf32>
    %176 = vector.shape_cast %166 : vector<1x512xf32> to vector<1x512xf32>
    %177 = vector.broadcast %176 : vector<1x512xf32> to vector<16x512xf32>
    %178 = vector.shape_cast %160 : vector<1x512xf32> to vector<1x512xf32>
    %179 = vector.broadcast %178 : vector<1x512xf32> to vector<16x512xf32>
    %180 = arith.select %170, %177, %179 : vector<16x512xi1>, vector<16x512xf32>
    %181 = arith.mulf %123, %175 : vector<16x512xf32>
    %182 = arith.mulf %126, %180 : vector<16x512xf32>
    %183 = arith.subf %181, %182 : vector<16x512xf32>
    %184 = arith.mulf %123, %180 : vector<16x512xf32>
    %185 = arith.mulf %126, %175 : vector<16x512xf32>
    %186 = arith.addf %184, %185 : vector<16x512xf32>
    %187 = vector.extract_strided_slice %9 {offsets = [12, 0], sizes = [1, 512], strides = [1, 1]} : vector<16x512xf32> to vector<1x512xf32>
    %188 = vector.extract_strided_slice %12 {offsets = [12, 0], sizes = [1, 512], strides = [1, 1]} : vector<16x512xf32> to vector<1x512xf32>
    %189 = vector.extract_strided_slice %9 {offsets = [13, 0], sizes = [1, 512], strides = [1, 1]} : vector<16x512xf32> to vector<1x512xf32>
    %190 = vector.extract_strided_slice %12 {offsets = [13, 0], sizes = [1, 512], strides = [1, 1]} : vector<16x512xf32> to vector<1x512xf32>
    %191 = vector.extract_strided_slice %9 {offsets = [14, 0], sizes = [1, 512], strides = [1, 1]} : vector<16x512xf32> to vector<1x512xf32>
    %192 = vector.extract_strided_slice %12 {offsets = [14, 0], sizes = [1, 512], strides = [1, 1]} : vector<16x512xf32> to vector<1x512xf32>
    %193 = vector.extract_strided_slice %9 {offsets = [15, 0], sizes = [1, 512], strides = [1, 1]} : vector<16x512xf32> to vector<1x512xf32>
    %194 = vector.extract_strided_slice %12 {offsets = [15, 0], sizes = [1, 512], strides = [1, 1]} : vector<16x512xf32> to vector<1x512xf32>
    %195 = arith.mulf %187, %189 : vector<1x512xf32>
    %cst_14 = arith.constant 0.000000e+00 : f32
    %196 = vector.broadcast %cst_14 : f32 to vector<1x512xf32>
    %197 = arith.subf %196, %187 : vector<1x512xf32>
    %198 = arith.mulf %197, %190 : vector<1x512xf32>
    %199 = arith.mulf %188, %189 : vector<1x512xf32>
    %200 = arith.mulf %188, %190 : vector<1x512xf32>
    %201 = arith.mulf %191, %195 : vector<1x512xf32>
    %202 = arith.mulf %192, %200 : vector<1x512xf32>
    %203 = arith.addf %201, %202 : vector<1x512xf32>
    %204 = arith.mulf %191, %198 : vector<1x512xf32>
    %205 = arith.mulf %192, %199 : vector<1x512xf32>
    %206 = arith.subf %204, %205 : vector<1x512xf32>
    %207 = arith.mulf %192, %198 : vector<1x512xf32>
    %208 = arith.mulf %191, %199 : vector<1x512xf32>
    %209 = arith.addf %207, %208 : vector<1x512xf32>
    %cst_15 = arith.constant 0.000000e+00 : f32
    %210 = vector.broadcast %cst_15 : f32 to vector<1x512xf32>
    %211 = arith.subf %210, %192 : vector<1x512xf32>
    %212 = arith.mulf %211, %195 : vector<1x512xf32>
    %213 = arith.mulf %191, %200 : vector<1x512xf32>
    %214 = arith.addf %212, %213 : vector<1x512xf32>
    %215 = arith.mulf %193, %203 : vector<1x512xf32>
    %216 = arith.mulf %194, %209 : vector<1x512xf32>
    %217 = arith.subf %215, %216 : vector<1x512xf32>
    %218 = arith.mulf %193, %206 : vector<1x512xf32>
    %219 = arith.mulf %194, %214 : vector<1x512xf32>
    %220 = arith.subf %218, %219 : vector<1x512xf32>
    %221 = arith.mulf %194, %203 : vector<1x512xf32>
    %222 = arith.mulf %193, %209 : vector<1x512xf32>
    %223 = arith.addf %221, %222 : vector<1x512xf32>
    %224 = arith.mulf %194, %206 : vector<1x512xf32>
    %225 = arith.mulf %193, %214 : vector<1x512xf32>
    %226 = arith.addf %224, %225 : vector<1x512xf32>
    %c1_i32 = arith.constant 1 : i32
    %227 = vector.broadcast %c1_i32 : i32 to vector<16x512xi32>
    %228 = arith.andi %2, %227 : vector<16x512xi32>
    %c0_i32_16 = arith.constant 0 : i32
    %229 = vector.broadcast %c0_i32_16 : i32 to vector<16x512xi32>
    %230 = arith.cmpi ne, %228, %229 : vector<16x512xi32>
    %231 = vector.shape_cast %223 : vector<1x512xf32> to vector<1x512xf32>
    %232 = vector.broadcast %231 : vector<1x512xf32> to vector<16x512xf32>
    %233 = vector.shape_cast %217 : vector<1x512xf32> to vector<1x512xf32>
    %234 = vector.broadcast %233 : vector<1x512xf32> to vector<16x512xf32>
    %235 = arith.select %230, %232, %234 : vector<16x512xi1>, vector<16x512xf32>
    %236 = vector.shape_cast %226 : vector<1x512xf32> to vector<1x512xf32>
    %237 = vector.broadcast %236 : vector<1x512xf32> to vector<16x512xf32>
    %238 = vector.shape_cast %220 : vector<1x512xf32> to vector<1x512xf32>
    %239 = vector.broadcast %238 : vector<1x512xf32> to vector<16x512xf32>
    %240 = arith.select %230, %237, %239 : vector<16x512xi1>, vector<16x512xf32>
    %241 = arith.mulf %183, %235 : vector<16x512xf32>
    %242 = arith.mulf %186, %240 : vector<16x512xf32>
    %243 = arith.subf %241, %242 : vector<16x512xf32>
    %244 = arith.mulf %183, %240 : vector<16x512xf32>
    %245 = arith.mulf %186, %235 : vector<16x512xf32>
    %246 = arith.addf %244, %245 : vector<16x512xf32>
    %247 = tpu.concatenate %243, %246 in 0 : vector<16x512xf32>, vector<16x512xf32> -> vector<32x512xf32>
    %cst_17 = arith.constant dense<0.000000e+00> : vector<32x512xf32>
    %248 = tpu.matmul %0, %247, %cst_17 {dimension_numbers = #tpu.dot_dimension_numbers<[1], [0], [0], [1], [0, 0, 1, 1], [], []>} : vector<32x32xf32>, vector<32x512xf32>, vector<32x512xf32> -> vector<32x512xf32>
    %249 = vector.extract_strided_slice %248 {offsets = [0, 0], sizes = [16, 512], strides = [1, 1]} : vector<32x512xf32> to vector<16x512xf32>
    %250 = vector.extract_strided_slice %248 {offsets = [16, 0], sizes = [16, 512], strides = [1, 1]} : vector<32x512xf32> to vector<16x512xf32>
    %251 = arith.mulf %249, %249 : vector<16x512xf32>
    %252 = arith.mulf %250, %250 : vector<16x512xf32>
    %253 = arith.addf %251, %252 : vector<16x512xf32>
    %cst_18 = arith.constant dense<0.000000e+00> : vector<4x512xf32>
    %254 = tpu.matmul %1, %253, %cst_18 {dimension_numbers = #tpu.dot_dimension_numbers<[1], [0], [0], [1], [0, 0, 1, 1], [], []>} : vector<4x16xf32>, vector<16x512xf32>, vector<4x512xf32> -> vector<4x512xf32>
    %cst_19 = arith.constant dense<0xFF800000> : vector<512xf32>
    %255 = vector.multi_reduction <maximumf>, %254, %cst_19 [0] : vector<4x512xf32> to vector<512xf32>
    %256 = vector.shape_cast %255 : vector<512xf32> to vector<1x512xf32>
    %257 = vector.broadcast %256 : vector<1x512xf32> to vector<4x512xf32>
    %258 = arith.subf %254, %257 : vector<4x512xf32>
    %259 = math.exp %258 : vector<4x512xf32>
    %cst_20 = arith.constant dense<0.000000e+00> : vector<512xf32>
    %260 = vector.multi_reduction <add>, %259, %cst_20 [0] : vector<4x512xf32> to vector<512xf32>
    %261 = vector.shape_cast %260 : vector<512xf32> to vector<1x512xf32>
    %262 = math.log %261 : vector<1x512xf32>
    %263 = vector.broadcast %262 : vector<1x512xf32> to vector<4x512xf32>
    %264 = arith.subf %258, %263 : vector<4x512xf32>
    %c0_21 = arith.constant 0 : index
    %265 = arith.index_cast %4 : i32 to index
    %266 = vector.load %arg4[%c0_21, %265] : memref<4x512xf32, #tpu.memory_space<vmem>>, vector<4x512xf32>
    tpu.vector_store %arg4[%c0_21, %265], %264 {strides = array<i32>} : memref<4x512xf32, #tpu.memory_space<vmem>>, vector<4x512xf32>,
    %c1_i32_22 = arith.constant 1 : i32
    return
  }
  func.func @transform_0(%arg0: i32) -> (i32, i32) {
    %c0_i32 = arith.constant 0 : i32
    %c0_i32_0 = arith.constant 0 : i32
    return %c0_i32, %arg0 : i32, i32
  }
  func.func @transform_1(%arg0: i32) -> (i32, i32) {
    %c0_i32 = arith.constant 0 : i32
    %c0_i32_0 = arith.constant 0 : i32
    %c0_i32_1 = arith.constant 0 : i32
    return %c0_i32, %c0_i32_0 : i32, i32
  }
  func.func @transform_2(%arg0: i32) -> (i32, i32) {
    %c0_i32 = arith.constant 0 : i32
    %c0_i32_0 = arith.constant 0 : i32
    %c0_i32_1 = arith.constant 0 : i32
    return %c0_i32, %c0_i32_0 : i32, i32
  }
  func.func @transform_3(%arg0: i32) -> (i32, i32) {
    %c0_i32 = arith.constant 0 : i32
    %c0_i32_0 = arith.constant 0 : i32
    return %c0_i32, %arg0 : i32, i32
  }
}

</mosaic_0001>

<llo_original>
// kernel: forward.1
$region0: #{forward.1}
  #allocation0 [shape = 'u32[]', space=smem, size = 0x4, offset = 0x4, fixed_abs, tag = 'smem constant byte address 0x4 - core index']
  #allocation1 [shape = 'u32[144,128]{1,0:T(1,128)}', space=vmem, size = 0x12000, scoped, tag = 'internal scratch']
  %s0 = inlined_call_operand.vmem [shape: f32[16,512], index: 0, kind: input, shape index: {}]
  %s1 = inlined_call_operand.vmem [shape: f32[32,32], index: 1, kind: input, shape index: {}]
  %s2 = inlined_call_operand.vmem [shape: f32[4,16], index: 2, kind: input, shape index: {}]
  %s3 = inlined_call_operand.vmem [shape: f32[4,512], index: 3, kind: output, shape index: {}]
  %s4 = sld [smem:[#allocation0]]
  $region22: #{forward.1} parent=0
    _
  %s6 = ssub.s32 1, %s4
  %s7 = scalar_select 0, %s6, %s4
  // Predicated region
  $region2: #{forward.1} parent=0 // pred_check
    _
  $region3: #{forward.1} parent=0 // pred_check_branch
    %9 = sbr.rel (0) target = $region5
  $region4: #{forward.1} parent=0 // pred_region
    _
  $region5: #{forward.1} parent=0 // pred_fallthru
    _
  // Predicated region
  $region6: #{forward.1} parent=0 // pred_check
    _
  $region7: #{forward.1} parent=0 // pred_check_branch
    %11 = sbr.rel (0) target = $region9
  $region8: #{forward.1} parent=0 // pred_region
    _
  $region9: #{forward.1} parent=0 // pred_fallthru
    _
  // Predicated region
  $region10: #{forward.1} parent=0 // pred_check
    _
  $region11: #{forward.1} parent=0 // pred_check_branch
    %13 = sbr.rel (0) target = $region13
  $region12: #{forward.1} parent=0 // pred_region
    _
  $region13: #{forward.1} parent=0 // pred_fallthru
    _
  %v14 = vld [vmem:[%s1] sm:$0xff]
  %v15 = vld [vmem:[%s1 + $0x8] sm:$0xff]
  %v16 = vld [vmem:[%s1 + $0x10] sm:$0xff]
  %v17 = vld [vmem:[%s1 + $0x18] sm:$0xff]
  %v18 = vld [vmem:[%s2] sm:$0xf]
  %v19 = vlaneseq
  %v20 = vshrl.u32 %v19, 7
  %v21 = vadd.s32 %v20, 8
  %v22 = vld [vmem:[%s0] sm:$0xff]
  %v23 = vld [vmem:[%s0 + $0x8] sm:$0xff]
  %v24 = vld [vmem:[%s0 + $0x10] sm:$0xff]
  %v25 = vld [vmem:[%s0 + $0x18] sm:$0xff]
  %v26 = vld [vmem:[%s0 + $0x20] sm:$0xff]
  %v27 = vld [vmem:[%s0 + $0x28] sm:$0xff]
  %v28 = vld [vmem:[%s0 + $0x30] sm:$0xff]
  %v29 = vld [vmem:[%s0 + $0x38] sm:$0xff]
  %v30 = vmul.f32 %v22, 0.5
  %v31 = vmul.f32 %v23, 0.5
  %v32 = vmul.f32 %v24, 0.5
  %v33 = vmul.f32 %v25, 0.5
  %v34 = vmul.f32 %v26, 0.5
  %v35 = vmul.f32 %v27, 0.5
  %v36 = vmul.f32 %v28, 0.5
  %v37 = vmul.f32 %v29, 0.5
  %v38 = vand.u32 2147483647, %v30
  %vm39 = vcmp.le.f32.partialorder %v38, 0.7853982
  %vm40 = vcmp.lt.s32.totalorder %v30, 0
  %v41 = vand.u32 %v30, 2139095040
  %v42 = vshrl.u32 %v41, 23
  %v43 = vsub.s32 %v42, 127
  %v44 = vand.u32 2147483647, %v30
  %v45 = vand.u32 %v44, 8388607
  %v46 = vor.u32 %v45, 8388608
  %v47 = vsub.s32 0, %v46
  %v48 = vadd.s32 %v43, 1
  %vm49 = vcmp.gt.s32.totalorder %v48, 0
  %v50 = vsel %vm49, %v48, 0
  %v51 = vshrl.u32 %v50, 5
  %v52 = vand.u32 %v50, 31
  %v53 = vsub.s32 32, %v52
  %v54 = vshrl.u32 683565275, %v53
  %v55 = vshll.u32 683565275, %v52
  %v56 = vshrl.u32 2475754826, %v53
  %v57 = vor.u32 %v55, %v56
  %v58 = vshll.u32 2475754826, %v52
  %v59 = vshrl.u32 2131351028, %v53
  %v60 = vor.u32 %v58, %v59
  %v61 = vshll.u32 2131351028, %v52
  %v62 = vshrl.u32 2102212464, %v53
  %v63 = vor.u32 %v61, %v62
  %v64 = vshll.u32 2102212464, %v52
  %v65 = vshrl.u32 920167782, %v53
  %v66 = vor.u32 %v64, %v65
  %v67 = vshll.u32 920167782, %v52
  %v68 = vshrl.u32 1326507024, %v53
  %v69 = vor.u32 %v67, %v68
  %vm70 = vcmp.lt.s32.totalorder %v51, 1
  %vm71 = vcmp.lt.s32.totalorder %v51, 2
  %vm72 = vcmp.lt.s32.totalorder %v51, 3
  %vm73 = vcmp.lt.s32.totalorder %v51, 4
  %v74 = vsel %vm70, %v54, %v57
  %v75 = vsel %vm73, %v63, 2102212464
  %v76 = vsel %vm72, %v60, %v75
  %v77 = vsel %vm71, %v74, %v76
  %v78 = vsel %vm70, %v57, %v60
  %v79 = vsel %vm73, %v66, 920167782
  %v80 = vsel %vm72, %v63, %v79
  %v81 = vsel %vm71, %v78, %v80
  %v82 = vsel %vm70, %v60, %v63
  %v83 = vsel %vm73, %v69, 1326507024
  %v84 = vsel %vm72, %v66, %v83
  %v85 = vsel %vm71, %v82, %v84
  %v86 = vshll.u32 %v46, 8
  %v87 = vmul.u32.u64.compose %v86, %v85
  %v88 = vextract.low.u32 %v87
  %v89 = vextract.high.u32 %v87
  %v90 = vmul.u32.u64.compose %v86, %v81
  %v91 = vextract.low.u32 %v90
  %v92 = vextract.high.u32 %v90
  %v93 = vmul.u32 %v86, %v77
  %v94 = vadd.s32 %v89, %v91
  %vm95 = vc.u32 %v89, %v91
  %v96 = vadd.s32 %v92, 1
  %v97 = vsel %vm95, %v96, %v92
  %v98 = vadd.s32 %v93, %v97
  %v99 = vadd.s32 %v98, 536870912
  %v100 = vshrl.u32 %v99, 30
  %v101 = vshll.u32 %v100, 30
  %v102 = vsub.s32 %v98, %v101
  %vm103 = vcmp.lt.s32.totalorder %v102, 0
  %v104 = vsub.s32 0, %v102
  %v105 = vsel %vm103, %v104, %v102
  %v106 = vclz %v105
  %v107 = vsub.s32 %v106, 2
  %vm108 = vcmp.gt.s32.totalorder 0, %v107
  %v109 = vsel %vm108, 0, %v107
  %v110 = vsub.s32 32, %v109
  %v111 = vshll.u32 %v102, %v109
  %v112 = vshrl.u32 %v94, %v110
  %v113 = vor.u32 %v111, %v112
  %v114 = vsub.s32 4294967266, %v109
  %v115 = vadd.s32 %v114, 127
  %v116 = vshll.u32 %v115, 23
  %v117 = vor.u32 4788187, %v116
  %v118 = vand.u32 2147483647, %v117
  %v120 = vcvt.s32.f32 %v113
  %v121 = vmul.f32 %v120, %v118
  %v122 = vxor.u32 %v121, 2147483648
  %v123 = vsel %vm40, %v122, %v121
  %v124 = vsub.s32 4, %v100
  %v125 = vsel %vm40, %v124, %v100
  %v126 = vsel %vm39, %v30, %v123
  %v127 = vsel %vm39, 0, %v125
  %v128 = vcosq.f32.pop %v126
  %v129 = vsinq.f32.pop %v126
  %vm130 = vweird.f32 %v30
  %v131 = vand.u32 %v127, 3
  %vm132 = vcmp.lt.s32.totalorder %v131, 2
  %vm133 = vcmp.eq.s32.totalorder %v131, 0
  %v134 = vxor.u32 %v129, 2147483648
  %v135 = vsel %vm133, %v128, %v134
  %vm136 = vcmp.eq.s32.totalorder %v131, 2
  %v137 = vxor.u32 %v128, 2147483648
  %v138 = vsel %vm136, %v137, %v129
  %v139 = vsel %vm132, %v135, %v138
  %v140 = vsel %vm130, nan, %v139
  %v141 = vand.u32 2147483647, %v31
  %vm142 = vcmp.le.f32.partialorder %v141, 0.7853982
  %vm143 = vcmp.lt.s32.totalorder %v31, 0
  %v144 = vand.u32 %v31, 2139095040
  %v145 = vshrl.u32 %v144, 23
  %v146 = vsub.s32 %v145, 127
  %v147 = vand.u32 2147483647, %v31
  %v148 = vand.u32 %v147, 8388607
  %v149 = vor.u32 %v148, 8388608
  %v150 = vsub.s32 0, %v149
  %v151 = vadd.s32 %v146, 1
  %vm152 = vcmp.gt.s32.totalorder %v151, 0
  %v153 = vsel %vm152, %v151, 0
  %v154 = vshrl.u32 %v153, 5
  %v155 = vand.u32 %v153, 31
  %v156 = vsub.s32 32, %v155
  %v157 = vshrl.u32 683565275, %v156
  %v158 = vshll.u32 683565275, %v155
  %v159 = vshrl.u32 2475754826, %v156
  %v160 = vor.u32 %v158, %v159
  %v161 = vshll.u32 2475754826, %v155
  %v162 = vshrl.u32 2131351028, %v156
  %v163 = vor.u32 %v161, %v162
  %v164 = vshll.u32 2131351028, %v155
  %v165 = vshrl.u32 2102212464, %v156
  %v166 = vor.u32 %v164, %v165
  %v167 = vshll.u32 2102212464, %v155
  %v168 = vshrl.u32 920167782, %v156
  %v169 = vor.u32 %v167, %v168
  %v170 = vshll.u32 920167782, %v155
  %v171 = vshrl.u32 1326507024, %v156
  %v172 = vor.u32 %v170, %v171
  %vm173 = vcmp.lt.s32.totalorder %v154, 1
  %vm174 = vcmp.lt.s32.totalorder %v154, 2
  %vm175 = vcmp.lt.s32.totalorder %v154, 3
  %vm176 = vcmp.lt.s32.totalorder %v154, 4
  %v177 = vsel %vm173, %v157, %v160
  %v178 = vsel %vm176, %v166, 2102212464
  %v179 = vsel %vm175, %v163, %v178
  %v180 = vsel %vm174, %v177, %v179
  %v181 = vsel %vm173, %v160, %v163
  %v182 = vsel %vm176, %v169, 920167782
  %v183 = vsel %vm175, %v166, %v182
  %v184 = vsel %vm174, %v181, %v183
  %v185 = vsel %vm173, %v163, %v166
  %v186 = vsel %vm176, %v172, 1326507024
  %v187 = vsel %vm175, %v169, %v186
  %v188 = vsel %vm174, %v185, %v187
  %v189 = vshll.u32 %v149, 8
  %v190 = vmul.u32.u64.compose %v189, %v188
  %v191 = vextract.low.u32 %v190
  %v192 = vextract.high.u32 %v190
  %v193 = vmul.u32.u64.compose %v189, %v184
  %v194 = vextract.low.u32 %v193
  %v195 = vextract.high.u32 %v193
  %v196 = vmul.u32 %v189, %v180
  %v197 = vadd.s32 %v192, %v194
  %vm198 = vc.u32 %v192, %v194
  %v199 = vadd.s32 %v195, 1
  %v200 = vsel %vm198, %v199, %v195
  %v201 = vadd.s32 %v196, %v200
  %v202 = vadd.s32 %v201, 536870912
  %v203 = vshrl.u32 %v202, 30
  %v204 = vshll.u32 %v203, 30
  %v205 = vsub.s32 %v201, %v204
  %vm206 = vcmp.lt.s32.totalorder %v205, 0
  %v207 = vsub.s32 0, %v205
  %v208 = vsel %vm206, %v207, %v205
  %v209 = vclz %v208
  %v210 = vsub.s32 %v209, 2
  %vm211 = vcmp.gt.s32.totalorder 0, %v210
  %v212 = vsel %vm211, 0, %v210
  %v213 = vsub.s32 32, %v212
  %v214 = vshll.u32 %v205, %v212
  %v215 = vshrl.u32 %v197, %v213
  %v216 = vor.u32 %v214, %v215
  %v217 = vsub.s32 4294967266, %v212
  %v218 = vadd.s32 %v217, 127
  %v219 = vshll.u32 %v218, 23
  %v220 = vor.u32 4788187, %v219
  %v221 = vand.u32 2147483647, %v220
  %v223 = vcvt.s32.f32 %v216
  %v224 = vmul.f32 %v223, %v221
  %v225 = vxor.u32 %v224, 2147483648
  %v226 = vsel %vm143, %v225, %v224
  %v227 = vsub.s32 4, %v203
  %v228 = vsel %vm143, %v227, %v203
  %v229 = vsel %vm142, %v31, %v226
  %v230 = vsel %vm142, 0, %v228
  %v231 = vcosq.f32.pop %v229
  %v232 = vsinq.f32.pop %v229
  %vm233 = vweird.f32 %v31
  %v234 = vand.u32 %v230, 3
  %vm235 = vcmp.lt.s32.totalorder %v234, 2
  %vm236 = vcmp.eq.s32.totalorder %v234, 0
  %v237 = vxor.u32 %v232, 2147483648
  %v238 = vsel %vm236, %v231, %v237
  %vm239 = vcmp.eq.s32.totalorder %v234, 2
  %v240 = vxor.u32 %v231, 2147483648
  %v241 = vsel %vm239, %v240, %v232
  %v242 = vsel %vm235, %v238, %v241
  %v243 = vsel %vm233, nan, %v242
  %v244 = vand.u32 2147483647, %v32
  %vm245 = vcmp.le.f32.partialorder %v244, 0.7853982
  %vm246 = vcmp.lt.s32.totalorder %v32, 0
  %v247 = vand.u32 %v32, 2139095040
  %v248 = vshrl.u32 %v247, 23
  %v249 = vsub.s32 %v248, 127
  %v250 = vand.u32 2147483647, %v32
  %v251 = vand.u32 %v250, 8388607
  %v252 = vor.u32 %v251, 8388608
  %v253 = vsub.s32 0, %v252
  %v254 = vadd.s32 %v249, 1
  %vm255 = vcmp.gt.s32.totalorder %v254, 0
  %v256 = vsel %vm255, %v254, 0
  %v257 = vshrl.u32 %v256, 5
  %v258 = vand.u32 %v256, 31
  %v259 = vsub.s32 32, %v258
  %v260 = vshrl.u32 683565275, %v259
  %v261 = vshll.u32 683565275, %v258
  %v262 = vshrl.u32 2475754826, %v259
  %v263 = vor.u32 %v261, %v262
  %v264 = vshll.u32 2475754826, %v258
  %v265 = vshrl.u32 2131351028, %v259
  %v266 = vor.u32 %v264, %v265
  %v267 = vshll.u32 2131351028, %v258
  %v268 = vshrl.u32 2102212464, %v259
  %v269 = vor.u32 %v267, %v268
  %v270 = vshll.u32 2102212464, %v258
  %v271 = vshrl.u32 920167782, %v259
  %v272 = vor.u32 %v270, %v271
  %v273 = vshll.u32 920167782, %v258
  %v274 = vshrl.u32 1326507024, %v259
  %v275 = vor.u32 %v273, %v274
  %vm276 = vcmp.lt.s32.totalorder %v257, 1
  %vm277 = vcmp.lt.s32.totalorder %v257, 2
  %vm278 = vcmp.lt.s32.totalorder %v257, 3
  %vm279 = vcmp.lt.s32.totalorder %v257, 4
  %v280 = vsel %vm276, %v260, %v263
  %v281 = vsel %vm279, %v269, 2102212464
  %v282 = vsel %vm278, %v266, %v281
  %v283 = vsel %vm277, %v280, %v282
  %v284 = vsel %vm276, %v263, %v266
  %v285 = vsel %vm279, %v272, 920167782
  %v286 = vsel %vm278, %v269, %v285
  %v287 = vsel %vm277, %v284, %v286
  %v288 = vsel %vm276, %v266, %v269
  %v289 = vsel %vm279, %v275, 1326507024
  %v290 = vsel %vm278, %v272, %v289
  %v291 = vsel %vm277, %v288, %v290
  %v292 = vshll.u32 %v252, 8
  %v293 = vmul.u32.u64.compose %v292, %v291
  %v294 = vextract.low.u32 %v293
  %v295 = vextract.high.u32 %v293
  %v296 = vmul.u32.u64.compose %v292, %v287
  %v297 = vextract.low.u32 %v296
  %v298 = vextract.high.u32 %v296
  %v299 = vmul.u32 %v292, %v283
  %v300 = vadd.s32 %v295, %v297
  %vm301 = vc.u32 %v295, %v297
  %v302 = vadd.s32 %v298, 1
  %v303 = vsel %vm301, %v302, %v298
  %v304 = vadd.s32 %v299, %v303
  %v305 = vadd.s32 %v304, 536870912
  %v306 = vshrl.u32 %v305, 30
  %v307 = vshll.u32 %v306, 30
  %v308 = vsub.s32 %v304, %v307
  %vm309 = vcmp.lt.s32.totalorder %v308, 0
  %v310 = vsub.s32 0, %v308
  %v311 = vsel %vm309, %v310, %v308
  %v312 = vclz %v311
  %v313 = vsub.s32 %v312, 2
  %vm314 = vcmp.gt.s32.totalorder 0, %v313
  %v315 = vsel %vm314, 0, %v313
  %v316 = vsub.s32 32, %v315
  %v317 = vshll.u32 %v308, %v315
  %v318 = vshrl.u32 %v300, %v316
  %v319 = vor.u32 %v317, %v318
  %v320 = vsub.s32 4294967266, %v315
  %v321 = vadd.s32 %v320, 127
  %v322 = vshll.u32 %v321, 23
  %v323 = vor.u32 4788187, %v322
  %v324 = vand.u32 2147483647, %v323
  %v326 = vcvt.s32.f32 %v319
  %v327 = vmul.f32 %v326, %v324
  %v328 = vxor.u32 %v327, 2147483648
  %v329 = vsel %vm246, %v328, %v327
  %v330 = vsub.s32 4, %v306
  %v331 = vsel %vm246, %v330, %v306
  %v332 = vsel %vm245, %v32, %v329
  %v333 = vsel %vm245, 0, %v331
  %v334 = vcosq.f32.pop %v332
  %v335 = vsinq.f32.pop %v332
  %vm336 = vweird.f32 %v32
  %v337 = vand.u32 %v333, 3
  %vm338 = vcmp.lt.s32.totalorder %v337, 2
  %vm339 = vcmp.eq.s32.totalorder %v337, 0
  %v340 = vxor.u32 %v335, 2147483648
  %v341 = vsel %vm339, %v334, %v340
  %vm342 = vcmp.eq.s32.totalorder %v337, 2
  %v343 = vxor.u32 %v334, 2147483648
  %v344 = vsel %vm342, %v343, %v335
  %v345 = vsel %vm338, %v341, %v344
  %v346 = vsel %vm336, nan, %v345
  %v347 = vand.u32 2147483647, %v33
  %vm348 = vcmp.le.f32.partialorder %v347, 0.7853982
  %vm349 = vcmp.lt.s32.totalorder %v33, 0
  %v350 = vand.u32 %v33, 2139095040
  %v351 = vshrl.u32 %v350, 23
  %v352 = vsub.s32 %v351, 127
  %v353 = vand.u32 2147483647, %v33
  %v354 = vand.u32 %v353, 8388607
  %v355 = vor.u32 %v354, 8388608
  %v356 = vsub.s32 0, %v355
  %v357 = vadd.s32 %v352, 1
  %vm358 = vcmp.gt.s32.totalorder %v357, 0
  %v359 = vsel %vm358, %v357, 0
  %v360 = vshrl.u32 %v359, 5
  %v361 = vand.u32 %v359, 31
  %v362 = vsub.s32 32, %v361
  %v363 = vshrl.u32 683565275, %v362
  %v364 = vshll.u32 683565275, %v361
  %v365 = vshrl.u32 2475754826, %v362
  %v366 = vor.u32 %v364, %v365
  %v367 = vshll.u32 2475754826, %v361
  %v368 = vshrl.u32 2131351028, %v362
  %v369 = vor.u32 %v367, %v368
  %v370 = vshll.u32 2131351028, %v361
  %v371 = vshrl.u32 2102212464, %v362
  %v372 = vor.u32 %v370, %v371
  %v373 = vshll.u32 2102212464, %v361
  %v374 = vshrl.u32 920167782, %v362
  %v375 = vor.u32 %v373, %v374
  %v376 = vshll.u32 920167782, %v361
  %v377 = vshrl.u32 1326507024, %v362
  %v378 = vor.u32 %v376, %v377
  %vm379 = vcmp.lt.s32.totalorder %v360, 1
  %vm380 = vcmp.lt.s32.totalorder %v360, 2
  %vm381 = vcmp.lt.s32.totalorder %v360, 3
  %vm382 = vcmp.lt.s32.totalorder %v360, 4
  %v383 = vsel %vm379, %v363, %v366
  %v384 = vsel %vm382, %v372, 2102212464
  %v385 = vsel %vm381, %v369, %v384
  %v386 = vsel %vm380, %v383, %v385
  %v387 = vsel %vm379, %v366, %v369
  %v388 = vsel %vm382, %v375, 920167782
  %v389 = vsel %vm381, %v372, %v388
  %v390 = vsel %vm380, %v387, %v389
  %v391 = vsel %vm379, %v369, %v372
  %v392 = vsel %vm382, %v378, 1326507024
  %v393 = vsel %vm381, %v375, %v392
  %v394 = vsel %vm380, %v391, %v393
  %v395 = vshll.u32 %v355, 8
  %v396 = vmul.u32.u64.compose %v395, %v394
  %v397 = vextract.low.u32 %v396
  %v398 = vextract.high.u32 %v396
  %v399 = vmul.u32.u64.compose %v395, %v390
  %v400 = vextract.low.u32 %v399
  %v401 = vextract.high.u32 %v399
  %v402 = vmul.u32 %v395, %v386
  %v403 = vadd.s32 %v398, %v400
  %vm404 = vc.u32 %v398, %v400
  %v405 = vadd.s32 %v401, 1
  %v406 = vsel %vm404, %v405, %v401
  %v407 = vadd.s32 %v402, %v406
  %v408 = vadd.s32 %v407, 536870912
  %v409 = vshrl.u32 %v408, 30
  %v410 = vshll.u32 %v409, 30
  %v411 = vsub.s32 %v407, %v410
  %vm412 = vcmp.lt.s32.totalorder %v411, 0
  %v413 = vsub.s32 0, %v411
  %v414 = vsel %vm412, %v413, %v411
  %v415 = vclz %v414
  %v416 = vsub.s32 %v415, 2
  %vm417 = vcmp.gt.s32.totalorder 0, %v416
  %v418 = vsel %vm417, 0, %v416
  %v419 = vsub.s32 32, %v418
  %v420 = vshll.u32 %v411, %v418
  %v421 = vshrl.u32 %v403, %v419
  %v422 = vor.u32 %v420, %v421
  %v423 = vsub.s32 4294967266, %v418
  %v424 = vadd.s32 %v423, 127
  %v425 = vshll.u32 %v424, 23
  %v426 = vor.u32 4788187, %v425
  %v427 = vand.u32 2147483647, %v426
  %v429 = vcvt.s32.f32 %v422
  %v430 = vmul.f32 %v429, %v427
  %v431 = vxor.u32 %v430, 2147483648
  %v432 = vsel %vm349, %v431, %v430
  %v433 = vsub.s32 4, %v409
  %v434 = vsel %vm349, %v433, %v409
  %v435 = vsel %vm348, %v33, %v432
  %v436 = vsel %vm348, 0, %v434
  %v437 = vcosq.f32.pop %v435
  %v438 = vsinq.f32.pop %v435
  %vm439 = vweird.f32 %v33
  %v440 = vand.u32 %v436, 3
  %vm441 = vcmp.lt.s32.totalorder %v440, 2
  %vm442 = vcmp.eq.s32.totalorder %v440, 0
  %v443 = vxor.u32 %v438, 2147483648
  %v444 = vsel %vm442, %v437, %v443
  %vm445 = vcmp.eq.s32.totalorder %v440, 2
  %v446 = vxor.u32 %v437, 2147483648
  %v447 = vsel %vm445, %v446, %v438
  %v448 = vsel %vm441, %v444, %v447
  %v449 = vsel %vm439, nan, %v448
  %v450 = vand.u32 2147483647, %v34
  %vm451 = vcmp.le.f32.partialorder %v450, 0.7853982
  %vm452 = vcmp.lt.s32.totalorder %v34, 0
  %v453 = vand.u32 %v34, 2139095040
  %v454 = vshrl.u32 %v453, 23
  %v455 = vsub.s32 %v454, 127
  %v456 = vand.u32 2147483647, %v34
  %v457 = vand.u32 %v456, 8388607
  %v458 = vor.u32 %v457, 8388608
  %v459 = vsub.s32 0, %v458
  %v460 = vadd.s32 %v455, 1
  %vm461 = vcmp.gt.s32.totalorder %v460, 0
  %v462 = vsel %vm461, %v460, 0
  %v463 = vshrl.u32 %v462, 5
  %v464 = vand.u32 %v462, 31
  %v465 = vsub.s32 32, %v464
  %v466 = vshrl.u32 683565275, %v465
  %v467 = vshll.u32 683565275, %v464
  %v468 = vshrl.u32 2475754826, %v465
  %v469 = vor.u32 %v467, %v468
  %v470 = vshll.u32 2475754826, %v464
  %v471 = vshrl.u32 2131351028, %v465
  %v472 = vor.u32 %v470, %v471
  %v473 = vshll.u32 2131351028, %v464
  %v474 = vshrl.u32 2102212464, %v465
  %v475 = vor.u32 %v473, %v474
  %v476 = vshll.u32 2102212464, %v464
  %v477 = vshrl.u32 920167782, %v465
  %v478 = vor.u32 %v476, %v477
  %v479 = vshll.u32 920167782, %v464
  %v480 = vshrl.u32 1326507024, %v465
  %v481 = vor.u32 %v479, %v480
  %vm482 = vcmp.lt.s32.totalorder %v463, 1
  %vm483 = vcmp.lt.s32.totalorder %v463, 2
  %vm484 = vcmp.lt.s32.totalorder %v463, 3
  %vm485 = vcmp.lt.s32.totalorder %v463, 4
  %v486 = vsel %vm482, %v466, %v469
  %v487 = vsel %vm485, %v475, 2102212464
  %v488 = vsel %vm484, %v472, %v487
  %v489 = vsel %vm483, %v486, %v488
  %v490 = vsel %vm482, %v469, %v472
  %v491 = vsel %vm485, %v478, 920167782
  %v492 = vsel %vm484, %v475, %v491
  %v493 = vsel %vm483, %v490, %v492
  %v494 = vsel %vm482, %v472, %v475
  %v495 = vsel %vm485, %v481, 1326507024
  %v496 = vsel %vm484, %v478, %v495
  %v497 = vsel %vm483, %v494, %v496
  %v498 = vshll.u32 %v458, 8
  %v499 = vmul.u32.u64.compose %v498, %v497
  %v500 = vextract.low.u32 %v499
  %v501 = vextract.high.u32 %v499
  %v502 = vmul.u32.u64.compose %v498, %v493
  %v503 = vextract.low.u32 %v502
  %v504 = vextract.high.u32 %v502
  %v505 = vmul.u32 %v498, %v489
  %v506 = vadd.s32 %v501, %v503
  %vm507 = vc.u32 %v501, %v503
  %v508 = vadd.s32 %v504, 1
  %v509 = vsel %vm507, %v508, %v504
  %v510 = vadd.s32 %v505, %v509
  %v511 = vadd.s32 %v510, 536870912
  %v512 = vshrl.u32 %v511, 30
  %v513 = vshll.u32 %v512, 30
  %v514 = vsub.s32 %v510, %v513
  %vm515 = vcmp.lt.s32.totalorder %v514, 0
  %v516 = vsub.s32 0, %v514
  %v517 = vsel %vm515, %v516, %v514
  %v518 = vclz %v517
  %v519 = vsub.s32 %v518, 2
  %vm520 = vcmp.gt.s32.totalorder 0, %v519
  %v521 = vsel %vm520, 0, %v519
  %v522 = vsub.s32 32, %v521
  %v523 = vshll.u32 %v514, %v521
  %v524 = vshrl.u32 %v506, %v522
  %v525 = vor.u32 %v523, %v524
  %v526 = vsub.s32 4294967266, %v521
  %v527 = vadd.s32 %v526, 127
  %v528 = vshll.u32 %v527, 23
  %v529 = vor.u32 4788187, %v528
  %v530 = vand.u32 2147483647, %v529
  %v532 = vcvt.s32.f32 %v525
  %v533 = vmul.f32 %v532, %v530
  %v534 = vxor.u32 %v533, 2147483648
  %v535 = vsel %vm452, %v534, %v533
  %v536 = vsub.s32 4, %v512
  %v537 = vsel %vm452, %v536, %v512
  %v538 = vsel %vm451, %v34, %v535
  %v539 = vsel %vm451, 0, %v537
  %v540 = vcosq.f32.pop %v538
  %v541 = vsinq.f32.pop %v538
  %vm542 = vweird.f32 %v34
  %v543 = vand.u32 %v539, 3
  %vm544 = vcmp.lt.s32.totalorder %v543, 2
  %vm545 = vcmp.eq.s32.totalorder %v543, 0
  %v546 = vxor.u32 %v541, 2147483648
  %v547 = vsel %vm545, %v540, %v546
  %vm548 = vcmp.eq.s32.totalorder %v543, 2
  %v549 = vxor.u32 %v540, 2147483648
  %v550 = vsel %vm548, %v549, %v541
  %v551 = vsel %vm544, %v547, %v550
  %v552 = vsel %vm542, nan, %v551
  %v553 = vand.u32 2147483647, %v35
  %vm554 = vcmp.le.f32.partialorder %v553, 0.7853982
  %vm555 = vcmp.lt.s32.totalorder %v35, 0
  %v556 = vand.u32 %v35, 2139095040
  %v557 = vshrl.u32 %v556, 23
  %v558 = vsub.s32 %v557, 127
  %v559 = vand.u32 2147483647, %v35
  %v560 = vand.u32 %v559, 8388607
  %v561 = vor.u32 %v560, 8388608
  %v562 = vsub.s32 0, %v561
  %v563 = vadd.s32 %v558, 1
  %vm564 = vcmp.gt.s32.totalorder %v563, 0
  %v565 = vsel %vm564, %v563, 0
  %v566 = vshrl.u32 %v565, 5
  %v567 = vand.u32 %v565, 31
  %v568 = vsub.s32 32, %v567
  %v569 = vshrl.u32 683565275, %v568
  %v570 = vshll.u32 683565275, %v567
  %v571 = vshrl.u32 2475754826, %v568
  %v572 = vor.u32 %v570, %v571
  %v573 = vshll.u32 2475754826, %v567
  %v574 = vshrl.u32 2131351028, %v568
  %v575 = vor.u32 %v573, %v574
  %v576 = vshll.u32 2131351028, %v567
  %v577 = vshrl.u32 2102212464, %v568
  %v578 = vor.u32 %v576, %v577
  %v579 = vshll.u32 2102212464, %v567
  %v580 = vshrl.u32 920167782, %v568
  %v581 = vor.u32 %v579, %v580
  %v582 = vshll.u32 920167782, %v567
  %v583 = vshrl.u32 1326507024, %v568
  %v584 = vor.u32 %v582, %v583
  %vm585 = vcmp.lt.s32.totalorder %v566, 1
  %vm586 = vcmp.lt.s32.totalorder %v566, 2
  %vm587 = vcmp.lt.s32.totalorder %v566, 3
  %vm588 = vcmp.lt.s32.totalorder %v566, 4
  %v589 = vsel %vm585, %v569, %v572
  %v590 = vsel %vm588, %v578, 2102212464
  %v591 = vsel %vm587, %v575, %v590
  %v592 = vsel %vm586, %v589, %v591
  %v593 = vsel %vm585, %v572, %v575
  %v594 = vsel %vm588, %v581, 920167782
  %v595 = vsel %vm587, %v578, %v594
  %v596 = vsel %vm586, %v593, %v595
  %v597 = vsel %vm585, %v575, %v578
  %v598 = vsel %vm588, %v584, 1326507024
  %v599 = vsel %vm587, %v581, %v598
  %v600 = vsel %vm586, %v597, %v599
  %v601 = vshll.u32 %v561, 8
  %v602 = vmul.u32.u64.compose %v601, %v600
  %v603 = vextract.low.u32 %v602
  %v604 = vextract.high.u32 %v602
  %v605 = vmul.u32.u64.compose %v601, %v596
  %v606 = vextract.low.u32 %v605
  %v607 = vextract.high.u32 %v605
  %v608 = vmul.u32 %v601, %v592
  %v609 = vadd.s32 %v604, %v606
  %vm610 = vc.u32 %v604, %v606
  %v611 = vadd.s32 %v607, 1
  %v612 = vsel %vm610, %v611, %v607
  %v613 = vadd.s32 %v608, %v612
  %v614 = vadd.s32 %v613, 536870912
  %v615 = vshrl.u32 %v614, 30
  %v616 = vshll.u32 %v615, 30
  %v617 = vsub.s32 %v613, %v616
  %vm618 = vcmp.lt.s32.totalorder %v617, 0
  %v619 = vsub.s32 0, %v617
  %v620 = vsel %vm618, %v619, %v617
  %v621 = vclz %v620
  %v622 = vsub.s32 %v621, 2
  %vm623 = vcmp.gt.s32.totalorder 0, %v622
  %v624 = vsel %vm623, 0, %v622
  %v625 = vsub.s32 32, %v624
  %v626 = vshll.u32 %v617, %v624
  %v627 = vshrl.u32 %v609, %v625
  %v628 = vor.u32 %v626, %v627
  %v629 = vsub.s32 4294967266, %v624
  %v630 = vadd.s32 %v629, 127
  %v631 = vshll.u32 %v630, 23
  %v632 = vor.u32 4788187, %v631
  %v633 = vand.u32 2147483647, %v632
  %v635 = vcvt.s32.f32 %v628
  %v636 = vmul.f32 %v635, %v633
  %v637 = vxor.u32 %v636, 2147483648
  %v638 = vsel %vm555, %v637, %v636
  %v639 = vsub.s32 4, %v615
  %v640 = vsel %vm555, %v639, %v615
  %v641 = vsel %vm554, %v35, %v638
  %v642 = vsel %vm554, 0, %v640
  %v643 = vcosq.f32.pop %v641
  %v644 = vsinq.f32.pop %v641
  %vm645 = vweird.f32 %v35
  %v646 = vand.u32 %v642, 3
  %vm647 = vcmp.lt.s32.totalorder %v646, 2
  %vm648 = vcmp.eq.s32.totalorder %v646, 0
  %v649 = vxor.u32 %v644, 2147483648
  %v650 = vsel %vm648, %v643, %v649
  %vm651 = vcmp.eq.s32.totalorder %v646, 2
  %v652 = vxor.u32 %v643, 2147483648
  %v653 = vsel %vm651, %v652, %v644
  %v654 = vsel %vm647, %v650, %v653
  %v655 = vsel %vm645, nan, %v654
  %v656 = vand.u32 2147483647, %v36
  %vm657 = vcmp.le.f32.partialorder %v656, 0.7853982
  %vm658 = vcmp.lt.s32.totalorder %v36, 0
  %v659 = vand.u32 %v36, 2139095040
  %v660 = vshrl.u32 %v659, 23
  %v661 = vsub.s32 %v660, 127
  %v662 = vand.u32 2147483647, %v36
  %v663 = vand.u32 %v662, 8388607
  %v664 = vor.u32 %v663, 8388608
  %v665 = vsub.s32 0, %v664
  %v666 = vadd.s32 %v661, 1
  %vm667 = vcmp.gt.s32.totalorder %v666, 0
  %v668 = vsel %vm667, %v666, 0
  %v669 = vshrl.u32 %v668, 5
  %v670 = vand.u32 %v668, 31
  %v671 = vsub.s32 32, %v670
  %v672 = vshrl.u32 683565275, %v671
  %v673 = vshll.u32 683565275, %v670
  %v674 = vshrl.u32 2475754826, %v671
  %v675 = vor.u32 %v673, %v674
  %v676 = vshll.u32 2475754826, %v670
  %v677 = vshrl.u32 2131351028, %v671
  %v678 = vor.u32 %v676, %v677
  %v679 = vshll.u32 2131351028, %v670
  %v680 = vshrl.u32 2102212464, %v671
  %v681 = vor.u32 %v679, %v680
  %v682 = vshll.u32 2102212464, %v670
  %v683 = vshrl.u32 920167782, %v671
  %v684 = vor.u32 %v682, %v683
  %v685 = vshll.u32 920167782, %v670
  %v686 = vshrl.u32 1326507024, %v671
  %v687 = vor.u32 %v685, %v686
  %vm688 = vcmp.lt.s32.totalorder %v669, 1
  %vm689 = vcmp.lt.s32.totalorder %v669, 2
  %vm690 = vcmp.lt.s32.totalorder %v669, 3
  %vm691 = vcmp.lt.s32.totalorder %v669, 4
  %v692 = vsel %vm688, %v672, %v675
  %v693 = vsel %vm691, %v681, 2102212464
  %v694 = vsel %vm690, %v678, %v693
  %v695 = vsel %vm689, %v692, %v694
  %v696 = vsel %vm688, %v675, %v678
  %v697 = vsel %vm691, %v684, 920167782
  %v698 = vsel %vm690, %v681, %v697
  %v699 = vsel %vm689, %v696, %v698
  %v700 = vsel %vm688, %v678, %v681
  %v701 = vsel %vm691, %v687, 1326507024
  %v702 = vsel %vm690, %v684, %v701
  %v703 = vsel %vm689, %v700, %v702
  %v704 = vshll.u32 %v664, 8
  %v705 = vmul.u32.u64.compose %v704, %v703
  %v706 = vextract.low.u32 %v705
  %v707 = vextract.high.u32 %v705
  %v708 = vmul.u32.u64.compose %v704, %v699
  %v709 = vextract.low.u32 %v708
  %v710 = vextract.high.u32 %v708
  %v711 = vmul.u32 %v704, %v695
  %v712 = vadd.s32 %v707, %v709
  %vm713 = vc.u32 %v707, %v709
  %v714 = vadd.s32 %v710, 1
  %v715 = vsel %vm713, %v714, %v710
  %v716 = vadd.s32 %v711, %v715
  %v717 = vadd.s32 %v716, 536870912
  %v718 = vshrl.u32 %v717, 30
  %v719 = vshll.u32 %v718, 30
  %v720 = vsub.s32 %v716, %v719
  %vm721 = vcmp.lt.s32.totalorder %v720, 0
  %v722 = vsub.s32 0, %v720
  %v723 = vsel %vm721, %v722, %v720
  %v724 = vclz %v723
  %v725 = vsub.s32 %v724, 2
  %vm726 = vcmp.gt.s32.totalorder 0, %v725
  %v727 = vsel %vm726, 0, %v725
  %v728 = vsub.s32 32, %v727
  %v729 = vshll.u32 %v720, %v727
  %v730 = vshrl.u32 %v712, %v728
  %v731 = vor.u32 %v729, %v730
  %v732 = vsub.s32 4294967266, %v727
  %v733 = vadd.s32 %v732, 127
  %v734 = vshll.u32 %v733, 23
  %v735 = vor.u32 4788187, %v734
  %v736 = vand.u32 2147483647, %v735
  %v738 = vcvt.s32.f32 %v731
  %v739 = vmul.f32 %v738, %v736
  %v740 = vxor.u32 %v739, 2147483648
  %v741 = vsel %vm658, %v740, %v739
  %v742 = vsub.s32 4, %v718
  %v743 = vsel %vm658, %v742, %v718
  %v744 = vsel %vm657, %v36, %v741
  %v745 = vsel %vm657, 0, %v743
  %v746 = vcosq.f32.pop %v744
  %v747 = vsinq.f32.pop %v744
  %vm748 = vweird.f32 %v36
  %v749 = vand.u32 %v745, 3
  %vm750 = vcmp.lt.s32.totalorder %v749, 2
  %vm751 = vcmp.eq.s32.totalorder %v749, 0
  %v752 = vxor.u32 %v747, 2147483648
  %v753 = vsel %vm751, %v746, %v752
  %vm754 = vcmp.eq.s32.totalorder %v749, 2
  %v755 = vxor.u32 %v746, 2147483648
  %v756 = vsel %vm754, %v755, %v747
  %v757 = vsel %vm750, %v753, %v756
  %v758 = vsel %vm748, nan, %v757
  %v759 = vand.u32 2147483647, %v37
  %vm760 = vcmp.le.f32.partialorder %v759, 0.7853982
  %vm761 = vcmp.lt.s32.totalorder %v37, 0
  %v762 = vand.u32 %v37, 2139095040
  %v763 = vshrl.u32 %v762, 23
  %v764 = vsub.s32 %v763, 127
  %v765 = vand.u32 2147483647, %v37
  %v766 = vand.u32 %v765, 8388607
  %v767 = vor.u32 %v766, 8388608
  %v768 = vsub.s32 0, %v767
  %v769 = vadd.s32 %v764, 1
  %vm770 = vcmp.gt.s32.totalorder %v769, 0
  %v771 = vsel %vm770, %v769, 0
  %v772 = vshrl.u32 %v771, 5
  %v773 = vand.u32 %v771, 31
  %v774 = vsub.s32 32, %v773
  %v775 = vshrl.u32 683565275, %v774
  %v776 = vshll.u32 683565275, %v773
  %v777 = vshrl.u32 2475754826, %v774
  %v778 = vor.u32 %v776, %v777
  %v779 = vshll.u32 2475754826, %v773
  %v780 = vshrl.u32 2131351028, %v774
  %v781 = vor.u32 %v779, %v780
  %v782 = vshll.u32 2131351028, %v773
  %v783 = vshrl.u32 2102212464, %v774
  %v784 = vor.u32 %v782, %v783
  %v785 = vshll.u32 2102212464, %v773
  %v786 = vshrl.u32 920167782, %v774
  %v787 = vor.u32 %v785, %v786
  %v788 = vshll.u32 920167782, %v773
  %v789 = vshrl.u32 1326507024, %v774
  %v790 = vor.u32 %v788, %v789
  %vm791 = vcmp.lt.s32.totalorder %v772, 1
  %vm792 = vcmp.lt.s32.totalorder %v772, 2
  %vm793 = vcmp.lt.s32.totalorder %v772, 3
  %vm794 = vcmp.lt.s32.totalorder %v772, 4
  %v795 = vsel %vm791, %v775, %v778
  %v796 = vsel %vm794, %v784, 2102212464
  %v797 = vsel %vm793, %v781, %v796
  %v798 = vsel %vm792, %v795, %v797
  %v799 = vsel %vm791, %v778, %v781
  %v800 = vsel %vm794, %v787, 920167782
  %v801 = vsel %vm793, %v784, %v800
  %v802 = vsel %vm792, %v799, %v801
  %v803 = vsel %vm791, %v781, %v784
  %v804 = vsel %vm794, %v790, 1326507024
  %v805 = vsel %vm793, %v787, %v804
  %v806 = vsel %vm792, %v803, %v805
  %v807 = vshll.u32 %v767, 8
  %v808 = vmul.u32.u64.compose %v807, %v806
  %v809 = vextract.low.u32 %v808
  %v810 = vextract.high.u32 %v808
  %v811 = vmul.u32.u64.compose %v807, %v802
  %v812 = vextract.low.u32 %v811
  %v813 = vextract.high.u32 %v811
  %v814 = vmul.u32 %v807, %v798
  %v815 = vadd.s32 %v810, %v812
  %vm816 = vc.u32 %v810, %v812
  %v817 = vadd.s32 %v813, 1
  %v818 = vsel %vm816, %v817, %v813
  %v819 = vadd.s32 %v814, %v818
  %v820 = vadd.s32 %v819, 536870912
  %v821 = vshrl.u32 %v820, 30
  %v822 = vshll.u32 %v821, 30
  %v823 = vsub.s32 %v819, %v822
  %vm824 = vcmp.lt.s32.totalorder %v823, 0
  %v825 = vsub.s32 0, %v823
  %v826 = vsel %vm824, %v825, %v823
  %v827 = vclz %v826
  %v828 = vsub.s32 %v827, 2
  %vm829 = vcmp.gt.s32.totalorder 0, %v828
  %v830 = vsel %vm829, 0, %v828
  %v831 = vsub.s32 32, %v830
  %v832 = vshll.u32 %v823, %v830
  %v833 = vshrl.u32 %v815, %v831
  %v834 = vor.u32 %v832, %v833
  %v835 = vsub.s32 4294967266, %v830
  %v836 = vadd.s32 %v835, 127
  %v837 = vshll.u32 %v836, 23
  %v838 = vor.u32 4788187, %v837
  %v839 = vand.u32 2147483647, %v838
  %v841 = vcvt.s32.f32 %v834
  %v842 = vmul.f32 %v841, %v839
  %v843 = vxor.u32 %v842, 2147483648
  %v844 = vsel %vm761, %v843, %v842
  %v845 = vsub.s32 4, %v821
  %v846 = vsel %vm761, %v845, %v821
  %v847 = vsel %vm760, %v37, %v844
  %v848 = vsel %vm760, 0, %v846
  %v849 = vcosq.f32.pop %v847
  %v850 = vsinq.f32.pop %v847
  %vm851 = vweird.f32 %v37
  %v852 = vand.u32 %v848, 3
  %vm853 = vcmp.lt.s32.totalorder %v852, 2
  %vm854 = vcmp.eq.s32.totalorder %v852, 0
  %v855 = vxor.u32 %v850, 2147483648
  %v856 = vsel %vm854, %v849, %v855
  %vm857 = vcmp.eq.s32.totalorder %v852, 2
  %v858 = vxor.u32 %v849, 2147483648
  %v859 = vsel %vm857, %v858, %v850
  %v860 = vsel %vm853, %v856, %v859
  %v861 = vsel %vm851, nan, %v860
  %v862 = vand.u32 2147483647, %v30
  %vm863 = vcmp.le.f32.partialorder %v862, 0.7853982
  %vm864 = vcmp.lt.s32.totalorder %v30, 0
  %v865 = vand.u32 %v30, 2139095040
  %v866 = vshrl.u32 %v865, 23
  %v867 = vsub.s32 %v866, 127
  %v868 = vand.u32 2147483647, %v30
  %v869 = vand.u32 %v868, 8388607
  %v870 = vor.u32 %v869, 8388608
  %v871 = vsub.s32 0, %v870
  %v872 = vadd.s32 %v867, 1
  %vm873 = vcmp.gt.s32.totalorder %v872, 0
  %v874 = vsel %vm873, %v872, 0
  %v875 = vshrl.u32 %v874, 5
  %v876 = vand.u32 %v874, 31
  %v877 = vsub.s32 32, %v876
  %v878 = vshrl.u32 683565275, %v877
  %v879 = vshll.u32 683565275, %v876
  %v880 = vshrl.u32 2475754826, %v877
  %v881 = vor.u32 %v879, %v880
  %v882 = vshll.u32 2475754826, %v876
  %v883 = vshrl.u32 2131351028, %v877
  %v884 = vor.u32 %v882, %v883
  %v885 = vshll.u32 2131351028, %v876
  %v886 = vshrl.u32 2102212464, %v877
  %v887 = vor.u32 %v885, %v886
  %v888 = vshll.u32 2102212464, %v876
  %v889 = vshrl.u32 920167782, %v877
  %v890 = vor.u32 %v888, %v889
  %v891 = vshll.u32 920167782, %v876
  %v892 = vshrl.u32 1326507024, %v877
  %v893 = vor.u32 %v891, %v892
  %vm894 = vcmp.lt.s32.totalorder %v875, 1
  %vm895 = vcmp.lt.s32.totalorder %v875, 2
  %vm896 = vcmp.lt.s32.totalorder %v875, 3
  %vm897 = vcmp.lt.s32.totalorder %v875, 4
  %v898 = vsel %vm894, %v878, %v881
  %v899 = vsel %vm897, %v887, 2102212464
  %v900 = vsel %vm896, %v884, %v899
  %v901 = vsel %vm895, %v898, %v900
  %v902 = vsel %vm894, %v881, %v884
  %v903 = vsel %vm897, %v890, 920167782
  %v904 = vsel %vm896, %v887, %v903
  %v905 = vsel %vm895, %v902, %v904
  %v906 = vsel %vm894, %v884, %v887
  %v907 = vsel %vm897, %v893, 1326507024
  %v908 = vsel %vm896, %v890, %v907
  %v909 = vsel %vm895, %v906, %v908
  %v910 = vshll.u32 %v870, 8
  %v911 = vmul.u32.u64.compose %v910, %v909
  %v912 = vextract.low.u32 %v911
  %v913 = vextract.high.u32 %v911
  %v914 = vmul.u32.u64.compose %v910, %v905
  %v915 = vextract.low.u32 %v914
  %v916 = vextract.high.u32 %v914
  %v917 = vmul.u32 %v910, %v901
  %v918 = vadd.s32 %v913, %v915
  %vm919 = vc.u32 %v913, %v915
  %v920 = vadd.s32 %v916, 1
  %v921 = vsel %vm919, %v920, %v916
  %v922 = vadd.s32 %v917, %v921
  %v923 = vadd.s32 %v922, 536870912
  %v924 = vshrl.u32 %v923, 30
  %v925 = vshll.u32 %v924, 30
  %v926 = vsub.s32 %v922, %v925
  %vm927 = vcmp.lt.s32.totalorder %v926, 0
  %v928 = vsub.s32 0, %v926
  %v929 = vsel %vm927, %v928, %v926
  %v930 = vclz %v929
  %v931 = vsub.s32 %v930, 2
  %vm932 = vcmp.gt.s32.totalorder 0, %v931
  %v933 = vsel %vm932, 0, %v931
  %v934 = vsub.s32 32, %v933
  %v935 = vshll.u32 %v926, %v933
  %v936 = vshrl.u32 %v918, %v934
  %v937 = vor.u32 %v935, %v936
  %v938 = vsub.s32 4294967266, %v933
  %v939 = vadd.s32 %v938, 127
  %v940 = vshll.u32 %v939, 23
  %v941 = vor.u32 4788187, %v940
  %v942 = vand.u32 2147483647, %v941
  %v944 = vcvt.s32.f32 %v937
  %v945 = vmul.f32 %v944, %v942
  %v946 = vxor.u32 %v945, 2147483648
  %v947 = vsel %vm864, %v946, %v945
  %v948 = vsub.s32 4, %v924
  %v949 = vsel %vm864, %v948, %v924
  %v950 = vsel %vm863, %v30, %v947
  %v951 = vsel %vm863, 0, %v949
  %v952 = vcosq.f32.pop %v950
  %v953 = vsinq.f32.pop %v950
  %vm954 = vweird.f32 %v30
  %v955 = vadd.s32 %v951, 3
  %v956 = vand.u32 %v955, 3
  %vm957 = vcmp.lt.s32.totalorder %v956, 2
  %vm958 = vcmp.eq.s32.totalorder %v956, 0
  %v959 = vxor.u32 %v953, 2147483648
  %v960 = vsel %vm958, %v952, %v959
  %vm961 = vcmp.eq.s32.totalorder %v956, 2
  %v962 = vxor.u32 %v952, 2147483648
  %v963 = vsel %vm961, %v962, %v953
  %v964 = vsel %vm957, %v960, %v963
  %v965 = vsel %vm954, nan, %v964
  %v966 = vand.u32 2147483647, %v31
  %vm967 = vcmp.le.f32.partialorder %v966, 0.7853982
  %vm968 = vcmp.lt.s32.totalorder %v31, 0
  %v969 = vand.u32 %v31, 2139095040
  %v970 = vshrl.u32 %v969, 23
  %v971 = vsub.s32 %v970, 127
  %v972 = vand.u32 2147483647, %v31
  %v973 = vand.u32 %v972, 8388607
  %v974 = vor.u32 %v973, 8388608
  %v975 = vsub.s32 0, %v974
  %v976 = vadd.s32 %v971, 1
  %vm977 = vcmp.gt.s32.totalorder %v976, 0
  %v978 = vsel %vm977, %v976, 0
  %v979 = vshrl.u32 %v978, 5
  %v980 = vand.u32 %v978, 31
  %v981 = vsub.s32 32, %v980
  %v982 = vshrl.u32 683565275, %v981
  %v983 = vshll.u32 683565275, %v980
  %v984 = vshrl.u32 2475754826, %v981
  %v985 = vor.u32 %v983, %v984
  %v986 = vshll.u32 2475754826, %v980
  %v987 = vshrl.u32 2131351028, %v981
  %v988 = vor.u32 %v986, %v987
  %v989 = vshll.u32 2131351028, %v980
  %v990 = vshrl.u32 2102212464, %v981
  %v991 = vor.u32 %v989, %v990
  %v992 = vshll.u32 2102212464, %v980
  %v993 = vshrl.u32 920167782, %v981
  %v994 = vor.u32 %v992, %v993
  %v995 = vshll.u32 920167782, %v980
  %v996 = vshrl.u32 1326507024, %v981
  %v997 = vor.u32 %v995, %v996
  %vm998 = vcmp.lt.s32.totalorder %v979, 1
  %vm999 = vcmp.lt.s32.totalorder %v979, 2
  %vm1000 = vcmp.lt.s32.totalorder %v979, 3
  %vm1001 = vcmp.lt.s32.totalorder %v979, 4
  %v1002 = vsel %vm998, %v982, %v985
  %v1003 = vsel %vm1001, %v991, 2102212464
  %v1004 = vsel %vm1000, %v988, %v1003
  %v1005 = vsel %vm999, %v1002, %v1004
  %v1006 = vsel %vm998, %v985, %v988
  %v1007 = vsel %vm1001, %v994, 920167782
  %v1008 = vsel %vm1000, %v991, %v1007
  %v1009 = vsel %vm999, %v1006, %v1008
  %v1010 = vsel %vm998, %v988, %v991
  %v1011 = vsel %vm1001, %v997, 1326507024
  %v1012 = vsel %vm1000, %v994, %v1011
  %v1013 = vsel %vm999, %v1010, %v1012
  %v1014 = vshll.u32 %v974, 8
  %v1015 = vmul.u32.u64.compose %v1014, %v1013
  %v1016 = vextract.low.u32 %v1015
  %v1017 = vextract.high.u32 %v1015
  %v1018 = vmul.u32.u64.compose %v1014, %v1009
  %v1019 = vextract.low.u32 %v1018
  %v1020 = vextract.high.u32 %v1018
  %v1021 = vmul.u32 %v1014, %v1005
  %v1022 = vadd.s32 %v1017, %v1019
  %vm1023 = vc.u32 %v1017, %v1019
  %v1024 = vadd.s32 %v1020, 1
  %v1025 = vsel %vm1023, %v1024, %v1020
  %v1026 = vadd.s32 %v1021, %v1025
  %v1027 = vadd.s32 %v1026, 536870912
  %v1028 = vshrl.u32 %v1027, 30
  %v1029 = vshll.u32 %v1028, 30
  %v1030 = vsub.s32 %v1026, %v1029
  %vm1031 = vcmp.lt.s32.totalorder %v1030, 0
  %v1032 = vsub.s32 0, %v1030
  %v1033 = vsel %vm1031, %v1032, %v1030
  %v1034 = vclz %v1033
  %v1035 = vsub.s32 %v1034, 2
  %vm1036 = vcmp.gt.s32.totalorder 0, %v1035
  %v1037 = vsel %vm1036, 0, %v1035
  %v1038 = vsub.s32 32, %v1037
  %v1039 = vshll.u32 %v1030, %v1037
  %v1040 = vshrl.u32 %v1022, %v1038
  %v1041 = vor.u32 %v1039, %v1040
  %v1042 = vsub.s32 4294967266, %v1037
  %v1043 = vadd.s32 %v1042, 127
  %v1044 = vshll.u32 %v1043, 23
  %v1045 = vor.u32 4788187, %v1044
  %v1046 = vand.u32 2147483647, %v1045
  %v1048 = vcvt.s32.f32 %v1041
  %v1049 = vmul.f32 %v1048, %v1046
  %v1050 = vxor.u32 %v1049, 2147483648
  %v1051 = vsel %vm968, %v1050, %v1049
  %v1052 = vsub.s32 4, %v1028
  %v1053 = vsel %vm968, %v1052, %v1028
  %v1054 = vsel %vm967, %v31, %v1051
  %v1055 = vsel %vm967, 0, %v1053
  %v1056 = vcosq.f32.pop %v1054
  %v1057 = vsinq.f32.pop %v1054
  %vm1058 = vweird.f32 %v31
  %v1059 = vadd.s32 %v1055, 3
  %v1060 = vand.u32 %v1059, 3
  %vm1061 = vcmp.lt.s32.totalorder %v1060, 2
  %vm1062 = vcmp.eq.s32.totalorder %v1060, 0
  %v1063 = vxor.u32 %v1057, 2147483648
  %v1064 = vsel %vm1062, %v1056, %v1063
  %vm1065 = vcmp.eq.s32.totalorder %v1060, 2
  %v1066 = vxor.u32 %v1056, 2147483648
  %v1067 = vsel %vm1065, %v1066, %v1057
  %v1068 = vsel %vm1061, %v1064, %v1067
  %v1069 = vsel %vm1058, nan, %v1068
  %v1070 = vand.u32 2147483647, %v32
  %vm1071 = vcmp.le.f32.partialorder %v1070, 0.7853982
  %vm1072 = vcmp.lt.s32.totalorder %v32, 0
  %v1073 = vand.u32 %v32, 2139095040
  %v1074 = vshrl.u32 %v1073, 23
  %v1075 = vsub.s32 %v1074, 127
  %v1076 = vand.u32 2147483647, %v32
  %v1077 = vand.u32 %v1076, 8388607
  %v1078 = vor.u32 %v1077, 8388608
  %v1079 = vsub.s32 0, %v1078
  %v1080 = vadd.s32 %v1075, 1
  %vm1081 = vcmp.gt.s32.totalorder %v1080, 0
  %v1082 = vsel %vm1081, %v1080, 0
  %v1083 = vshrl.u32 %v1082, 5
  %v1084 = vand.u32 %v1082, 31
  %v1085 = vsub.s32 32, %v1084
  %v1086 = vshrl.u32 683565275, %v1085
  %v1087 = vshll.u32 683565275, %v1084
  %v1088 = vshrl.u32 2475754826, %v1085
  %v1089 = vor.u32 %v1087, %v1088
  %v1090 = vshll.u32 2475754826, %v1084
  %v1091 = vshrl.u32 2131351028, %v1085
  %v1092 = vor.u32 %v1090, %v1091
  %v1093 = vshll.u32 2131351028, %v1084
  %v1094 = vshrl.u32 2102212464, %v1085
  %v1095 = vor.u32 %v1093, %v1094
  %v1096 = vshll.u32 2102212464, %v1084
  %v1097 = vshrl.u32 920167782, %v1085
  %v1098 = vor.u32 %v1096, %v1097
  %v1099 = vshll.u32 920167782, %v1084
  %v1100 = vshrl.u32 1326507024, %v1085
  %v1101 = vor.u32 %v1099, %v1100
  %vm1102 = vcmp.lt.s32.totalorder %v1083, 1
  %vm1103 = vcmp.lt.s32.totalorder %v1083, 2
  %vm1104 = vcmp.lt.s32.totalorder %v1083, 3
  %vm1105 = vcmp.lt.s32.totalorder %v1083, 4
  %v1106 = vsel %vm1102, %v1086, %v1089
  %v1107 = vsel %vm1105, %v1095, 2102212464
  %v1108 = vsel %vm1104, %v1092, %v1107
  %v1109 = vsel %vm1103, %v1106, %v1108
  %v1110 = vsel %vm1102, %v1089, %v1092
  %v1111 = vsel %vm1105, %v1098, 920167782
  %v1112 = vsel %vm1104, %v1095, %v1111
  %v1113 = vsel %vm1103, %v1110, %v1112
  %v1114 = vsel %vm1102, %v1092, %v1095
  %v1115 = vsel %vm1105, %v1101, 1326507024
  %v1116 = vsel %vm1104, %v1098, %v1115
  %v1117 = vsel %vm1103, %v1114, %v1116
  %v1118 = vshll.u32 %v1078, 8
  %v1119 = vmul.u32.u64.compose %v1118, %v1117
  %v1120 = vextract.low.u32 %v1119
  %v1121 = vextract.high.u32 %v1119
  %v1122 = vmul.u32.u64.compose %v1118, %v1113
  %v1123 = vextract.low.u32 %v1122
  %v1124 = vextract.high.u32 %v1122
  %v1125 = vmul.u32 %v1118, %v1109
  %v1126 = vadd.s32 %v1121, %v1123
  %vm1127 = vc.u32 %v1121, %v1123
  %v1128 = vadd.s32 %v1124, 1
  %v1129 = vsel %vm1127, %v1128, %v1124
  %v1130 = vadd.s32 %v1125, %v1129
  %v1131 = vadd.s32 %v1130, 536870912
  %v1132 = vshrl.u32 %v1131, 30
  %v1133 = vshll.u32 %v1132, 30
  %v1134 = vsub.s32 %v1130, %v1133
  %vm1135 = vcmp.lt.s32.totalorder %v1134, 0
  %v1136 = vsub.s32 0, %v1134
  %v1137 = vsel %vm1135, %v1136, %v1134
  %v1138 = vclz %v1137
  %v1139 = vsub.s32 %v1138, 2
  %vm1140 = vcmp.gt.s32.totalorder 0, %v1139
  %v1141 = vsel %vm1140, 0, %v1139
  %v1142 = vsub.s32 32, %v1141
  %v1143 = vshll.u32 %v1134, %v1141
  %v1144 = vshrl.u32 %v1126, %v1142
  %v1145 = vor.u32 %v1143, %v1144
  %v1146 = vsub.s32 4294967266, %v1141
  %v1147 = vadd.s32 %v1146, 127
  %v1148 = vshll.u32 %v1147, 23
  %v1149 = vor.u32 4788187, %v1148
  %v1150 = vand.u32 2147483647, %v1149
  %v1152 = vcvt.s32.f32 %v1145
  %v1153 = vmul.f32 %v1152, %v1150
  %v1154 = vxor.u32 %v1153, 2147483648
  %v1155 = vsel %vm1072, %v1154, %v1153
  %v1156 = vsub.s32 4, %v1132
  %v1157 = vsel %vm1072, %v1156, %v1132
  %v1158 = vsel %vm1071, %v32, %v1155
  %v1159 = vsel %vm1071, 0, %v1157
  %v1160 = vcosq.f32.pop %v1158
  %v1161 = vsinq.f32.pop %v1158
  %vm1162 = vweird.f32 %v32
  %v1163 = vadd.s32 %v1159, 3
  %v1164 = vand.u32 %v1163, 3
  %vm1165 = vcmp.lt.s32.totalorder %v1164, 2
  %vm1166 = vcmp.eq.s32.totalorder %v1164, 0
  %v1167 = vxor.u32 %v1161, 2147483648
  %v1168 = vsel %vm1166, %v1160, %v1167
  %vm1169 = vcmp.eq.s32.totalorder %v1164, 2
  %v1170 = vxor.u32 %v1160, 2147483648
  %v1171 = vsel %vm1169, %v1170, %v1161
  %v1172 = vsel %vm1165, %v1168, %v1171
  %v1173 = vsel %vm1162, nan, %v1172
  %v1174 = vand.u32 2147483647, %v33
  %vm1175 = vcmp.le.f32.partialorder %v1174, 0.7853982
  %vm1176 = vcmp.lt.s32.totalorder %v33, 0
  %v1177 = vand.u32 %v33, 2139095040
  %v1178 = vshrl.u32 %v1177, 23
  %v1179 = vsub.s32 %v1178, 127
  %v1180 = vand.u32 2147483647, %v33
  %v1181 = vand.u32 %v1180, 8388607
  %v1182 = vor.u32 %v1181, 8388608
  %v1183 = vsub.s32 0, %v1182
  %v1184 = vadd.s32 %v1179, 1
  %vm1185 = vcmp.gt.s32.totalorder %v1184, 0
  %v1186 = vsel %vm1185, %v1184, 0
  %v1187 = vshrl.u32 %v1186, 5
  %v1188 = vand.u32 %v1186, 31
  %v1189 = vsub.s32 32, %v1188
  %v1190 = vshrl.u32 683565275, %v1189
  %v1191 = vshll.u32 683565275, %v1188
  %v1192 = vshrl.u32 2475754826, %v1189
  %v1193 = vor.u32 %v1191, %v1192
  %v1194 = vshll.u32 2475754826, %v1188
  %v1195 = vshrl.u32 2131351028, %v1189
  %v1196 = vor.u32 %v1194, %v1195
  %v1197 = vshll.u32 2131351028, %v1188
  %v1198 = vshrl.u32 2102212464, %v1189
  %v1199 = vor.u32 %v1197, %v1198
  %v1200 = vshll.u32 2102212464, %v1188
  %v1201 = vshrl.u32 920167782, %v1189
  %v1202 = vor.u32 %v1200, %v1201
  %v1203 = vshll.u32 920167782, %v1188
  %v1204 = vshrl.u32 1326507024, %v1189
  %v1205 = vor.u32 %v1203, %v1204
  %vm1206 = vcmp.lt.s32.totalorder %v1187, 1
  %vm1207 = vcmp.lt.s32.totalorder %v1187, 2
  %vm1208 = vcmp.lt.s32.totalorder %v1187, 3
  %vm1209 = vcmp.lt.s32.totalorder %v1187, 4
  %v1210 = vsel %vm1206, %v1190, %v1193
  %v1211 = vsel %vm1209, %v1199, 2102212464
  %v1212 = vsel %vm1208, %v1196, %v1211
  %v1213 = vsel %vm1207, %v1210, %v1212
  %v1214 = vsel %vm1206, %v1193, %v1196
  %v1215 = vsel %vm1209, %v1202, 920167782
  %v1216 = vsel %vm1208, %v1199, %v1215
  %v1217 = vsel %vm1207, %v1214, %v1216
  %v1218 = vsel %vm1206, %v1196, %v1199
  %v1219 = vsel %vm1209, %v1205, 1326507024
  %v1220 = vsel %vm1208, %v1202, %v1219
  %v1221 = vsel %vm1207, %v1218, %v1220
  %v1222 = vshll.u32 %v1182, 8
  %v1223 = vmul.u32.u64.compose %v1222, %v1221
  %v1224 = vextract.low.u32 %v1223
  %v1225 = vextract.high.u32 %v1223
  %v1226 = vmul.u32.u64.compose %v1222, %v1217
  %v1227 = vextract.low.u32 %v1226
  %v1228 = vextract.high.u32 %v1226
  %v1229 = vmul.u32 %v1222, %v1213
  %v1230 = vadd.s32 %v1225, %v1227
  %vm1231 = vc.u32 %v1225, %v1227
  %v1232 = vadd.s32 %v1228, 1
  %v1233 = vsel %vm1231, %v1232, %v1228
  %v1234 = vadd.s32 %v1229, %v1233
  %v1235 = vadd.s32 %v1234, 536870912
  %v1236 = vshrl.u32 %v1235, 30
  %v1237 = vshll.u32 %v1236, 30
  %v1238 = vsub.s32 %v1234, %v1237
  %vm1239 = vcmp.lt.s32.totalorder %v1238, 0
  %v1240 = vsub.s32 0, %v1238
  %v1241 = vsel %vm1239, %v1240, %v1238
  %v1242 = vclz %v1241
  %v1243 = vsub.s32 %v1242, 2
  %vm1244 = vcmp.gt.s32.totalorder 0, %v1243
  %v1245 = vsel %vm1244, 0, %v1243
  %v1246 = vsub.s32 32, %v1245
  %v1247 = vshll.u32 %v1238, %v1245
  %v1248 = vshrl.u32 %v1230, %v1246
  %v1249 = vor.u32 %v1247, %v1248
  %v1250 = vsub.s32 4294967266, %v1245
  %v1251 = vadd.s32 %v1250, 127
  %v1252 = vshll.u32 %v1251, 23
  %v1253 = vor.u32 4788187, %v1252
  %v1254 = vand.u32 2147483647, %v1253
  %v1256 = vcvt.s32.f32 %v1249
  %v1257 = vmul.f32 %v1256, %v1254
  %v1258 = vxor.u32 %v1257, 2147483648
  %v1259 = vsel %vm1176, %v1258, %v1257
  %v1260 = vsub.s32 4, %v1236
  %v1261 = vsel %vm1176, %v1260, %v1236
  %v1262 = vsel %vm1175, %v33, %v1259
  %v1263 = vsel %vm1175, 0, %v1261
  %v1264 = vcosq.f32.pop %v1262
  %v1265 = vsinq.f32.pop %v1262
  %vm1266 = vweird.f32 %v33
  %v1267 = vadd.s32 %v1263, 3
  %v1268 = vand.u32 %v1267, 3
  %vm1269 = vcmp.lt.s32.totalorder %v1268, 2
  %vm1270 = vcmp.eq.s32.totalorder %v1268, 0
  %v1271 = vxor.u32 %v1265, 2147483648
  %v1272 = vsel %vm1270, %v1264, %v1271
  %vm1273 = vcmp.eq.s32.totalorder %v1268, 2
  %v1274 = vxor.u32 %v1264, 2147483648
  %v1275 = vsel %vm1273, %v1274, %v1265
  %v1276 = vsel %vm1269, %v1272, %v1275
  %v1277 = vsel %vm1266, nan, %v1276
  %v1278 = vand.u32 2147483647, %v34
  %vm1279 = vcmp.le.f32.partialorder %v1278, 0.7853982
  %vm1280 = vcmp.lt.s32.totalorder %v34, 0
  %v1281 = vand.u32 %v34, 2139095040
  %v1282 = vshrl.u32 %v1281, 23
  %v1283 = vsub.s32 %v1282, 127
  %v1284 = vand.u32 2147483647, %v34
  %v1285 = vand.u32 %v1284, 8388607
  %v1286 = vor.u32 %v1285, 8388608
  %v1287 = vsub.s32 0, %v1286
  %v1288 = vadd.s32 %v1283, 1
  %vm1289 = vcmp.gt.s32.totalorder %v1288, 0
  %v1290 = vsel %vm1289, %v1288, 0
  %v1291 = vshrl.u32 %v1290, 5
  %v1292 = vand.u32 %v1290, 31
  %v1293 = vsub.s32 32, %v1292
  %v1294 = vshrl.u32 683565275, %v1293
  %v1295 = vshll.u32 683565275, %v1292
  %v1296 = vshrl.u32 2475754826, %v1293
  %v1297 = vor.u32 %v1295, %v1296
  %v1298 = vshll.u32 2475754826, %v1292
  %v1299 = vshrl.u32 2131351028, %v1293
  %v1300 = vor.u32 %v1298, %v1299
  %v1301 = vshll.u32 2131351028, %v1292
  %v1302 = vshrl.u32 2102212464, %v1293
  %v1303 = vor.u32 %v1301, %v1302
  %v1304 = vshll.u32 2102212464, %v1292
  %v1305 = vshrl.u32 920167782, %v1293
  %v1306 = vor.u32 %v1304, %v1305
  %v1307 = vshll.u32 920167782, %v1292
  %v1308 = vshrl.u32 1326507024, %v1293
  %v1309 = vor.u32 %v1307, %v1308
  %vm1310 = vcmp.lt.s32.totalorder %v1291, 1
  %vm1311 = vcmp.lt.s32.totalorder %v1291, 2
  %vm1312 = vcmp.lt.s32.totalorder %v1291, 3
  %vm1313 = vcmp.lt.s32.totalorder %v1291, 4
  %v1314 = vsel %vm1310, %v1294, %v1297
  %v1315 = vsel %vm1313, %v1303, 2102212464
  %v1316 = vsel %vm1312, %v1300, %v1315
  %v1317 = vsel %vm1311, %v1314, %v1316
  %v1318 = vsel %vm1310, %v1297, %v1300
  %v1319 = vsel %vm1313, %v1306, 920167782
  %v1320 = vsel %vm1312, %v1303, %v1319
  %v1321 = vsel %vm1311, %v1318, %v1320
  %v1322 = vsel %vm1310, %v1300, %v1303
  %v1323 = vsel %vm1313, %v1309, 1326507024
  %v1324 = vsel %vm1312, %v1306, %v1323
  %v1325 = vsel %vm1311, %v1322, %v1324
  %v1326 = vshll.u32 %v1286, 8
  %v1327 = vmul.u32.u64.compose %v1326, %v1325
  %v1328 = vextract.low.u32 %v1327
  %v1329 = vextract.high.u32 %v1327
  %v1330 = vmul.u32.u64.compose %v1326, %v1321
  %v1331 = vextract.low.u32 %v1330
  %v1332 = vextract.high.u32 %v1330
  %v1333 = vmul.u32 %v1326, %v1317
  %v1334 = vadd.s32 %v1329, %v1331
  %vm1335 = vc.u32 %v1329, %v1331
  %v1336 = vadd.s32 %v1332, 1
  %v1337 = vsel %vm1335, %v1336, %v1332
  %v1338 = vadd.s32 %v1333, %v1337
  %v1339 = vadd.s32 %v1338, 536870912
  %v1340 = vshrl.u32 %v1339, 30
  %v1341 = vshll.u32 %v1340, 30
  %v1342 = vsub.s32 %v1338, %v1341
  %vm1343 = vcmp.lt.s32.totalorder %v1342, 0
  %v1344 = vsub.s32 0, %v1342
  %v1345 = vsel %vm1343, %v1344, %v1342
  %v1346 = vclz %v1345
  %v1347 = vsub.s32 %v1346, 2
  %vm1348 = vcmp.gt.s32.totalorder 0, %v1347
  %v1349 = vsel %vm1348, 0, %v1347
  %v1350 = vsub.s32 32, %v1349
  %v1351 = vshll.u32 %v1342, %v1349
  %v1352 = vshrl.u32 %v1334, %v1350
  %v1353 = vor.u32 %v1351, %v1352
  %v1354 = vsub.s32 4294967266, %v1349
  %v1355 = vadd.s32 %v1354, 127
  %v1356 = vshll.u32 %v1355, 23
  %v1357 = vor.u32 4788187, %v1356
  %v1358 = vand.u32 2147483647, %v1357
  %v1360 = vcvt.s32.f32 %v1353
  %v1361 = vmul.f32 %v1360, %v1358
  %v1362 = vxor.u32 %v1361, 2147483648
  %v1363 = vsel %vm1280, %v1362, %v1361
  %v1364 = vsub.s32 4, %v1340
  %v1365 = vsel %vm1280, %v1364, %v1340
  %v1366 = vsel %vm1279, %v34, %v1363
  %v1367 = vsel %vm1279, 0, %v1365
  %v1368 = vcosq.f32.pop %v1366
  %v1369 = vsinq.f32.pop %v1366
  %vm1370 = vweird.f32 %v34
  %v1371 = vadd.s32 %v1367, 3
  %v1372 = vand.u32 %v1371, 3
  %vm1373 = vcmp.lt.s32.totalorder %v1372, 2
  %vm1374 = vcmp.eq.s32.totalorder %v1372, 0
  %v1375 = vxor.u32 %v1369, 2147483648
  %v1376 = vsel %vm1374, %v1368, %v1375
  %vm1377 = vcmp.eq.s32.totalorder %v1372, 2
  %v1378 = vxor.u32 %v1368, 2147483648
  %v1379 = vsel %vm1377, %v1378, %v1369
  %v1380 = vsel %vm1373, %v1376, %v1379
  %v1381 = vsel %vm1370, nan, %v1380
  %v1382 = vand.u32 2147483647, %v35
  %vm1383 = vcmp.le.f32.partialorder %v1382, 0.7853982
  %vm1384 = vcmp.lt.s32.totalorder %v35, 0
  %v1385 = vand.u32 %v35, 2139095040
  %v1386 = vshrl.u32 %v1385, 23
  %v1387 = vsub.s32 %v1386, 127
  %v1388 = vand.u32 2147483647, %v35
  %v1389 = vand.u32 %v1388, 8388607
  %v1390 = vor.u32 %v1389, 8388608
  %v1391 = vsub.s32 0, %v1390
  %v1392 = vadd.s32 %v1387, 1
  %vm1393 = vcmp.gt.s32.totalorder %v1392, 0
  %v1394 = vsel %vm1393, %v1392, 0
  %v1395 = vshrl.u32 %v1394, 5
  %v1396 = vand.u32 %v1394, 31
  %v1397 = vsub.s32 32, %v1396
  %v1398 = vshrl.u32 683565275, %v1397
  %v1399 = vshll.u32 683565275, %v1396
  %v1400 = vshrl.u32 2475754826, %v1397
  %v1401 = vor.u32 %v1399, %v1400
  %v1402 = vshll.u32 2475754826, %v1396
  %v1403 = vshrl.u32 2131351028, %v1397
  %v1404 = vor.u32 %v1402, %v1403
  %v1405 = vshll.u32 2131351028, %v1396
  %v1406 = vshrl.u32 2102212464, %v1397
  %v1407 = vor.u32 %v1405, %v1406
  %v1408 = vshll.u32 2102212464, %v1396
  %v1409 = vshrl.u32 920167782, %v1397
  %v1410 = vor.u32 %v1408, %v1409
  %v1411 = vshll.u32 920167782, %v1396
  %v1412 = vshrl.u32 1326507024, %v1397
  %v1413 = vor.u32 %v1411, %v1412
  %vm1414 = vcmp.lt.s32.totalorder %v1395, 1
  %vm1415 = vcmp.lt.s32.totalorder %v1395, 2
  %vm1416 = vcmp.lt.s32.totalorder %v1395, 3
  %vm1417 = vcmp.lt.s32.totalorder %v1395, 4
  %v1418 = vsel %vm1414, %v1398, %v1401
  %v1419 = vsel %vm1417, %v1407, 2102212464
  %v1420 = vsel %vm1416, %v1404, %v1419
  %v1421 = vsel %vm1415, %v1418, %v1420
  %v1422 = vsel %vm1414, %v1401, %v1404
  %v1423 = vsel %vm1417, %v1410, 920167782
  %v1424 = vsel %vm1416, %v1407, %v1423
  %v1425 = vsel %vm1415, %v1422, %v1424
  %v1426 = vsel %vm1414, %v1404, %v1407
  %v1427 = vsel %vm1417, %v1413, 1326507024
  %v1428 = vsel %vm1416, %v1410, %v1427
  %v1429 = vsel %vm1415, %v1426, %v1428
  %v1430 = vshll.u32 %v1390, 8
  %v1431 = vmul.u32.u64.compose %v1430, %v1429
  %v1432 = vextract.low.u32 %v1431
  %v1433 = vextract.high.u32 %v1431
  %v1434 = vmul.u32.u64.compose %v1430, %v1425
  %v1435 = vextract.low.u32 %v1434
  %v1436 = vextract.high.u32 %v1434
  %v1437 = vmul.u32 %v1430, %v1421
  %v1438 = vadd.s32 %v1433, %v1435
  %vm1439 = vc.u32 %v1433, %v1435
  %v1440 = vadd.s32 %v1436, 1
  %v1441 = vsel %vm1439, %v1440, %v1436
  %v1442 = vadd.s32 %v1437, %v1441
  %v1443 = vadd.s32 %v1442, 536870912
  %v1444 = vshrl.u32 %v1443, 30
  %v1445 = vshll.u32 %v1444, 30
  %v1446 = vsub.s32 %v1442, %v1445
  %vm1447 = vcmp.lt.s32.totalorder %v1446, 0
  %v1448 = vsub.s32 0, %v1446
  %v1449 = vsel %vm1447, %v1448, %v1446
  %v1450 = vclz %v1449
  %v1451 = vsub.s32 %v1450, 2
  %vm1452 = vcmp.gt.s32.totalorder 0, %v1451
  %v1453 = vsel %vm1452, 0, %v1451
  %v1454 = vsub.s32 32, %v1453
  %v1455 = vshll.u32 %v1446, %v1453
  %v1456 = vshrl.u32 %v1438, %v1454
  %v1457 = vor.u32 %v1455, %v1456
  %v1458 = vsub.s32 4294967266, %v1453
  %v1459 = vadd.s32 %v1458, 127
  %v1460 = vshll.u32 %v1459, 23
  %v1461 = vor.u32 4788187, %v1460
  %v1462 = vand.u32 2147483647, %v1461
  %v1464 = vcvt.s32.f32 %v1457
  %v1465 = vmul.f32 %v1464, %v1462
  %v1466 = vxor.u32 %v1465, 2147483648
  %v1467 = vsel %vm1384, %v1466, %v1465
  %v1468 = vsub.s32 4, %v1444
  %v1469 = vsel %vm1384, %v1468, %v1444
  %v1470 = vsel %vm1383, %v35, %v1467
  %v1471 = vsel %vm1383, 0, %v1469
  %v1472 = vcosq.f32.pop %v1470
  %v1473 = vsinq.f32.pop %v1470
  %vm1474 = vweird.f32 %v35
  %v1475 = vadd.s32 %v1471, 3
  %v1476 = vand.u32 %v1475, 3
  %vm1477 = vcmp.lt.s32.totalorder %v1476, 2
  %vm1478 = vcmp.eq.s32.totalorder %v1476, 0
  %v1479 = vxor.u32 %v1473, 2147483648
  %v1480 = vsel %vm1478, %v1472, %v1479
  %vm1481 = vcmp.eq.s32.totalorder %v1476, 2
  %v1482 = vxor.u32 %v1472, 2147483648
  %v1483 = vsel %vm1481, %v1482, %v1473
  %v1484 = vsel %vm1477, %v1480, %v1483
  %v1485 = vsel %vm1474, nan, %v1484
  %v1486 = vand.u32 2147483647, %v36
  %vm1487 = vcmp.le.f32.partialorder %v1486, 0.7853982
  %vm1488 = vcmp.lt.s32.totalorder %v36, 0
  %v1489 = vand.u32 %v36, 2139095040
  %v1490 = vshrl.u32 %v1489, 23
  %v1491 = vsub.s32 %v1490, 127
  %v1492 = vand.u32 2147483647, %v36
  %v1493 = vand.u32 %v1492, 8388607
  %v1494 = vor.u32 %v1493, 8388608
  %v1495 = vsub.s32 0, %v1494
  %v1496 = vadd.s32 %v1491, 1
  %vm1497 = vcmp.gt.s32.totalorder %v1496, 0
  %v1498 = vsel %vm1497, %v1496, 0
  %v1499 = vshrl.u32 %v1498, 5
  %v1500 = vand.u32 %v1498, 31
  %v1501 = vsub.s32 32, %v1500
  %v1502 = vshrl.u32 683565275, %v1501
  %v1503 = vshll.u32 683565275, %v1500
  %v1504 = vshrl.u32 2475754826, %v1501
  %v1505 = vor.u32 %v1503, %v1504
  %v1506 = vshll.u32 2475754826, %v1500
  %v1507 = vshrl.u32 2131351028, %v1501
  %v1508 = vor.u32 %v1506, %v1507
  %v1509 = vshll.u32 2131351028, %v1500
  %v1510 = vshrl.u32 2102212464, %v1501
  %v1511 = vor.u32 %v1509, %v1510
  %v1512 = vshll.u32 2102212464, %v1500
  %v1513 = vshrl.u32 920167782, %v1501
  %v1514 = vor.u32 %v1512, %v1513
  %v1515 = vshll.u32 920167782, %v1500
  %v1516 = vshrl.u32 1326507024, %v1501
  %v1517 = vor.u32 %v1515, %v1516
  %vm1518 = vcmp.lt.s32.totalorder %v1499, 1
  %vm1519 = vcmp.lt.s32.totalorder %v1499, 2
  %vm1520 = vcmp.lt.s32.totalorder %v1499, 3
  %vm1521 = vcmp.lt.s32.totalorder %v1499, 4
  %v1522 = vsel %vm1518, %v1502, %v1505
  %v1523 = vsel %vm1521, %v1511, 2102212464
  %v1524 = vsel %vm1520, %v1508, %v1523
  %v1525 = vsel %vm1519, %v1522, %v1524
  %v1526 = vsel %vm1518, %v1505, %v1508
  %v1527 = vsel %vm1521, %v1514, 920167782
  %v1528 = vsel %vm1520, %v1511, %v1527
  %v1529 = vsel %vm1519, %v1526, %v1528
  %v1530 = vsel %vm1518, %v1508, %v1511
  %v1531 = vsel %vm1521, %v1517, 1326507024
  %v1532 = vsel %vm1520, %v1514, %v1531
  %v1533 = vsel %vm1519, %v1530, %v1532
  %v1534 = vshll.u32 %v1494, 8
  %v1535 = vmul.u32.u64.compose %v1534, %v1533
  %v1536 = vextract.low.u32 %v1535
  %v1537 = vextract.high.u32 %v1535
  %v1538 = vmul.u32.u64.compose %v1534, %v1529
  %v1539 = vextract.low.u32 %v1538
  %v1540 = vextract.high.u32 %v1538
  %v1541 = vmul.u32 %v1534, %v1525
  %v1542 = vadd.s32 %v1537, %v1539
  %vm1543 = vc.u32 %v1537, %v1539
  %v1544 = vadd.s32 %v1540, 1
  %v1545 = vsel %vm1543, %v1544, %v1540
  %v1546 = vadd.s32 %v1541, %v1545
  %v1547 = vadd.s32 %v1546, 536870912
  %v1548 = vshrl.u32 %v1547, 30
  %v1549 = vshll.u32 %v1548, 30
  %v1550 = vsub.s32 %v1546, %v1549
  %vm1551 = vcmp.lt.s32.totalorder %v1550, 0
  %v1552 = vsub.s32 0, %v1550
  %v1553 = vsel %vm1551, %v1552, %v1550
  %v1554 = vclz %v1553
  %v1555 = vsub.s32 %v1554, 2
  %vm1556 = vcmp.gt.s32.totalorder 0, %v1555
  %v1557 = vsel %vm1556, 0, %v1555
  %v1558 = vsub.s32 32, %v1557
  %v1559 = vshll.u32 %v1550, %v1557
  %v1560 = vshrl.u32 %v1542, %v1558
  %v1561 = vor.u32 %v1559, %v1560
  %v1562 = vsub.s32 4294967266, %v1557
  %v1563 = vadd.s32 %v1562, 127
  %v1564 = vshll.u32 %v1563, 23
  %v1565 = vor.u32 4788187, %v1564
  %v1566 = vand.u32 2147483647, %v1565
  %v1568 = vcvt.s32.f32 %v1561
  %v1569 = vmul.f32 %v1568, %v1566
  %v1570 = vxor.u32 %v1569, 2147483648
  %v1571 = vsel %vm1488, %v1570, %v1569
  %v1572 = vsub.s32 4, %v1548
  %v1573 = vsel %vm1488, %v1572, %v1548
  %v1574 = vsel %vm1487, %v36, %v1571
  %v1575 = vsel %vm1487, 0, %v1573
  %v1576 = vcosq.f32.pop %v1574
  %v1577 = vsinq.f32.pop %v1574
  %vm1578 = vweird.f32 %v36
  %v1579 = vadd.s32 %v1575, 3
  %v1580 = vand.u32 %v1579, 3
  %vm1581 = vcmp.lt.s32.totalorder %v1580, 2
  %vm1582 = vcmp.eq.s32.totalorder %v1580, 0
  %v1583 = vxor.u32 %v1577, 2147483648
  %v1584 = vsel %vm1582, %v1576, %v1583
  %vm1585 = vcmp.eq.s32.totalorder %v1580, 2
  %v1586 = vxor.u32 %v1576, 2147483648
  %v1587 = vsel %vm1585, %v1586, %v1577
  %v1588 = vsel %vm1581, %v1584, %v1587
  %v1589 = vsel %vm1578, nan, %v1588
  %v1590 = vand.u32 2147483647, %v37
  %vm1591 = vcmp.le.f32.partialorder %v1590, 0.7853982
  %vm1592 = vcmp.lt.s32.totalorder %v37, 0
  %v1593 = vand.u32 %v37, 2139095040
  %v1594 = vshrl.u32 %v1593, 23
  %v1595 = vsub.s32 %v1594, 127
  %v1596 = vand.u32 2147483647, %v37
  %v1597 = vand.u32 %v1596, 8388607
  %v1598 = vor.u32 %v1597, 8388608
  %v1599 = vsub.s32 0, %v1598
  %v1600 = vadd.s32 %v1595, 1
  %vm1601 = vcmp.gt.s32.totalorder %v1600, 0
  %v1602 = vsel %vm1601, %v1600, 0
  %v1603 = vshrl.u32 %v1602, 5
  %v1604 = vand.u32 %v1602, 31
  %v1605 = vsub.s32 32, %v1604
  %v1606 = vshrl.u32 683565275, %v1605
  %v1607 = vshll.u32 683565275, %v1604
  %v1608 = vshrl.u32 2475754826, %v1605
  %v1609 = vor.u32 %v1607, %v1608
  %v1610 = vshll.u32 2475754826, %v1604
  %v1611 = vshrl.u32 2131351028, %v1605
  %v1612 = vor.u32 %v1610, %v1611
  %v1613 = vshll.u32 2131351028, %v1604
  %v1614 = vshrl.u32 2102212464, %v1605
  %v1615 = vor.u32 %v1613, %v1614
  %v1616 = vshll.u32 2102212464, %v1604
  %v1617 = vshrl.u32 920167782, %v1605
  %v1618 = vor.u32 %v1616, %v1617
  %v1619 = vshll.u32 920167782, %v1604
  %v1620 = vshrl.u32 1326507024, %v1605
  %v1621 = vor.u32 %v1619, %v1620
  %vm1622 = vcmp.lt.s32.totalorder %v1603, 1
  %vm1623 = vcmp.lt.s32.totalorder %v1603, 2
  %vm1624 = vcmp.lt.s32.totalorder %v1603, 3
  %vm1625 = vcmp.lt.s32.totalorder %v1603, 4
  %v1626 = vsel %vm1622, %v1606, %v1609
  %v1627 = vsel %vm1625, %v1615, 2102212464
  %v1628 = vsel %vm1624, %v1612, %v1627
  %v1629 = vsel %vm1623, %v1626, %v1628
  %v1630 = vsel %vm1622, %v1609, %v1612
  %v1631 = vsel %vm1625, %v1618, 920167782
  %v1632 = vsel %vm1624, %v1615, %v1631
  %v1633 = vsel %vm1623, %v1630, %v1632
  %v1634 = vsel %vm1622, %v1612, %v1615
  %v1635 = vsel %vm1625, %v1621, 1326507024
  %v1636 = vsel %vm1624, %v1618, %v1635
  %v1637 = vsel %vm1623, %v1634, %v1636
  %v1638 = vshll.u32 %v1598, 8
  %v1639 = vmul.u32.u64.compose %v1638, %v1637
  %v1640 = vextract.low.u32 %v1639
  %v1641 = vextract.high.u32 %v1639
  %v1642 = vmul.u32.u64.compose %v1638, %v1633
  %v1643 = vextract.low.u32 %v1642
  %v1644 = vextract.high.u32 %v1642
  %v1645 = vmul.u32 %v1638, %v1629
  %v1646 = vadd.s32 %v1641, %v1643
  %vm1647 = vc.u32 %v1641, %v1643
  %v1648 = vadd.s32 %v1644, 1
  %v1649 = vsel %vm1647, %v1648, %v1644
  %v1650 = vadd.s32 %v1645, %v1649
  %v1651 = vadd.s32 %v1650, 536870912
  %v1652 = vshrl.u32 %v1651, 30
  %v1653 = vshll.u32 %v1652, 30
  %v1654 = vsub.s32 %v1650, %v1653
  %vm1655 = vcmp.lt.s32.totalorder %v1654, 0
  %v1656 = vsub.s32 0, %v1654
  %v1657 = vsel %vm1655, %v1656, %v1654
  %v1658 = vclz %v1657
  %v1659 = vsub.s32 %v1658, 2
  %vm1660 = vcmp.gt.s32.totalorder 0, %v1659
  %v1661 = vsel %vm1660, 0, %v1659
  %v1662 = vsub.s32 32, %v1661
  %v1663 = vshll.u32 %v1654, %v1661
  %v1664 = vshrl.u32 %v1646, %v1662
  %v1665 = vor.u32 %v1663, %v1664
  %v1666 = vsub.s32 4294967266, %v1661
  %v1667 = vadd.s32 %v1666, 127
  %v1668 = vshll.u32 %v1667, 23
  %v1669 = vor.u32 4788187, %v1668
  %v1670 = vand.u32 2147483647, %v1669
  %v1672 = vcvt.s32.f32 %v1665
  %v1673 = vmul.f32 %v1672, %v1670
  %v1674 = vxor.u32 %v1673, 2147483648
  %v1675 = vsel %vm1592, %v1674, %v1673
  %v1676 = vsub.s32 4, %v1652
  %v1677 = vsel %vm1592, %v1676, %v1652
  %v1678 = vsel %vm1591, %v37, %v1675
  %v1679 = vsel %vm1591, 0, %v1677
  %v1680 = vcosq.f32.pop %v1678
  %v1681 = vsinq.f32.pop %v1678
  %vm1682 = vweird.f32 %v37
  %v1683 = vadd.s32 %v1679, 3
  %v1684 = vand.u32 %v1683, 3
  %vm1685 = vcmp.lt.s32.totalorder %v1684, 2
  %vm1686 = vcmp.eq.s32.totalorder %v1684, 0
  %v1687 = vxor.u32 %v1681, 2147483648
  %v1688 = vsel %vm1686, %v1680, %v1687
  %vm1689 = vcmp.eq.s32.totalorder %v1684, 2
  %v1690 = vxor.u32 %v1680, 2147483648
  %v1691 = vsel %vm1689, %v1690, %v1681
  %v1692 = vsel %vm1685, %v1688, %v1691
  %v1693 = vsel %vm1682, nan, %v1692
  %v1698 = vrot.slane %v140, 1
  %v1699 = vrot.slane %v243, 1
  %v1700 = vrot.slane %v346, 1
  %v1701 = vrot.slane %v449, 1
  %v1706 = vmul.f32 %v140, %v1698
  %v1707 = vmul.f32 %v243, %v1699
  %v1708 = vmul.f32 %v346, %v1700
  %v1709 = vmul.f32 %v449, %v1701
  %v1710 = vsub.f32 0.0, %v140
  %v1711 = vsub.f32 0.0, %v243
  %v1712 = vsub.f32 0.0, %v346
  %v1713 = vsub.f32 0.0, %v449
  %v1718 = vrot.slane %v965, 1
  %v1719 = vrot.slane %v1069, 1
  %v1720 = vrot.slane %v1173, 1
  %v1721 = vrot.slane %v1277, 1
  %v1726 = vmul.f32 %v1710, %v1718
  %v1727 = vmul.f32 %v1711, %v1719
  %v1728 = vmul.f32 %v1712, %v1720
  %v1729 = vmul.f32 %v1713, %v1721
  %v1730 = vmul.f32 %v965, %v1698
  %v1731 = vmul.f32 %v1069, %v1699
  %v1732 = vmul.f32 %v1173, %v1700
  %v1733 = vmul.f32 %v1277, %v1701
  %v1734 = vmul.f32 %v965, %v1718
  %v1735 = vmul.f32 %v1069, %v1719
  %v1736 = vmul.f32 %v1173, %v1720
  %v1737 = vmul.f32 %v1277, %v1721
  %v1742 = vrot.slane %v1706, 6
  %v1743 = vrot.slane %v1707, 6
  %v1744 = vrot.slane %v1708, 6
  %v1745 = vrot.slane %v1709, 6
  %v1750 = vmul.f32 %v140, %v1742
  %v1751 = vmul.f32 %v243, %v1743
  %v1752 = vmul.f32 %v346, %v1744
  %v1753 = vmul.f32 %v449, %v1745
  %v1758 = vrot.slane %v1734, 6
  %v1759 = vrot.slane %v1735, 6
  %v1760 = vrot.slane %v1736, 6
  %v1761 = vrot.slane %v1737, 6
  %v1766 = vmul.f32 %v965, %v1758
  %v1767 = vmul.f32 %v1069, %v1759
  %v1768 = vmul.f32 %v1173, %v1760
  %v1769 = vmul.f32 %v1277, %v1761
  %v1770 = vadd.f32 %v1750, %v1766
  %v1771 = vadd.f32 %v1751, %v1767
  %v1772 = vadd.f32 %v1752, %v1768
  %v1773 = vadd.f32 %v1753, %v1769
  %v1778 = vrot.slane %v1726, 6
  %v1779 = vrot.slane %v1727, 6
  %v1780 = vrot.slane %v1728, 6
  %v1781 = vrot.slane %v1729, 6
  %v1786 = vmul.f32 %v140, %v1778
  %v1787 = vmul.f32 %v243, %v1779
  %v1788 = vmul.f32 %v346, %v1780
  %v1789 = vmul.f32 %v449, %v1781
  %v1794 = vrot.slane %v1730, 6
  %v1795 = vrot.slane %v1731, 6
  %v1796 = vrot.slane %v1732, 6
  %v1797 = vrot.slane %v1733, 6
  %v1802 = vmul.f32 %v965, %v1794
  %v1803 = vmul.f32 %v1069, %v1795
  %v1804 = vmul.f32 %v1173, %v1796
  %v1805 = vmul.f32 %v1277, %v1797
  %v1806 = vsub.f32 %v1786, %v1802
  %v1807 = vsub.f32 %v1787, %v1803
  %v1808 = vsub.f32 %v1788, %v1804
  %v1809 = vsub.f32 %v1789, %v1805
  %v1810 = vmul.f32 %v965, %v1778
  %v1811 = vmul.f32 %v1069, %v1779
  %v1812 = vmul.f32 %v1173, %v1780
  %v1813 = vmul.f32 %v1277, %v1781
  %v1814 = vmul.f32 %v140, %v1794
  %v1815 = vmul.f32 %v243, %v1795
  %v1816 = vmul.f32 %v346, %v1796
  %v1817 = vmul.f32 %v449, %v1797
  %v1818 = vadd.f32 %v1810, %v1814
  %v1819 = vadd.f32 %v1811, %v1815
  %v1820 = vadd.f32 %v1812, %v1816
  %v1821 = vadd.f32 %v1813, %v1817
  %v1822 = vsub.f32 0.0, %v965
  %v1823 = vsub.f32 0.0, %v1069
  %v1824 = vsub.f32 0.0, %v1173
  %v1825 = vsub.f32 0.0, %v1277
  %v1826 = vmul.f32 %v1822, %v1742
  %v1827 = vmul.f32 %v1823, %v1743
  %v1828 = vmul.f32 %v1824, %v1744
  %v1829 = vmul.f32 %v1825, %v1745
  %v1830 = vmul.f32 %v140, %v1758
  %v1831 = vmul.f32 %v243, %v1759
  %v1832 = vmul.f32 %v346, %v1760
  %v1833 = vmul.f32 %v449, %v1761
  %v1834 = vadd.f32 %v1826, %v1830
  %v1835 = vadd.f32 %v1827, %v1831
  %v1836 = vadd.f32 %v1828, %v1832
  %v1837 = vadd.f32 %v1829, %v1833
  %v1842 = vrot.slane %v1770, 7
  %v1843 = vrot.slane %v1771, 7
  %v1844 = vrot.slane %v1772, 7
  %v1845 = vrot.slane %v1773, 7
  %v1850 = vmul.f32 %v140, %v1842
  %v1851 = vmul.f32 %v243, %v1843
  %v1852 = vmul.f32 %v346, %v1844
  %v1853 = vmul.f32 %v449, %v1845
  %v1858 = vrot.slane %v1818, 7
  %v1859 = vrot.slane %v1819, 7
  %v1860 = vrot.slane %v1820, 7
  %v1861 = vrot.slane %v1821, 7
  %v1866 = vmul.f32 %v965, %v1858
  %v1867 = vmul.f32 %v1069, %v1859
  %v1868 = vmul.f32 %v1173, %v1860
  %v1869 = vmul.f32 %v1277, %v1861
  %v1870 = vsub.f32 %v1850, %v1866
  %v1871 = vsub.f32 %v1851, %v1867
  %v1872 = vsub.f32 %v1852, %v1868
  %v1873 = vsub.f32 %v1853, %v1869
  %v1878 = vrot.slane %v1806, 7
  %v1879 = vrot.slane %v1807, 7
  %v1880 = vrot.slane %v1808, 7
  %v1881 = vrot.slane %v1809, 7
  %v1886 = vmul.f32 %v140, %v1878
  %v1887 = vmul.f32 %v243, %v1879
  %v1888 = vmul.f32 %v346, %v1880
  %v1889 = vmul.f32 %v449, %v1881
  %v1894 = vrot.slane %v1834, 7
  %v1895 = vrot.slane %v1835, 7
  %v1896 = vrot.slane %v1836, 7
  %v1897 = vrot.slane %v1837, 7
  %v1902 = vmul.f32 %v965, %v1894
  %v1903 = vmul.f32 %v1069, %v1895
  %v1904 = vmul.f32 %v1173, %v1896
  %v1905 = vmul.f32 %v1277, %v1897
  %v1906 = vsub.f32 %v1886, %v1902
  %v1907 = vsub.f32 %v1887, %v1903
  %v1908 = vsub.f32 %v1888, %v1904
  %v1909 = vsub.f32 %v1889, %v1905
  %v1910 = vmul.f32 %v965, %v1842
  %v1911 = vmul.f32 %v1069, %v1843
  %v1912 = vmul.f32 %v1173, %v1844
  %v1913 = vmul.f32 %v1277, %v1845
  %v1914 = vmul.f32 %v140, %v1858
  %v1915 = vmul.f32 %v243, %v1859
  %v1916 = vmul.f32 %v346, %v1860
  %v1917 = vmul.f32 %v449, %v1861
  %v1918 = vadd.f32 %v1910, %v1914
  %v1919 = vadd.f32 %v1911, %v1915
  %v1920 = vadd.f32 %v1912, %v1916
  %v1921 = vadd.f32 %v1913, %v1917
  %v1922 = vmul.f32 %v965, %v1878
  %v1923 = vmul.f32 %v1069, %v1879
  %v1924 = vmul.f32 %v1173, %v1880
  %v1925 = vmul.f32 %v1277, %v1881
  %v1926 = vmul.f32 %v140, %v1894
  %v1927 = vmul.f32 %v243, %v1895
  %v1928 = vmul.f32 %v346, %v1896
  %v1929 = vmul.f32 %v449, %v1897
  %v1930 = vadd.f32 %v1922, %v1926
  %v1931 = vadd.f32 %v1923, %v1927
  %v1932 = vadd.f32 %v1924, %v1928
  %v1933 = vadd.f32 %v1925, %v1929
  %v1934 = vand.u32 %v20, 8
  %v1935 = vand.u32 %v21, 8
  %vm1936 = vcmp.ne.s32.totalorder %v1934, 0
  %vm1937 = vcmp.ne.s32.totalorder %v1935, 0
  %v1938 = vlaneseq
  %v1939 = vshrl.u32 %v1938, 7
  %v1940 = vsub.s32 3, %v1939
  %v1941 = vrot.slane %v1918, %v1940
  %v1942 = vlaneseq
  %v1943 = vshrl.u32 %v1942, 7
  %v1944 = vsub.s32 3, %v1943
  %v1945 = vrot.slane %v1919, %v1944
  %v1946 = vlaneseq
  %v1947 = vshrl.u32 %v1946, 7
  %v1948 = vsub.s32 3, %v1947
  %v1949 = vrot.slane %v1920, %v1948
  %v1950 = vlaneseq
  %v1951 = vshrl.u32 %v1950, 7
  %v1952 = vsub.s32 3, %v1951
  %v1953 = vrot.slane %v1921, %v1952
  %v1954 = vlaneseq
  %v1955 = vshrl.u32 %v1954, 7
  %v1956 = vsub.s32 3, %v1955
  %v1957 = vrot.slane %v1870, %v1956
  %v1958 = vlaneseq
  %v1959 = vshrl.u32 %v1958, 7
  %v1960 = vsub.s32 3, %v1959
  %v1961 = vrot.slane %v1871, %v1960
  %v1962 = vlaneseq
  %v1963 = vshrl.u32 %v1962, 7
  %v1964 = vsub.s32 3, %v1963
  %v1965 = vrot.slane %v1872, %v1964
  %v1966 = vlaneseq
  %v1967 = vshrl.u32 %v1966, 7
  %v1968 = vsub.s32 3, %v1967
  %v1969 = vrot.slane %v1873, %v1968
  %v1970 = vsel %vm1936, %v1941, %v1957
  %v1971 = vsel %vm1936, %v1945, %v1961
  %v1972 = vsel %vm1936, %v1949, %v1965
  %v1973 = vsel %vm1936, %v1953, %v1969
  %v1974 = vsel %vm1937, %v1941, %v1957
  %v1975 = vsel %vm1937, %v1945, %v1961
  %v1976 = vsel %vm1937, %v1949, %v1965
  %v1977 = vsel %vm1937, %v1953, %v1969
  %v1978 = vlaneseq
  %v1979 = vshrl.u32 %v1978, 7
  %v1980 = vsub.s32 3, %v1979
  %v1981 = vrot.slane %v1930, %v1980
  %v1982 = vlaneseq
  %v1983 = vshrl.u32 %v1982, 7
  %v1984 = vsub.s32 3, %v1983
  %v1985 = vrot.slane %v1931, %v1984
  %v1986 = vlaneseq
  %v1987 = vshrl.u32 %v1986, 7
  %v1988 = vsub.s32 3, %v1987
  %v1989 = vrot.slane %v1932, %v1988
  %v1990 = vlaneseq
  %v1991 = vshrl.u32 %v1990, 7
  %v1992 = vsub.s32 3, %v1991
  %v1993 = vrot.slane %v1933, %v1992
  %v1994 = vlaneseq
  %v1995 = vshrl.u32 %v1994, 7
  %v1996 = vsub.s32 3, %v1995
  %v1997 = vrot.slane %v1906, %v1996
  %v1998 = vlaneseq
  %v1999 = vshrl.u32 %v1998, 7
  %v2000 = vsub.s32 3, %v1999
  %v2001 = vrot.slane %v1907, %v2000
  %v2002 = vlaneseq
  %v2003 = vshrl.u32 %v2002, 7
  %v2004 = vsub.s32 3, %v2003
  %v2005 = vrot.slane %v1908, %v2004
  %v2006 = vlaneseq
  %v2007 = vshrl.u32 %v2006, 7
  %v2008 = vsub.s32 3, %v2007
  %v2009 = vrot.slane %v1909, %v2008
  %v2010 = vsel %vm1936, %v1981, %v1997
  %v2011 = vsel %vm1936, %v1985, %v2001
  %v2012 = vsel %vm1936, %v1989, %v2005
  %v2013 = vsel %vm1936, %v1993, %v2009
  %v2014 = vsel %vm1937, %v1981, %v1997
  %v2015 = vsel %vm1937, %v1985, %v2001
  %v2016 = vsel %vm1937, %v1989, %v2005
  %v2017 = vsel %vm1937, %v1993, %v2009
  %v2018 = vand.u32 %v20, 4
  %v2019 = vand.u32 %v21, 4
  %vm2020 = vcmp.ne.s32.totalorder %v2018, 0
  %vm2021 = vcmp.ne.s32.totalorder %v2019, 0
  %v2022 = vlaneseq
  %v2023 = vshrl.u32 %v2022, 7
  %v2024 = vsub.s32 7, %v2023
  %v2025 = vrot.slane %v1918, %v2024
  %v2026 = vlaneseq
  %v2027 = vshrl.u32 %v2026, 7
  %v2028 = vsub.s32 7, %v2027
  %v2029 = vrot.slane %v1919, %v2028
  %v2030 = vlaneseq
  %v2031 = vshrl.u32 %v2030, 7
  %v2032 = vsub.s32 7, %v2031
  %v2033 = vrot.slane %v1920, %v2032
  %v2034 = vlaneseq
  %v2035 = vshrl.u32 %v2034, 7
  %v2036 = vsub.s32 7, %v2035
  %v2037 = vrot.slane %v1921, %v2036
  %v2038 = vlaneseq
  %v2039 = vshrl.u32 %v2038, 7
  %v2040 = vsub.s32 7, %v2039
  %v2041 = vrot.slane %v1870, %v2040
  %v2042 = vlaneseq
  %v2043 = vshrl.u32 %v2042, 7
  %v2044 = vsub.s32 7, %v2043
  %v2045 = vrot.slane %v1871, %v2044
  %v2046 = vlaneseq
  %v2047 = vshrl.u32 %v2046, 7
  %v2048 = vsub.s32 7, %v2047
  %v2049 = vrot.slane %v1872, %v2048
  %v2050 = vlaneseq
  %v2051 = vshrl.u32 %v2050, 7
  %v2052 = vsub.s32 7, %v2051
  %v2053 = vrot.slane %v1873, %v2052
  %v2054 = vsel %vm2020, %v2025, %v2041
  %v2055 = vsel %vm2020, %v2029, %v2045
  %v2056 = vsel %vm2020, %v2033, %v2049
  %v2057 = vsel %vm2020, %v2037, %v2053
  %v2058 = vsel %vm2021, %v2025, %v2041
  %v2059 = vsel %vm2021, %v2029, %v2045
  %v2060 = vsel %vm2021, %v2033, %v2049
  %v2061 = vsel %vm2021, %v2037, %v2053
  %v2062 = vlaneseq
  %v2063 = vshrl.u32 %v2062, 7
  %v2064 = vsub.s32 7, %v2063
  %v2065 = vrot.slane %v1930, %v2064
  %v2066 = vlaneseq
  %v2067 = vshrl.u32 %v2066, 7
  %v2068 = vsub.s32 7, %v2067
  %v2069 = vrot.slane %v1931, %v2068
  %v2070 = vlaneseq
  %v2071 = vshrl.u32 %v2070, 7
  %v2072 = vsub.s32 7, %v2071
  %v2073 = vrot.slane %v1932, %v2072
  %v2074 = vlaneseq
  %v2075 = vshrl.u32 %v2074, 7
  %v2076 = vsub.s32 7, %v2075
  %v2077 = vrot.slane %v1933, %v2076
  %v2078 = vlaneseq
  %v2079 = vshrl.u32 %v2078, 7
  %v2080 = vsub.s32 7, %v2079
  %v2081 = vrot.slane %v1906, %v2080
  %v2082 = vlaneseq
  %v2083 = vshrl.u32 %v2082, 7
  %v2084 = vsub.s32 7, %v2083
  %v2085 = vrot.slane %v1907, %v2084
  %v2086 = vlaneseq
  %v2087 = vshrl.u32 %v2086, 7
  %v2088 = vsub.s32 7, %v2087
  %v2089 = vrot.slane %v1908, %v2088
  %v2090 = vlaneseq
  %v2091 = vshrl.u32 %v2090, 7
  %v2092 = vsub.s32 7, %v2091
  %v2093 = vrot.slane %v1909, %v2092
  %v2094 = vsel %vm2020, %v2065, %v2081
  %v2095 = vsel %vm2020, %v2069, %v2085
  %v2096 = vsel %vm2020, %v2073, %v2089
  %v2097 = vsel %vm2020, %v2077, %v2093
  %v2098 = vsel %vm2021, %v2065, %v2081
  %v2099 = vsel %vm2021, %v2069, %v2085
  %v2100 = vsel %vm2021, %v2073, %v2089
  %v2101 = vsel %vm2021, %v2077, %v2093
  %v2102 = vmul.f32 %v1970, %v2054
  %v2103 = vmul.f32 %v1971, %v2055
  %v2104 = vmul.f32 %v1972, %v2056
  %v2105 = vmul.f32 %v1973, %v2057
  %v2106 = vmul.f32 %v1974, %v2058
  %v2107 = vmul.f32 %v1975, %v2059
  %v2108 = vmul.f32 %v1976, %v2060
  %v2109 = vmul.f32 %v1977, %v2061
  %v2110 = vmul.f32 %v2010, %v2094
  %v2111 = vmul.f32 %v2011, %v2095
  %v2112 = vmul.f32 %v2012, %v2096
  %v2113 = vmul.f32 %v2013, %v2097
  %v2114 = vmul.f32 %v2014, %v2098
  %v2115 = vmul.f32 %v2015, %v2099
  %v2116 = vmul.f32 %v2016, %v2100
  %v2117 = vmul.f32 %v2017, %v2101
  %v2118 = vsub.f32 %v2102, %v2110
  %v2119 = vsub.f32 %v2103, %v2111
  %v2120 = vsub.f32 %v2104, %v2112
  %v2121 = vsub.f32 %v2105, %v2113
  %v2122 = vsub.f32 %v2106, %v2114
  %v2123 = vsub.f32 %v2107, %v2115
  %v2124 = vsub.f32 %v2108, %v2116
  %v2125 = vsub.f32 %v2109, %v2117
  %v2126 = vmul.f32 %v1970, %v2094
  %v2127 = vmul.f32 %v1971, %v2095
  %v2128 = vmul.f32 %v1972, %v2096
  %v2129 = vmul.f32 %v1973, %v2097
  %v2130 = vmul.f32 %v1974, %v2098
  %v2131 = vmul.f32 %v1975, %v2099
  %v2132 = vmul.f32 %v1976, %v2100
  %v2133 = vmul.f32 %v1977, %v2101
  %v2134 = vmul.f32 %v2010, %v2054
  %v2135 = vmul.f32 %v2011, %v2055
  %v2136 = vmul.f32 %v2012, %v2056
  %v2137 = vmul.f32 %v2013, %v2057
  %v2138 = vmul.f32 %v2014, %v2058
  %v2139 = vmul.f32 %v2015, %v2059
  %v2140 = vmul.f32 %v2016, %v2060
  %v2141 = vmul.f32 %v2017, %v2061
  %v2142 = vadd.f32 %v2126, %v2134
  %v2143 = vadd.f32 %v2127, %v2135
  %v2144 = vadd.f32 %v2128, %v2136
  %v2145 = vadd.f32 %v2129, %v2137
  %v2146 = vadd.f32 %v2130, %v2138
  %v2147 = vadd.f32 %v2131, %v2139
  %v2148 = vadd.f32 %v2132, %v2140
  %v2149 = vadd.f32 %v2133, %v2141
  %v2154 = vrot.slane %v552, 1
  %v2155 = vrot.slane %v655, 1
  %v2156 = vrot.slane %v758, 1
  %v2157 = vrot.slane %v861, 1
  %v2162 = vmul.f32 %v552, %v2154
  %v2163 = vmul.f32 %v655, %v2155
  %v2164 = vmul.f32 %v758, %v2156
  %v2165 = vmul.f32 %v861, %v2157
  %v2166 = vsub.f32 0.0, %v552
  %v2167 = vsub.f32 0.0, %v655
  %v2168 = vsub.f32 0.0, %v758
  %v2169 = vsub.f32 0.0, %v861
  %v2174 = vrot.slane %v1381, 1
  %v2175 = vrot.slane %v1485, 1
  %v2176 = vrot.slane %v1589, 1
  %v2177 = vrot.slane %v1693, 1
  %v2182 = vmul.f32 %v2166, %v2174
  %v2183 = vmul.f32 %v2167, %v2175
  %v2184 = vmul.f32 %v2168, %v2176
  %v2185 = vmul.f32 %v2169, %v2177
  %v2186 = vmul.f32 %v1381, %v2154
  %v2187 = vmul.f32 %v1485, %v2155
  %v2188 = vmul.f32 %v1589, %v2156
  %v2189 = vmul.f32 %v1693, %v2157
  %v2190 = vmul.f32 %v1381, %v2174
  %v2191 = vmul.f32 %v1485, %v2175
  %v2192 = vmul.f32 %v1589, %v2176
  %v2193 = vmul.f32 %v1693, %v2177
  %v2198 = vrot.slane %v2162, 6
  %v2199 = vrot.slane %v2163, 6
  %v2200 = vrot.slane %v2164, 6
  %v2201 = vrot.slane %v2165, 6
  %v2206 = vmul.f32 %v552, %v2198
  %v2207 = vmul.f32 %v655, %v2199
  %v2208 = vmul.f32 %v758, %v2200
  %v2209 = vmul.f32 %v861, %v2201
  %v2214 = vrot.slane %v2190, 6
  %v2215 = vrot.slane %v2191, 6
  %v2216 = vrot.slane %v2192, 6
  %v2217 = vrot.slane %v2193, 6
  %v2222 = vmul.f32 %v1381, %v2214
  %v2223 = vmul.f32 %v1485, %v2215
  %v2224 = vmul.f32 %v1589, %v2216
  %v2225 = vmul.f32 %v1693, %v2217
  %v2226 = vadd.f32 %v2206, %v2222
  %v2227 = vadd.f32 %v2207, %v2223
  %v2228 = vadd.f32 %v2208, %v2224
  %v2229 = vadd.f32 %v2209, %v2225
  %v2234 = vrot.slane %v2182, 6
  %v2235 = vrot.slane %v2183, 6
  %v2236 = vrot.slane %v2184, 6
  %v2237 = vrot.slane %v2185, 6
  %v2242 = vmul.f32 %v552, %v2234
  %v2243 = vmul.f32 %v655, %v2235
  %v2244 = vmul.f32 %v758, %v2236
  %v2245 = vmul.f32 %v861, %v2237
  %v2250 = vrot.slane %v2186, 6
  %v2251 = vrot.slane %v2187, 6
  %v2252 = vrot.slane %v2188, 6
  %v2253 = vrot.slane %v2189, 6
  %v2258 = vmul.f32 %v1381, %v2250
  %v2259 = vmul.f32 %v1485, %v2251
  %v2260 = vmul.f32 %v1589, %v2252
  %v2261 = vmul.f32 %v1693, %v2253
  %v2262 = vsub.f32 %v2242, %v2258
  %v2263 = vsub.f32 %v2243, %v2259
  %v2264 = vsub.f32 %v2244, %v2260
  %v2265 = vsub.f32 %v2245, %v2261
  %v2266 = vmul.f32 %v1381, %v2234
  %v2267 = vmul.f32 %v1485, %v2235
  %v2268 = vmul.f32 %v1589, %v2236
  %v2269 = vmul.f32 %v1693, %v2237
  %v2270 = vmul.f32 %v552, %v2250
  %v2271 = vmul.f32 %v655, %v2251
  %v2272 = vmul.f32 %v758, %v2252
  %v2273 = vmul.f32 %v861, %v2253
  %v2274 = vadd.f32 %v2266, %v2270
  %v2275 = vadd.f32 %v2267, %v2271
  %v2276 = vadd.f32 %v2268, %v2272
  %v2277 = vadd.f32 %v2269, %v2273
  %v2278 = vsub.f32 0.0, %v1381
  %v2279 = vsub.f32 0.0, %v1485
  %v2280 = vsub.f32 0.0, %v1589
  %v2281 = vsub.f32 0.0, %v1693
  %v2282 = vmul.f32 %v2278, %v2198
  %v2283 = vmul.f32 %v2279, %v2199
  %v2284 = vmul.f32 %v2280, %v2200
  %v2285 = vmul.f32 %v2281, %v2201
  %v2286 = vmul.f32 %v552, %v2214
  %v2287 = vmul.f32 %v655, %v2215
  %v2288 = vmul.f32 %v758, %v2216
  %v2289 = vmul.f32 %v861, %v2217
  %v2290 = vadd.f32 %v2282, %v2286
  %v2291 = vadd.f32 %v2283, %v2287
  %v2292 = vadd.f32 %v2284, %v2288
  %v2293 = vadd.f32 %v2285, %v2289
  %v2298 = vrot.slane %v2226, 7
  %v2299 = vrot.slane %v2227, 7
  %v2300 = vrot.slane %v2228, 7
  %v2301 = vrot.slane %v2229, 7
  %v2306 = vmul.f32 %v552, %v2298
  %v2307 = vmul.f32 %v655, %v2299
  %v2308 = vmul.f32 %v758, %v2300
  %v2309 = vmul.f32 %v861, %v2301
  %v2314 = vrot.slane %v2274, 7
  %v2315 = vrot.slane %v2275, 7
  %v2316 = vrot.slane %v2276, 7
  %v2317 = vrot.slane %v2277, 7
  %v2322 = vmul.f32 %v1381, %v2314
  %v2323 = vmul.f32 %v1485, %v2315
  %v2324 = vmul.f32 %v1589, %v2316
  %v2325 = vmul.f32 %v1693, %v2317
  %v2326 = vsub.f32 %v2306, %v2322
  %v2327 = vsub.f32 %v2307, %v2323
  %v2328 = vsub.f32 %v2308, %v2324
  %v2329 = vsub.f32 %v2309, %v2325
  %v2334 = vrot.slane %v2262, 7
  %v2335 = vrot.slane %v2263, 7
  %v2336 = vrot.slane %v2264, 7
  %v2337 = vrot.slane %v2265, 7
  %v2342 = vmul.f32 %v552, %v2334
  %v2343 = vmul.f32 %v655, %v2335
  %v2344 = vmul.f32 %v758, %v2336
  %v2345 = vmul.f32 %v861, %v2337
  %v2350 = vrot.slane %v2290, 7
  %v2351 = vrot.slane %v2291, 7
  %v2352 = vrot.slane %v2292, 7
  %v2353 = vrot.slane %v2293, 7
  %v2358 = vmul.f32 %v1381, %v2350
  %v2359 = vmul.f32 %v1485, %v2351
  %v2360 = vmul.f32 %v1589, %v2352
  %v2361 = vmul.f32 %v1693, %v2353
  %v2362 = vsub.f32 %v2342, %v2358
  %v2363 = vsub.f32 %v2343, %v2359
  %v2364 = vsub.f32 %v2344, %v2360
  %v2365 = vsub.f32 %v2345, %v2361
  %v2366 = vmul.f32 %v1381, %v2298
  %v2367 = vmul.f32 %v1485, %v2299
  %v2368 = vmul.f32 %v1589, %v2300
  %v2369 = vmul.f32 %v1693, %v2301
  %v2370 = vmul.f32 %v552, %v2314
  %v2371 = vmul.f32 %v655, %v2315
  %v2372 = vmul.f32 %v758, %v2316
  %v2373 = vmul.f32 %v861, %v2317
  %v2374 = vadd.f32 %v2366, %v2370
  %v2375 = vadd.f32 %v2367, %v2371
  %v2376 = vadd.f32 %v2368, %v2372
  %v2377 = vadd.f32 %v2369, %v2373
  %v2378 = vmul.f32 %v1381, %v2334
  %v2379 = vmul.f32 %v1485, %v2335
  %v2380 = vmul.f32 %v1589, %v2336
  %v2381 = vmul.f32 %v1693, %v2337
  %v2382 = vmul.f32 %v552, %v2350
  %v2383 = vmul.f32 %v655, %v2351
  %v2384 = vmul.f32 %v758, %v2352
  %v2385 = vmul.f32 %v861, %v2353
  %v2386 = vadd.f32 %v2378, %v2382
  %v2387 = vadd.f32 %v2379, %v2383
  %v2388 = vadd.f32 %v2380, %v2384
  %v2389 = vadd.f32 %v2381, %v2385
  %v2390 = vand.u32 %v20, 2
  %v2391 = vand.u32 %v21, 2
  %vm2392 = vcmp.ne.s32.totalorder %v2390, 0
  %vm2393 = vcmp.ne.s32.totalorder %v2391, 0
  %v2394 = vlaneseq
  %v2395 = vshrl.u32 %v2394, 7
  %v2396 = vsub.s32 3, %v2395
  %v2397 = vrot.slane %v2374, %v2396
  %v2398 = vlaneseq
  %v2399 = vshrl.u32 %v2398, 7
  %v2400 = vsub.s32 3, %v2399
  %v2401 = vrot.slane %v2375, %v2400
  %v2402 = vlaneseq
  %v2403 = vshrl.u32 %v2402, 7
  %v2404 = vsub.s32 3, %v2403
  %v2405 = vrot.slane %v2376, %v2404
  %v2406 = vlaneseq
  %v2407 = vshrl.u32 %v2406, 7
  %v2408 = vsub.s32 3, %v2407
  %v2409 = vrot.slane %v2377, %v2408
  %v2410 = vlaneseq
  %v2411 = vshrl.u32 %v2410, 7
  %v2412 = vsub.s32 3, %v2411
  %v2413 = vrot.slane %v2326, %v2412
  %v2414 = vlaneseq
  %v2415 = vshrl.u32 %v2414, 7
  %v2416 = vsub.s32 3, %v2415
  %v2417 = vrot.slane %v2327, %v2416
  %v2418 = vlaneseq
  %v2419 = vshrl.u32 %v2418, 7
  %v2420 = vsub.s32 3, %v2419
  %v2421 = vrot.slane %v2328, %v2420
  %v2422 = vlaneseq
  %v2423 = vshrl.u32 %v2422, 7
  %v2424 = vsub.s32 3, %v2423
  %v2425 = vrot.slane %v2329, %v2424
  %v2426 = vsel %vm2392, %v2397, %v2413
  %v2427 = vsel %vm2392, %v2401, %v2417
  %v2428 = vsel %vm2392, %v2405, %v2421
  %v2429 = vsel %vm2392, %v2409, %v2425
  %v2430 = vsel %vm2393, %v2397, %v2413
  %v2431 = vsel %vm2393, %v2401, %v2417
  %v2432 = vsel %vm2393, %v2405, %v2421
  %v2433 = vsel %vm2393, %v2409, %v2425
  %v2434 = vlaneseq
  %v2435 = vshrl.u32 %v2434, 7
  %v2436 = vsub.s32 3, %v2435
  %v2437 = vrot.slane %v2386, %v2436
  %v2438 = vlaneseq
  %v2439 = vshrl.u32 %v2438, 7
  %v2440 = vsub.s32 3, %v2439
  %v2441 = vrot.slane %v2387, %v2440
  %v2442 = vlaneseq
  %v2443 = vshrl.u32 %v2442, 7
  %v2444 = vsub.s32 3, %v2443
  %v2445 = vrot.slane %v2388, %v2444
  %v2446 = vlaneseq
  %v2447 = vshrl.u32 %v2446, 7
  %v2448 = vsub.s32 3, %v2447
  %v2449 = vrot.slane %v2389, %v2448
  %v2450 = vlaneseq
  %v2451 = vshrl.u32 %v2450, 7
  %v2452 = vsub.s32 3, %v2451
  %v2453 = vrot.slane %v2362, %v2452
  %v2454 = vlaneseq
  %v2455 = vshrl.u32 %v2454, 7
  %v2456 = vsub.s32 3, %v2455
  %v2457 = vrot.slane %v2363, %v2456
  %v2458 = vlaneseq
  %v2459 = vshrl.u32 %v2458, 7
  %v2460 = vsub.s32 3, %v2459
  %v2461 = vrot.slane %v2364, %v2460
  %v2462 = vlaneseq
  %v2463 = vshrl.u32 %v2462, 7
  %v2464 = vsub.s32 3, %v2463
  %v2465 = vrot.slane %v2365, %v2464
  %v2466 = vsel %vm2392, %v2437, %v2453
  %v2467 = vsel %vm2392, %v2441, %v2457
  %v2468 = vsel %vm2392, %v2445, %v2461
  %v2469 = vsel %vm2392, %v2449, %v2465
  %v2470 = vsel %vm2393, %v2437, %v2453
  %v2471 = vsel %vm2393, %v2441, %v2457
  %v2472 = vsel %vm2393, %v2445, %v2461
  %v2473 = vsel %vm2393, %v2449, %v2465
  %v2474 = vmul.f32 %v2118, %v2426
  %v2475 = vmul.f32 %v2119, %v2427
  %v2476 = vmul.f32 %v2120, %v2428
  %v2477 = vmul.f32 %v2121, %v2429
  %v2478 = vmul.f32 %v2122, %v2430
  %v2479 = vmul.f32 %v2123, %v2431
  %v2480 = vmul.f32 %v2124, %v2432
  %v2481 = vmul.f32 %v2125, %v2433
  %v2482 = vmul.f32 %v2142, %v2466
  %v2483 = vmul.f32 %v2143, %v2467
  %v2484 = vmul.f32 %v2144, %v2468
  %v2485 = vmul.f32 %v2145, %v2469
  %v2486 = vmul.f32 %v2146, %v2470
  %v2487 = vmul.f32 %v2147, %v2471
  %v2488 = vmul.f32 %v2148, %v2472
  %v2489 = vmul.f32 %v2149, %v2473
  %v2490 = vsub.f32 %v2474, %v2482
  %v2491 = vsub.f32 %v2475, %v2483
  %v2492 = vsub.f32 %v2476, %v2484
  %v2493 = vsub.f32 %v2477, %v2485
  %v2494 = vsub.f32 %v2478, %v2486
  %v2495 = vsub.f32 %v2479, %v2487
  %v2496 = vsub.f32 %v2480, %v2488
  %v2497 = vsub.f32 %v2481, %v2489
  %v2498 = vmul.f32 %v2118, %v2466
  %v2499 = vmul.f32 %v2119, %v2467
  %v2500 = vmul.f32 %v2120, %v2468
  %v2501 = vmul.f32 %v2121, %v2469
  %v2502 = vmul.f32 %v2122, %v2470
  %v2503 = vmul.f32 %v2123, %v2471
  %v2504 = vmul.f32 %v2124, %v2472
  %v2505 = vmul.f32 %v2125, %v2473
  %v2506 = vmul.f32 %v2142, %v2426
  %v2507 = vmul.f32 %v2143, %v2427
  %v2508 = vmul.f32 %v2144, %v2428
  %v2509 = vmul.f32 %v2145, %v2429
  %v2510 = vmul.f32 %v2146, %v2430
  %v2511 = vmul.f32 %v2147, %v2431
  %v2512 = vmul.f32 %v2148, %v2432
  %v2513 = vmul.f32 %v2149, %v2433
  %v2514 = vadd.f32 %v2498, %v2506
  %v2515 = vadd.f32 %v2499, %v2507
  %v2516 = vadd.f32 %v2500, %v2508
  %v2517 = vadd.f32 %v2501, %v2509
  %v2518 = vadd.f32 %v2502, %v2510
  %v2519 = vadd.f32 %v2503, %v2511
  %v2520 = vadd.f32 %v2504, %v2512
  %v2521 = vadd.f32 %v2505, %v2513
  %v2522 = vand.u32 %v20, 1
  %v2523 = vand.u32 %v21, 1
  %vm2524 = vcmp.ne.s32.totalorder %v2522, 0
  %vm2525 = vcmp.ne.s32.totalorder %v2523, 0
  %v2526 = vlaneseq
  %v2527 = vshrl.u32 %v2526, 7
  %v2528 = vsub.s32 7, %v2527
  %v2529 = vrot.slane %v2374, %v2528
  %v2530 = vlaneseq
  %v2531 = vshrl.u32 %v2530, 7
  %v2532 = vsub.s32 7, %v2531
  %v2533 = vrot.slane %v2375, %v2532
  %v2534 = vlaneseq
  %v2535 = vshrl.u32 %v2534, 7
  %v2536 = vsub.s32 7, %v2535
  %v2537 = vrot.slane %v2376, %v2536
  %v2538 = vlaneseq
  %v2539 = vshrl.u32 %v2538, 7
  %v2540 = vsub.s32 7, %v2539
  %v2541 = vrot.slane %v2377, %v2540
  %v2542 = vlaneseq
  %v2543 = vshrl.u32 %v2542, 7
  %v2544 = vsub.s32 7, %v2543
  %v2545 = vrot.slane %v2326, %v2544
  %v2546 = vlaneseq
  %v2547 = vshrl.u32 %v2546, 7
  %v2548 = vsub.s32 7, %v2547
  %v2549 = vrot.slane %v2327, %v2548
  %v2550 = vlaneseq
  %v2551 = vshrl.u32 %v2550, 7
  %v2552 = vsub.s32 7, %v2551
  %v2553 = vrot.slane %v2328, %v2552
  %v2554 = vlaneseq
  %v2555 = vshrl.u32 %v2554, 7
  %v2556 = vsub.s32 7, %v2555
  %v2557 = vrot.slane %v2329, %v2556
  %v2558 = vsel %vm2524, %v2529, %v2545
  %v2559 = vsel %vm2524, %v2533, %v2549
  %v2560 = vsel %vm2524, %v2537, %v2553
  %v2561 = vsel %vm2524, %v2541, %v2557
  %v2562 = vsel %vm2525, %v2529, %v2545
  %v2563 = vsel %vm2525, %v2533, %v2549
  %v2564 = vsel %vm2525, %v2537, %v2553
  %v2565 = vsel %vm2525, %v2541, %v2557
  %v2566 = vlaneseq
  %v2567 = vshrl.u32 %v2566, 7
  %v2568 = vsub.s32 7, %v2567
  %v2569 = vrot.slane %v2386, %v2568
  %v2570 = vlaneseq
  %v2571 = vshrl.u32 %v2570, 7
  %v2572 = vsub.s32 7, %v2571
  %v2573 = vrot.slane %v2387, %v2572
  %v2574 = vlaneseq
  %v2575 = vshrl.u32 %v2574, 7
  %v2576 = vsub.s32 7, %v2575
  %v2577 = vrot.slane %v2388, %v2576
  %v2578 = vlaneseq
  %v2579 = vshrl.u32 %v2578, 7
  %v2580 = vsub.s32 7, %v2579
  %v2581 = vrot.slane %v2389, %v2580
  %v2582 = vlaneseq
  %v2583 = vshrl.u32 %v2582, 7
  %v2584 = vsub.s32 7, %v2583
  %v2585 = vrot.slane %v2362, %v2584
  %v2586 = vlaneseq
  %v2587 = vshrl.u32 %v2586, 7
  %v2588 = vsub.s32 7, %v2587
  %v2589 = vrot.slane %v2363, %v2588
  %v2590 = vlaneseq
  %v2591 = vshrl.u32 %v2590, 7
  %v2592 = vsub.s32 7, %v2591
  %v2593 = vrot.slane %v2364, %v2592
  %v2594 = vlaneseq
  %v2595 = vshrl.u32 %v2594, 7
  %v2596 = vsub.s32 7, %v2595
  %v2597 = vrot.slane %v2365, %v2596
  %v2598 = vsel %vm2524, %v2569, %v2585
  %v2599 = vsel %vm2524, %v2573, %v2589
  %v2600 = vsel %vm2524, %v2577, %v2593
  %v2601 = vsel %vm2524, %v2581, %v2597
  %v2602 = vsel %vm2525, %v2569, %v2585
  %v2603 = vsel %vm2525, %v2573, %v2589
  %v2604 = vsel %vm2525, %v2577, %v2593
  %v2605 = vsel %vm2525, %v2581, %v2597
  %v2606 = vmul.f32 %v2490, %v2558
  %v2607 = vmul.f32 %v2491, %v2559
  %v2608 = vmul.f32 %v2492, %v2560
  %v2609 = vmul.f32 %v2493, %v2561
  %v2610 = vmul.f32 %v2494, %v2562
  %v2611 = vmul.f32 %v2495, %v2563
  %v2612 = vmul.f32 %v2496, %v2564
  %v2613 = vmul.f32 %v2497, %v2565
  %v2614 = vmul.f32 %v2514, %v2598
  %v2615 = vmul.f32 %v2515, %v2599
  %v2616 = vmul.f32 %v2516, %v2600
  %v2617 = vmul.f32 %v2517, %v2601
  %v2618 = vmul.f32 %v2518, %v2602
  %v2619 = vmul.f32 %v2519, %v2603
  %v2620 = vmul.f32 %v2520, %v2604
  %v2621 = vmul.f32 %v2521, %v2605
  %v2622 = vsub.f32 %v2606, %v2614
  %v2623 = vsub.f32 %v2607, %v2615
  %v2624 = vsub.f32 %v2608, %v2616
  %v2625 = vsub.f32 %v2609, %v2617
  %v2626 = vsub.f32 %v2610, %v2618
  %v2627 = vsub.f32 %v2611, %v2619
  %v2628 = vsub.f32 %v2612, %v2620
  %v2629 = vsub.f32 %v2613, %v2621
  %v2630 = vmul.f32 %v2490, %v2598
  %v2631 = vmul.f32 %v2491, %v2599
  %v2632 = vmul.f32 %v2492, %v2600
  %v2633 = vmul.f32 %v2493, %v2601
  %v2634 = vmul.f32 %v2494, %v2602
  %v2635 = vmul.f32 %v2495, %v2603
  %v2636 = vmul.f32 %v2496, %v2604
  %v2637 = vmul.f32 %v2497, %v2605
  %v2638 = vmul.f32 %v2514, %v2558
  %v2639 = vmul.f32 %v2515, %v2559
  %v2640 = vmul.f32 %v2516, %v2560
  %v2641 = vmul.f32 %v2517, %v2561
  %v2642 = vmul.f32 %v2518, %v2562
  %v2643 = vmul.f32 %v2519, %v2563
  %v2644 = vmul.f32 %v2520, %v2564
  %v2645 = vmul.f32 %v2521, %v2565
  %v2646 = vadd.f32 %v2630, %v2638
  %v2647 = vadd.f32 %v2631, %v2639
  %v2648 = vadd.f32 %v2632, %v2640
  %v2649 = vadd.f32 %v2633, %v2641
  %v2650 = vadd.f32 %v2634, %v2642
  %v2651 = vadd.f32 %v2635, %v2643
  %v2652 = vadd.f32 %v2636, %v2644
  %v2653 = vadd.f32 %v2637, %v2645
  %vm2654 = vcmask 261120
  %v2656 = vsel %vm2654, %v14, 0
  %v2659 = vsel %vm2654, %v15, 0
  %v2662 = vsel %vm2654, %v16, 0
  %v2665 = vsel %vm2654, %v17, 0
  %2667 = vmatprep.subr.mxu0 0.0
  %2668 = vmatpush1.msra.mxu0 0.0
  %2669 = vmatprep.subr.mxu0 0.0
  %2670 = vmatpush1.msra.mxu0 0.0
  %2671 = vmatprep.subr.mxu0 0.0
  %2672 = vmatpush1.msra.mxu0 0.0
  %2673 = vmatprep.subr.mxu0 0.0
  %2674 = vmatpush1.msra.mxu0 0.0
  %2675 = vmatprep.subr.mxu0 0.0
  %2676 = vmatpush1.msra.mxu0 0.0
  %2677 = vmatprep.subr.mxu0 0.0
  %2678 = vmatpush1.msra.mxu0 0.0
  %2679 = vmatprep.subr.mxu0 0.0
  %2680 = vmatpush1.msra.mxu0 0.0
  %2681 = vmatprep.subr.mxu0 0.0
  %2682 = vmatpush1.msra.mxu0 0.0
  %2683 = vmatprep.subr.mxu0 0.0
  %2684 = vmatpush1.msra.mxu0 0.0
  %2685 = vmatprep.subr.mxu0 0.0
  %2686 = vmatpush1.msra.mxu0 0.0
  %2687 = vmatprep.subr.mxu0 0.0
  %2688 = vmatpush1.msra.mxu0 0.0
  %2689 = vmatprep.subr.mxu0 0.0
  %2690 = vmatpush1.msra.mxu0 0.0
  %2691 = vmatprep.subr.mxu0 %v2651
  %2692 = vmatpush1.msra.mxu0 %v2650
  %2693 = vmatprep.subr.mxu0 %v2647
  %2694 = vmatpush1.msra.mxu0 %v2646
  %2695 = vmatprep.subr.mxu0 %v2627
  %2696 = vmatpush1.msra.mxu0 %v2626
  %2697 = vmatprep.subr.mxu0 %v2623
  %2698 = vmatpush1.msra.mxu0 %v2622
  %2699 = vmatprep.subr.mxu0 0.0
  %2700 = vmatpush2.msra.mxu0 0.0
  %2701 = vmatprep.subr.mxu0 0.0
  %2702 = vmatpush2.msra.mxu0 0.0
  %2703 = vmatprep.subr.mxu0 0.0
  %2704 = vmatpush2.msra.mxu0 0.0
  %2705 = vmatprep.subr.mxu0 0.0
  %2706 = vmatpush2.msra.mxu0 0.0
  %2707 = vmatprep.subr.mxu0 0.0
  %2708 = vmatpush2.msra.mxu0 0.0
  %2709 = vmatprep.subr.mxu0 0.0
  %2710 = vmatpush2.msra.mxu0 0.0
  %2711 = vmatprep.subr.mxu0 0.0
  %2712 = vmatpush2.msra.mxu0 0.0
  %2713 = vmatprep.subr.mxu0 0.0
  %2714 = vmatpush2.msra.mxu0 0.0
  %2715 = vmatprep.subr.mxu0 0.0
  %2716 = vmatpush2.msra.mxu0 0.0
  %2717 = vmatprep.subr.mxu0 0.0
  %2718 = vmatpush2.msra.mxu0 0.0
  %2719 = vmatprep.subr.mxu0 0.0
  %2720 = vmatpush2.msra.mxu0 0.0
  %2721 = vmatprep.subr.mxu0 0.0
  %2722 = vmatpush2.msra.mxu0 0.0
  %2723 = vmatprep.subr.mxu0 0.0
  %2724 = vmatpush2.msra.mxu0 0.0
  %2725 = vmatprep.subr.mxu0 0.0
  %2726 = vmatpush2.msra.mxu0 0.0
  %2727 = vmatprep.subr.mxu0 0.0
  %2728 = vmatpush2.msra.mxu0 0.0
  %2729 = vmatprep.subr.mxu0 0.0
  %2730 = vmatpush2.msra.mxu0 0.0
  %2731 = vmatprep.mubr.f32.mxu0 0.0
  %2732 = vmatmul.mubr.f32.gmra.mxu0 %v2656
  %v2733 = vpop.f32.mrf.mxu0
  %v2734 = vadd.f32 0.0, %v2733
  %v2735 = vpop.f32.mrf.mxu0
  %v2736 = vadd.f32 0.0, %v2735
  %2737 = vmatprep.mubr.f32.mxu0 0.0
  %2738 = vmatmul.mubr.f32.gmra.mxu0 %v2659
  %v2739 = vpop.f32.mrf.mxu0
  %v2740 = vadd.f32 0.0, %v2739
  %v2741 = vpop.f32.mrf.mxu0
  %v2742 = vadd.f32 0.0, %v2741
  %2743 = vmatprep.mubr.f32.mxu0 0.0
  %2744 = vmatmul.mubr.f32.gmra.mxu0 %v2662
  %v2745 = vpop.f32.mrf.mxu0
  %v2746 = vadd.f32 0.0, %v2745
  %v2747 = vpop.f32.mrf.mxu0
  %v2748 = vadd.f32 0.0, %v2747
  %2749 = vmatprep.mubr.f32.mxu0 0.0
  %2750 = vmatmul.mubr.f32.gmra.mxu0 %v2665
  %v2751 = vpop.f32.mrf.mxu0
  %v2752 = vadd.f32 0.0, %v2751
  %v2753 = vpop.f32.mrf.mxu0
  %v2754 = vadd.f32 0.0, %v2753
  %2755 = vdwg.mxu0
  %2756 = vmatprep.subr.mxu0 0.0
  %2757 = vmatpush1.msra.mxu0 0.0
  %2758 = vmatprep.subr.mxu0 0.0
  %2759 = vmatpush1.msra.mxu0 0.0
  %2760 = vmatprep.subr.mxu0 0.0
  %2761 = vmatpush1.msra.mxu0 0.0
  %2762 = vmatprep.subr.mxu0 0.0
  %2763 = vmatpush1.msra.mxu0 0.0
  %2764 = vmatprep.subr.mxu0 0.0
  %2765 = vmatpush1.msra.mxu0 0.0
  %2766 = vmatprep.subr.mxu0 0.0
  %2767 = vmatpush1.msra.mxu0 0.0
  %2768 = vmatprep.subr.mxu0 0.0
  %2769 = vmatpush1.msra.mxu0 0.0
  %2770 = vmatprep.subr.mxu0 0.0
  %2771 = vmatpush1.msra.mxu0 0.0
  %2772 = vmatprep.subr.mxu0 0.0
  %2773 = vmatpush1.msra.mxu0 0.0
  %2774 = vmatprep.subr.mxu0 0.0
  %2775 = vmatpush1.msra.mxu0 0.0
  %2776 = vmatprep.subr.mxu0 0.0
  %2777 = vmatpush1.msra.mxu0 0.0
  %2778 = vmatprep.subr.mxu0 0.0
  %2779 = vmatpush1.msra.mxu0 0.0
  %2780 = vmatprep.subr.mxu0 %v2653
  %2781 = vmatpush1.msra.mxu0 %v2652
  %2782 = vmatprep.subr.mxu0 %v2649
  %2783 = vmatpush1.msra.mxu0 %v2648
  %2784 = vmatprep.subr.mxu0 %v2629
  %2785 = vmatpush1.msra.mxu0 %v2628
  %2786 = vmatprep.subr.mxu0 %v2625
  %2787 = vmatpush1.msra.mxu0 %v2624
  %2788 = vmatprep.subr.mxu0 0.0
  %2789 = vmatpush2.msra.mxu0 0.0
  %2790 = vmatprep.subr.mxu0 0.0
  %2791 = vmatpush2.msra.mxu0 0.0
  %2792 = vmatprep.subr.mxu0 0.0
  %2793 = vmatpush2.msra.mxu0 0.0
  %2794 = vmatprep.subr.mxu0 0.0
  %2795 = vmatpush2.msra.mxu0 0.0
  %2796 = vmatprep.subr.mxu0 0.0
  %2797 = vmatpush2.msra.mxu0 0.0
  %2798 = vmatprep.subr.mxu0 0.0
  %2799 = vmatpush2.msra.mxu0 0.0
  %2800 = vmatprep.subr.mxu0 0.0
  %2801 = vmatpush2.msra.mxu0 0.0
  %2802 = vmatprep.subr.mxu0 0.0
  %2803 = vmatpush2.msra.mxu0 0.0
  %2804 = vmatprep.subr.mxu0 0.0
  %2805 = vmatpush2.msra.mxu0 0.0
  %2806 = vmatprep.subr.mxu0 0.0
  %2807 = vmatpush2.msra.mxu0 0.0
  %2808 = vmatprep.subr.mxu0 0.0
  %2809 = vmatpush2.msra.mxu0 0.0
  %2810 = vmatprep.subr.mxu0 0.0
  %2811 = vmatpush2.msra.mxu0 0.0
  %2812 = vmatprep.subr.mxu0 0.0
  %2813 = vmatpush2.msra.mxu0 0.0
  %2814 = vmatprep.subr.mxu0 0.0
  %2815 = vmatpush2.msra.mxu0 0.0
  %2816 = vmatprep.subr.mxu0 0.0
  %2817 = vmatpush2.msra.mxu0 0.0
  %2818 = vmatprep.subr.mxu0 0.0
  %2819 = vmatpush2.msra.mxu0 0.0
  %2820 = vmatprep.mubr.f32.mxu0 0.0
  %2821 = vmatmul.mubr.f32.gmra.mxu0 %v2656
  %v2822 = vpop.f32.mrf.mxu0
  %v2823 = vadd.f32 0.0, %v2822
  %v2824 = vpop.f32.mrf.mxu0
  %v2825 = vadd.f32 0.0, %v2824
  %2826 = vmatprep.mubr.f32.mxu0 0.0
  %2827 = vmatmul.mubr.f32.gmra.mxu0 %v2659
  %v2828 = vpop.f32.mrf.mxu0
  %v2829 = vadd.f32 0.0, %v2828
  %v2830 = vpop.f32.mrf.mxu0
  %v2831 = vadd.f32 0.0, %v2830
  %2832 = vmatprep.mubr.f32.mxu0 0.0
  %2833 = vmatmul.mubr.f32.gmra.mxu0 %v2662
  %v2834 = vpop.f32.mrf.mxu0
  %v2835 = vadd.f32 0.0, %v2834
  %v2836 = vpop.f32.mrf.mxu0
  %v2837 = vadd.f32 0.0, %v2836
  %2838 = vmatprep.mubr.f32.mxu0 0.0
  %2839 = vmatmul.mubr.f32.gmra.mxu0 %v2665
  %v2840 = vpop.f32.mrf.mxu0
  %v2841 = vadd.f32 0.0, %v2840
  %v2842 = vpop.f32.mrf.mxu0
  %v2843 = vadd.f32 0.0, %v2842
  %2844 = vdwg.mxu0
  %v2845 = vmul.f32 %v2734, %v2734
  %v2846 = vmul.f32 %v2736, %v2736
  %v2847 = vmul.f32 %v2823, %v2823
  %v2848 = vmul.f32 %v2825, %v2825
  %v2849 = vmul.f32 %v2740, %v2740
  %v2850 = vmul.f32 %v2742, %v2742
  %v2851 = vmul.f32 %v2829, %v2829
  %v2852 = vmul.f32 %v2831, %v2831
  %v2853 = vmul.f32 %v2746, %v2746
  %v2854 = vmul.f32 %v2748, %v2748
  %v2855 = vmul.f32 %v2835, %v2835
  %v2856 = vmul.f32 %v2837, %v2837
  %v2857 = vmul.f32 %v2752, %v2752
  %v2858 = vmul.f32 %v2754, %v2754
  %v2859 = vmul.f32 %v2841, %v2841
  %v2860 = vmul.f32 %v2843, %v2843
  %v2861 = vadd.f32 %v2845, %v2853
  %v2862 = vadd.f32 %v2846, %v2854
  %v2863 = vadd.f32 %v2847, %v2855
  %v2864 = vadd.f32 %v2848, %v2856
  %v2865 = vadd.f32 %v2849, %v2857
  %v2866 = vadd.f32 %v2850, %v2858
  %v2867 = vadd.f32 %v2851, %v2859
  %v2868 = vadd.f32 %v2852, %v2860
  %vm2869 = vcmask 130048
  %v2871 = vsel %vm2869, %v18, 0
  %2873 = vmatprep.subr.mxu0 0.0
  %2874 = vmatpush1.msra.mxu0 0.0
  %2875 = vmatprep.subr.mxu0 0.0
  %2876 = vmatpush1.msra.mxu0 0.0
  %2877 = vmatprep.subr.mxu0 0.0
  %2878 = vmatpush1.msra.mxu0 0.0
  %2879 = vmatprep.subr.mxu0 0.0
  %2880 = vmatpush1.msra.mxu0 0.0
  %2881 = vmatprep.subr.mxu0 0.0
  %2882 = vmatpush1.msra.mxu0 0.0
  %2883 = vmatprep.subr.mxu0 0.0
  %2884 = vmatpush1.msra.mxu0 0.0
  %2885 = vmatprep.subr.mxu0 0.0
  %2886 = vmatpush1.msra.mxu0 0.0
  %2887 = vmatprep.subr.mxu0 0.0
  %2888 = vmatpush1.msra.mxu0 0.0
  %2889 = vmatprep.subr.mxu0 0.0
  %2890 = vmatpush1.msra.mxu0 0.0
  %2891 = vmatprep.subr.mxu0 0.0
  %2892 = vmatpush1.msra.mxu0 0.0
  %2893 = vmatprep.subr.mxu0 0.0
  %2894 = vmatpush1.msra.mxu0 0.0
  %2895 = vmatprep.subr.mxu0 0.0
  %2896 = vmatpush1.msra.mxu0 0.0
  %2897 = vmatprep.subr.mxu0 0.0
  %2898 = vmatpush1.msra.mxu0 0.0
  %2899 = vmatprep.subr.mxu0 0.0
  %2900 = vmatpush1.msra.mxu0 0.0
  %2901 = vmatprep.subr.mxu0 %v2866
  %2902 = vmatpush1.msra.mxu0 %v2865
  %2903 = vmatprep.subr.mxu0 %v2862
  %2904 = vmatpush1.msra.mxu0 %v2861
  %2905 = vmatprep.subr.mxu0 0.0
  %2906 = vmatpush2.msra.mxu0 0.0
  %2907 = vmatprep.subr.mxu0 0.0
  %2908 = vmatpush2.msra.mxu0 0.0
  %2909 = vmatprep.subr.mxu0 0.0
  %2910 = vmatpush2.msra.mxu0 0.0
  %2911 = vmatprep.subr.mxu0 0.0
  %2912 = vmatpush2.msra.mxu0 0.0
  %2913 = vmatprep.subr.mxu0 0.0
  %2914 = vmatpush2.msra.mxu0 0.0
  %2915 = vmatprep.subr.mxu0 0.0
  %2916 = vmatpush2.msra.mxu0 0.0
  %2917 = vmatprep.subr.mxu0 0.0
  %2918 = vmatpush2.msra.mxu0 0.0
  %2919 = vmatprep.subr.mxu0 0.0
  %2920 = vmatpush2.msra.mxu0 0.0
  %2921 = vmatprep.subr.mxu0 0.0
  %2922 = vmatpush2.msra.mxu0 0.0
  %2923 = vmatprep.subr.mxu0 0.0
  %2924 = vmatpush2.msra.mxu0 0.0
  %2925 = vmatprep.subr.mxu0 0.0
  %2926 = vmatpush2.msra.mxu0 0.0
  %2927 = vmatprep.subr.mxu0 0.0
  %2928 = vmatpush2.msra.mxu0 0.0
  %2929 = vmatprep.subr.mxu0 0.0
  %2930 = vmatpush2.msra.mxu0 0.0
  %2931 = vmatprep.subr.mxu0 0.0
  %2932 = vmatpush2.msra.mxu0 0.0
  %2933 = vmatprep.subr.mxu0 0.0
  %2934 = vmatpush2.msra.mxu0 0.0
  %2935 = vmatprep.subr.mxu0 0.0
  %2936 = vmatpush2.msra.mxu0 0.0
  %2937 = vmatprep.mubr.f32.mxu0 0.0
  %2938 = vmatmul.mubr.f32.gmra.mxu0 %v2871
  %v2939 = vpop.f32.mrf.mxu0
  %v2940 = vadd.f32 0.0, %v2939
  %v2941 = vpop.f32.mrf.mxu0
  %v2942 = vadd.f32 0.0, %v2941
  %2943 = vdwg.mxu0
  %2944 = vmatprep.subr.mxu0 0.0
  %2945 = vmatpush1.msra.mxu0 0.0
  %2946 = vmatprep.subr.mxu0 0.0
  %2947 = vmatpush1.msra.mxu0 0.0
  %2948 = vmatprep.subr.mxu0 0.0
  %2949 = vmatpush1.msra.mxu0 0.0
  %2950 = vmatprep.subr.mxu0 0.0
  %2951 = vmatpush1.msra.mxu0 0.0
  %2952 = vmatprep.subr.mxu0 0.0
  %2953 = vmatpush1.msra.mxu0 0.0
  %2954 = vmatprep.subr.mxu0 0.0
  %2955 = vmatpush1.msra.mxu0 0.0
  %2956 = vmatprep.subr.mxu0 0.0
  %2957 = vmatpush1.msra.mxu0 0.0
  %2958 = vmatprep.subr.mxu0 0.0
  %2959 = vmatpush1.msra.mxu0 0.0
  %2960 = vmatprep.subr.mxu0 0.0
  %2961 = vmatpush1.msra.mxu0 0.0
  %2962 = vmatprep.subr.mxu0 0.0
  %2963 = vmatpush1.msra.mxu0 0.0
  %2964 = vmatprep.subr.mxu0 0.0
  %2965 = vmatpush1.msra.mxu0 0.0
  %2966 = vmatprep.subr.mxu0 0.0
  %2967 = vmatpush1.msra.mxu0 0.0
  %2968 = vmatprep.subr.mxu0 0.0
  %2969 = vmatpush1.msra.mxu0 0.0
  %2970 = vmatprep.subr.mxu0 0.0
  %2971 = vmatpush1.msra.mxu0 0.0
  %2972 = vmatprep.subr.mxu0 %v2868
  %2973 = vmatpush1.msra.mxu0 %v2867
  %2974 = vmatprep.subr.mxu0 %v2864
  %2975 = vmatpush1.msra.mxu0 %v2863
  %2976 = vmatprep.subr.mxu0 0.0
  %2977 = vmatpush2.msra.mxu0 0.0
  %2978 = vmatprep.subr.mxu0 0.0
  %2979 = vmatpush2.msra.mxu0 0.0
  %2980 = vmatprep.subr.mxu0 0.0
  %2981 = vmatpush2.msra.mxu0 0.0
  %2982 = vmatprep.subr.mxu0 0.0
  %2983 = vmatpush2.msra.mxu0 0.0
  %2984 = vmatprep.subr.mxu0 0.0
  %2985 = vmatpush2.msra.mxu0 0.0
  %2986 = vmatprep.subr.mxu0 0.0
  %2987 = vmatpush2.msra.mxu0 0.0
  %2988 = vmatprep.subr.mxu0 0.0
  %2989 = vmatpush2.msra.mxu0 0.0
  %2990 = vmatprep.subr.mxu0 0.0
  %2991 = vmatpush2.msra.mxu0 0.0
  %2992 = vmatprep.subr.mxu0 0.0
  %2993 = vmatpush2.msra.mxu0 0.0
  %2994 = vmatprep.subr.mxu0 0.0
  %2995 = vmatpush2.msra.mxu0 0.0
  %2996 = vmatprep.subr.mxu0 0.0
  %2997 = vmatpush2.msra.mxu0 0.0
  %2998 = vmatprep.subr.mxu0 0.0
  %2999 = vmatpush2.msra.mxu0 0.0
  %3000 = vmatprep.subr.mxu0 0.0
  %3001 = vmatpush2.msra.mxu0 0.0
  %3002 = vmatprep.subr.mxu0 0.0
  %3003 = vmatpush2.msra.mxu0 0.0
  %3004 = vmatprep.subr.mxu0 0.0
  %3005 = vmatpush2.msra.mxu0 0.0
  %3006 = vmatprep.subr.mxu0 0.0
  %3007 = vmatpush2.msra.mxu0 0.0
  %3008 = vmatprep.mubr.f32.mxu0 0.0
  %3009 = vmatmul.mubr.f32.gmra.mxu0 %v2871
  %v3010 = vpop.f32.mrf.mxu0
  %v3011 = vadd.f32 0.0, %v3010
  %v3012 = vpop.f32.mrf.mxu0
  %v3013 = vadd.f32 0.0, %v3012
  %3014 = vdwg.mxu0
  %vm3015 = vcmask 1043456
  %v3016 = vsel %vm3015, %v2940, -inf
  %v3017 = vrot.slane %v3016, 4
  %v3018 = vmax.f32 %v3016, %v3017
  %v3019 = vrot.slane %v3018, 2
  %v3020 = vmax.f32 %v3018, %v3019
  %v3021 = vrot.slane %v3020, 1
  %v3022 = vmax.f32 %v3020, %v3021
  %v3023 = vsel %vm3015, %v2942, -inf
  %v3024 = vrot.slane %v3023, 4
  %v3025 = vmax.f32 %v3023, %v3024
  %v3026 = vrot.slane %v3025, 2
  %v3027 = vmax.f32 %v3025, %v3026
  %v3028 = vrot.slane %v3027, 1
  %v3029 = vmax.f32 %v3027, %v3028
  %v3030 = vsel %vm3015, %v3011, -inf
  %v3031 = vrot.slane %v3030, 4
  %v3032 = vmax.f32 %v3030, %v3031
  %v3033 = vrot.slane %v3032, 2
  %v3034 = vmax.f32 %v3032, %v3033
  %v3035 = vrot.slane %v3034, 1
  %v3036 = vmax.f32 %v3034, %v3035
  %v3037 = vsel %vm3015, %v3013, -inf
  %v3038 = vrot.slane %v3037, 4
  %v3039 = vmax.f32 %v3037, %v3038
  %v3040 = vrot.slane %v3039, 2
  %v3041 = vmax.f32 %v3039, %v3040
  %v3042 = vrot.slane %v3041, 1
  %v3043 = vmax.f32 %v3041, %v3042
  %v3044 = vsub.f32 %v2940, %v3022
  %v3045 = vsub.f32 %v2942, %v3029
  %v3046 = vsub.f32 %v3011, %v3036
  %v3047 = vsub.f32 %v3013, %v3043
  %v3048 = vmul.f32 %v3044, 1.442695
  %v3049 = vpow.pop %v3048
  %v3050 = vmul.f32 %v3045, 1.442695
  %v3051 = vpow.pop %v3050
  %v3052 = vmul.f32 %v3046, 1.442695
  %v3053 = vpow.pop %v3052
  %v3054 = vmul.f32 %v3047, 1.442695
  %v3055 = vpow.pop %v3054
  %v3056 = vsel %vm3015, %v3049, 0.0
  %v3057 = vrot.slane %v3056, 4
  %v3058 = vadd.f32 %v3056, %v3057
  %v3059 = vrot.slane %v3058, 2
  %v3060 = vadd.f32 %v3058, %v3059
  %v3061 = vrot.slane %v3060, 1
  %v3062 = vadd.f32 %v3060, %v3061
  %v3063 = vsel %vm3015, %v3051, 0.0
  %v3064 = vrot.slane %v3063, 4
  %v3065 = vadd.f32 %v3063, %v3064
  %v3066 = vrot.slane %v3065, 2
  %v3067 = vadd.f32 %v3065, %v3066
  %v3068 = vrot.slane %v3067, 1
  %v3069 = vadd.f32 %v3067, %v3068
  %v3070 = vsel %vm3015, %v3053, 0.0
  %v3071 = vrot.slane %v3070, 4
  %v3072 = vadd.f32 %v3070, %v3071
  %v3073 = vrot.slane %v3072, 2
  %v3074 = vadd.f32 %v3072, %v3073
  %v3075 = vrot.slane %v3074, 1
  %v3076 = vadd.f32 %v3074, %v3075
  %v3077 = vsel %vm3015, %v3055, 0.0
  %v3078 = vrot.slane %v3077, 4
  %v3079 = vadd.f32 %v3077, %v3078
  %v3080 = vrot.slane %v3079, 2
  %v3081 = vadd.f32 %v3079, %v3080
  %v3082 = vrot.slane %v3081, 1
  %v3083 = vadd.f32 %v3081, %v3082
  %v3084 = vlog2.pop %v3062
  %v3085 = vmul.f32 %v3084, 0.6931472
  %v3086 = vlog2.pop %v3069
  %v3087 = vmul.f32 %v3086, 0.6931472
  %v3088 = vlog2.pop %v3076
  %v3089 = vmul.f32 %v3088, 0.6931472
  %v3090 = vlog2.pop %v3083
  %v3091 = vmul.f32 %v3090, 0.6931472
  %v3092 = vsub.f32 %v3044, %v3085
  %v3093 = vsub.f32 %v3045, %v3087
  %v3094 = vsub.f32 %v3046, %v3089
  %v3095 = vsub.f32 %v3047, %v3091
  %v3100 = vcombine.low %v3092, %v3093
  %v3101 = vcombine.low %v3094, %v3095
  %3104 = vst [vmem:[%s3] sm:$0xff] %v3100
  %3105 = vst [vmem:[%s3 + $0x8] sm:$0xff] %v3101
  // Predicated region
  $region14: #{forward.1} parent=0 // pred_check
    _
  $region15: #{forward.1} parent=0 // pred_check_branch
    %3107 = sbr.rel (0) target = $region17
  $region16: #{forward.1} parent=0 // pred_region
    _
  $region17: #{forward.1} parent=0 // pred_fallthru
    _
  // Predicated region
  $region18: #{forward.1} parent=0 // pred_check
    _
  $region19: #{forward.1} parent=0 // pred_check_branch
    %3109 = sbr.rel (0) target = $region21
  $region20: #{forward.1} parent=0 // pred_region
    _
  $region21: #{forward.1} parent=0 // pred_fallthru
    _

</llo_original>
